<compile_context>
chip_gen: v7x
topology: tpu7x:2x2x1
jax: 0.10.0
libtpu: 0.0.40
codegen_flags: <defaults>
</compile_context>

<pallas_src>
import functools

import jax
import jax.numpy as jnp
from jax.experimental import pallas as pl
from jax.experimental.pallas import tpu as pltpu


def _round_up(v, m):
    return ((v + m - 1) // m) * m


# ---------------------------------------------------------------------------
# Fused kernel: num_layers-deep LSTM over the whole sequence + Linear(H -> 1).
# ---------------------------------------------------------------------------
def _fused_lstm_fc_kernel(num_layers, Hp, x_ref, wih0_ref, whh0_ref, b0_ref,
                          *rest):
    """rest = [wpack_1, b_1, ..., wpack_{L-1}, b_{L-1}, fc_w, fc_b,
               out_ref, gx0_scratch]

    Shapes (per-gate padded to Hp lanes, gate order [i, f, o, g]):
      x (B, T, I); wih0 (I, 4Hp) bf16; whh0 (Hp, 4Hp) bf16; b (1, 4Hp) f32;
      wpack_l (2Hp, 4Hp) bf16; fc_w (1, Hp) f32; fc_b (1, 1) f32;
      out (B, 1) f32; gx0_scratch (B, T, 4Hp) f32.
    """
    n_mid = 2 * (num_layers - 1)
    layer_refs = rest[:n_mid]
    fc_w_ref = rest[n_mid]
    fc_b_ref = rest[n_mid + 1]
    out_ref = rest[n_mid + 2]
    gx0_ref = rest[n_mid + 3]

    B, T, I = x_ref.shape
    G = 4 * Hp

    # ---- Hoisted layer-0 input projection: one (B*T, I) @ (I, 4Hp) bf16
    #      matmul, bias folded in once; result parked in VMEM scratch so the
    #      unrolled recurrence only keeps one (B, 4Hp) slice live at a time.
    x2d = x_ref[...].reshape(B * T, I).astype(jnp.bfloat16)
    gx0 = jnp.dot(x2d, wih0_ref[...], preferred_element_type=jnp.float32)
    gx0_ref[...] = (gx0 + b0_ref[...]).reshape(B, T, G)

    # Bias broadcasts hoisted once (JAX does not CSE broadcast_in_dim).
    bias = [jnp.broadcast_to(layer_refs[2 * j + 1][...], (B, G))
            for j in range(num_layers - 1)]

    h = [jnp.zeros((B, Hp), jnp.float32) for _ in range(num_layers)]
    c = [jnp.zeros((B, Hp), jnp.float32) for _ in range(num_layers)]

    def cell(gates, c_prev):
        # Gate layout: [ i | f | o | g ], each gate Hp lanes (whole vregs).
        # One fused sigmoid over the first 3*Hp lanes, one tanh over the last.
        sig = jax.nn.sigmoid(gates[:, :3 * Hp])
        i_g = sig[:, 0 * Hp:1 * Hp]
        f_g = sig[:, 1 * Hp:2 * Hp]
        o_g = sig[:, 2 * Hp:3 * Hp]
        g_g = jnp.tanh(gates[:, 3 * Hp:])
        c_new = f_g * c_prev + i_g * g_g
        h_new = o_g * jnp.tanh(c_new)
        return h_new, c_new

    # Recurrence is inherently serial; static unroll at toy T.
    # TODO(synk): chunk T with a grid axis + scratch-resident h/c for long T.
    for t in range(T):
        # Layer 0: input projection precomputed above; only h @ W_hh here.
        gates0 = gx0_ref[:, t, :] + jnp.dot(
            h[0].astype(jnp.bfloat16), whh0_ref[...],
            preferred_element_type=jnp.float32)
        h[0], c[0] = cell(gates0, c[0])
        # Layers 1 .. L-1: single fused matmul [h_below, h] @ [W_ih; W_hh].
        for l in range(1, num_layers):
            # TODO(synk): inter-layer dropout treated as inference mode (p=0).
            j = l - 1
            hin = jnp.concatenate([h[l - 1], h[l]], axis=1).astype(jnp.bfloat16)
            gates = jnp.dot(hin, layer_refs[2 * j][...],
                            preferred_element_type=jnp.float32) + bias[j]
            h[l], c[l] = cell(gates, c[l])

    # ---- Final Linear(hidden -> 1): VPU multiply + lane reduce (no N=1 MXU
    #      pass).  Padded lanes of h and fc_w are zero, so the sum is exact.
    fc_w = jnp.broadcast_to(fc_w_ref[...], (B, Hp))
    out_ref[...] = (jnp.sum(h[num_layers - 1] * fc_w, axis=-1, keepdims=True)
                    + fc_b_ref[...])


# ---------------------------------------------------------------------------
# Wrapper (matches Lstm.forward).
# ---------------------------------------------------------------------------
@jax.jit
def lstm_forward(x, params):
    """x: (B, T, input_size), batch-first as in the PyTorch module."""
    layers = params["lstm"]
    num_layers = len(layers)
    B, T, _I = x.shape
    Hp = params["fc_w"].shape[1]

    args = [x]
    l0 = layers[0]
    args += [l0["wih_t"], l0["whh_t"], l0["b"]]
    for layer in layers[1:]:
        args += [layer["w_pack"], layer["b"]]
    args += [params["fc_w"], params["fc_b"]]

    # Explicit scoped-VMEM limit sized to the resident footprint (+ headroom).
    footprint = sum(int(a.size) * a.dtype.itemsize for a in args)
    footprint += B * T * 4 * Hp * 4 + B * 4          # gx0 scratch + output
    vmem_limit = int(min(100 << 20, max(16 << 20, 2 * footprint + (2 << 20))))

    vmem = pl.BlockSpec(memory_space=pltpu.MemorySpace.VMEM)
    out = pl.pallas_call(
        functools.partial(_fused_lstm_fc_kernel, num_layers, Hp),
        out_shape=jax.ShapeDtypeStruct((B, 1), jnp.float32),
        in_specs=[vmem] * len(args),
        out_specs=vmem,
        scratch_shapes=[pltpu.VMEM((B, T, 4 * Hp), jnp.float32)],
        compiler_params=pltpu.CompilerParams(vmem_limit_bytes=vmem_limit),
    )(*args)
    return out[0]  # shape (1,): matches `out = self.fc(output); out = out[0]`


# ---------------------------------------------------------------------------
# Parameter construction (PyTorch-style uniform init) with kernel packing:
#   * gate rows reordered [i,f,g,o] -> [i,f,o,g]
#   * each gate zero-padded to Hp = round_up(H, 128) lanes
#   * layers >= 1: W_ih^T and W_hh^T stacked into one (2Hp, 4Hp) matrix
#   * matmul weights in bf16; biases / fc params in f32
# ---------------------------------------------------------------------------
def _reorder_pad_gate_rows(w, H, Hp):
    """w: (4H, ...) in PyTorch order [i,f,g,o] -> [i,f,o,g], each gate block
    zero-padded from H to Hp rows -> (4Hp, ...)."""
    i, f, g, o = jnp.split(w, 4, axis=0)
    pad = [(0, Hp - H)] + [(0, 0)] * (w.ndim - 1)
    return jnp.concatenate([jnp.pad(b, pad) for b in (i, f, o, g)], axis=0)


def _pad_rows(w, H, Hp):
    return jnp.pad(w, [(0, Hp - H)] + [(0, 0)] * (w.ndim - 1))


def init_params(key, input_size, hidden_size, num_layers):
    H = hidden_size
    Hp = H if H % 128 == 0 else _round_up(H, 128)
    bound = 1.0 / (hidden_size ** 0.5)

    layers = []
    for layer in range(num_layers):
        in_dim = input_size if layer == 0 else hidden_size
        key, k1, k2, k3, k4 = jax.random.split(key, 5)
        w_ih = jax.random.uniform(k1, (4 * H, in_dim), jnp.float32, -bound, bound)
        w_hh = jax.random.uniform(k2, (4 * H, H), jnp.float32, -bound, bound)
        b_ih = jax.random.uniform(k3, (4 * H,), jnp.float32, -bound, bound)
        b_hh = jax.random.uniform(k4, (4 * H,), jnp.float32, -bound, bound)

        b = _reorder_pad_gate_rows(b_ih + b_hh, H, Hp)[None, :]        # (1, 4Hp)
        wih_t = _reorder_pad_gate_rows(w_ih, H, Hp).T                  # (in, 4Hp)
        whh_t = _pad_rows(_reorder_pad_gate_rows(w_hh, H, Hp).T, H, Hp)  # (Hp, 4Hp)

        if layer == 0:
            layers.append({
                "wih_t": wih_t.astype(jnp.bfloat16),
                "whh_t": whh_t.astype(jnp.bfloat16),
                "b": b,
            })
        else:
            wih_t_p = _pad_rows(wih_t, H, Hp)                          # (Hp, 4Hp)
            w_pack = jnp.concatenate([wih_t_p, whh_t], axis=0)         # (2Hp, 4Hp)
            layers.append({
                "w_pack": w_pack.astype(jnp.bfloat16),
                "b": b,
            })

    key, kw, kb = jax.random.split(key, 3)
    fc_w = jax.random.uniform(kw, (1, H), jnp.float32, -bound, bound)
    fc_b = jax.random.uniform(kb, (1,), jnp.float32, -bound, bound)
    return {"lstm": layers,
            "fc_w": jnp.pad(fc_w, ((0, 0), (0, Hp - H))),              # (1, Hp)
            "fc_b": fc_b[None, :]}                                     # (1, 1)


if __name__ == "__main__":
    # Small shapes consistent with the module.
    batch = 2
    time_step = 8
    input_size = 16
    hidden_size = 32
    num_layers = 2

    key = jax.random.PRNGKey(0)
    key_x, key_p = jax.random.split(key)
    x = jax.random.normal(key_x, (batch, time_step, input_size), jnp.float32)
    params = init_params(key_p, input_size, hidden_size, num_layers)

    out = lstm_forward(x, params)
    jax.block_until_ready(out)
    assert out.shape == (1,), out.shape
    assert bool(jnp.all(jnp.isfinite(out))), "non-finite output"
    print("KERNEL_OK")
</pallas_src>

<mosaic_0001>
module attributes {stable_mosaic.version = 11 : i64} {
  func.func @_fused_lstm_fc_kernel(%arg0: memref<2x8x16xf32, #tpu.memory_space<vmem>>, %arg1: memref<16x512xbf16, #tpu.memory_space<vmem>>, %arg2: memref<128x512xbf16, #tpu.memory_space<vmem>>, %arg3: memref<1x512xf32, #tpu.memory_space<vmem>>, %arg4: memref<256x512xbf16, #tpu.memory_space<vmem>>, %arg5: memref<1x512xf32, #tpu.memory_space<vmem>>, %arg6: memref<1x128xf32, #tpu.memory_space<vmem>>, %arg7: memref<1x1xf32, #tpu.memory_space<vmem>>, %arg8: memref<2x1xf32, #tpu.memory_space<vmem>>, %arg9: memref<2x8x512xf32, #tpu.memory_space<vmem>>) attributes {dimension_semantics = [], scalar_prefetch = 0 : i64, scratch_operands = 1 : i64, tpu.core_type = #tpu.core_type<tc>} {
    %c0 = arith.constant 0 : index
    %c0_0 = arith.constant 0 : index
    %c0_1 = arith.constant 0 : index
    %0 = vector.load %arg0[%c0, %c0_0, %c0_1] : memref<2x8x16xf32, #tpu.memory_space<vmem>>, vector<2x8x16xf32>
    %1 = vector.shape_cast %0 : vector<2x8x16xf32> to vector<16x16xf32>
    %2 = arith.truncf %1 : vector<16x16xf32> to vector<16x16xbf16>
    %c0_2 = arith.constant 0 : index
    %c0_3 = arith.constant 0 : index
    %3 = vector.load %arg1[%c0_2, %c0_3] : memref<16x512xbf16, #tpu.memory_space<vmem>>, vector<16x512xbf16>
    %cst = arith.constant dense<0.000000e+00> : vector<16x512xf32>
    %4 = tpu.matmul %2, %3, %cst {dimension_numbers = #tpu.dot_dimension_numbers<[1], [0], [0], [1], [0, 0, 1, 1], [], []>} : vector<16x16xbf16>, vector<16x512xbf16>, vector<16x512xf32> -> vector<16x512xf32>
    %c0_4 = arith.constant 0 : index
    %c0_5 = arith.constant 0 : index
    %5 = vector.load %arg3[%c0_4, %c0_5] : memref<1x512xf32, #tpu.memory_space<vmem>>, vector<1x512xf32>
    %6 = vector.broadcast %5 : vector<1x512xf32> to vector<16x512xf32>
    %7 = arith.addf %4, %6 : vector<16x512xf32>
    %8 = vector.shape_cast %7 : vector<16x512xf32> to vector<2x8x512xf32>
    %c0_6 = arith.constant 0 : index
    %c0_7 = arith.constant 0 : index
    %c0_8 = arith.constant 0 : index
    %9 = vector.load %arg9[%c0_6, %c0_7, %c0_8] : memref<2x8x512xf32, #tpu.memory_space<vmem>>, vector<2x8x512xf32>
    tpu.vector_store %arg9[%c0_6, %c0_7, %c0_8], %8 {strides = array<i32>} : memref<2x8x512xf32, #tpu.memory_space<vmem>>, vector<2x8x512xf32>,
    %c0_9 = arith.constant 0 : index
    %c0_10 = arith.constant 0 : index
    %10 = vector.load %arg5[%c0_9, %c0_10] : memref<1x512xf32, #tpu.memory_space<vmem>>, vector<1x512xf32>
    %11 = vector.shape_cast %10 : vector<1x512xf32> to vector<1x512xf32>
    %12 = vector.broadcast %11 : vector<1x512xf32> to vector<2x512xf32>
    %cst_11 = arith.constant 0.000000e+00 : f32
    %13 = vector.broadcast %cst_11 : f32 to vector<2x128xf32>
    %cst_12 = arith.constant 0.000000e+00 : f32
    %14 = vector.broadcast %cst_12 : f32 to vector<2x128xf32>
    %cst_13 = arith.constant 0.000000e+00 : f32
    %15 = vector.broadcast %cst_13 : f32 to vector<2x128xf32>
    %cst_14 = arith.constant 0.000000e+00 : f32
    %16 = vector.broadcast %cst_14 : f32 to vector<2x128xf32>
    %c0_15 = arith.constant 0 : index
    %c0_16 = arith.constant 0 : index
    %c0_17 = arith.constant 0 : index
    %17 = vector.load %arg9[%c0_15, %c0_16, %c0_17] : memref<2x8x512xf32, #tpu.memory_space<vmem>>, vector<2x1x512xf32>
    %18 = vector.shape_cast %17 : vector<2x1x512xf32> to vector<2x512xf32>
    %19 = arith.truncf %13 : vector<2x128xf32> to vector<2x128xbf16>
    %c0_18 = arith.constant 0 : index
    %c0_19 = arith.constant 0 : index
    %20 = vector.load %arg2[%c0_18, %c0_19] : memref<128x512xbf16, #tpu.memory_space<vmem>>, vector<128x512xbf16>
    %cst_20 = arith.constant dense<0.000000e+00> : vector<2x512xf32>
    %21 = tpu.matmul %19, %20, %cst_20 {dimension_numbers = #tpu.dot_dimension_numbers<[1], [0], [0], [1], [0, 0, 1, 1], [], []>} : vector<2x128xbf16>, vector<128x512xbf16>, vector<2x512xf32> -> vector<2x512xf32>
    %22 = arith.addf %18, %21 : vector<2x512xf32>
    %23 = vector.extract_strided_slice %22 {offsets = [0, 0], sizes = [2, 384], strides = [1, 1]} : vector<2x512xf32> to vector<2x384xf32>
    %24 = arith.negf %23 : vector<2x384xf32>
    %25 = math.exp %24 : vector<2x384xf32>
    %cst_21 = arith.constant 1.000000e+00 : f32
    %26 = vector.broadcast %cst_21 : f32 to vector<2x384xf32>
    %27 = arith.addf %26, %25 : vector<2x384xf32>
    %28 = arith.divf %26, %27 : vector<2x384xf32>
    %29 = vector.extract_strided_slice %28 {offsets = [0, 0], sizes = [2, 128], strides = [1, 1]} : vector<2x384xf32> to vector<2x128xf32>
    %30 = vector.extract_strided_slice %28 {offsets = [0, 128], sizes = [2, 128], strides = [1, 1]} : vector<2x384xf32> to vector<2x128xf32>
    %31 = vector.extract_strided_slice %28 {offsets = [0, 256], sizes = [2, 128], strides = [1, 1]} : vector<2x384xf32> to vector<2x128xf32>
    %32 = vector.extract_strided_slice %22 {offsets = [0, 384], sizes = [2, 128], strides = [1, 1]} : vector<2x512xf32> to vector<2x128xf32>
    %33 = math.tanh %32 : vector<2x128xf32>
    %34 = arith.mulf %30, %15 : vector<2x128xf32>
    %35 = arith.mulf %29, %33 : vector<2x128xf32>
    %36 = arith.addf %34, %35 : vector<2x128xf32>
    %37 = math.tanh %36 : vector<2x128xf32>
    %38 = arith.mulf %31, %37 : vector<2x128xf32>
    %39 = tpu.concatenate %38, %14 in 1 : vector<2x128xf32>, vector<2x128xf32> -> vector<2x256xf32>
    %40 = arith.truncf %39 : vector<2x256xf32> to vector<2x256xbf16>
    %c0_22 = arith.constant 0 : index
    %c0_23 = arith.constant 0 : index
    %41 = vector.load %arg4[%c0_22, %c0_23] : memref<256x512xbf16, #tpu.memory_space<vmem>>, vector<256x512xbf16>
    %cst_24 = arith.constant dense<0.000000e+00> : vector<2x512xf32>
    %42 = tpu.matmul %40, %41, %cst_24 {dimension_numbers = #tpu.dot_dimension_numbers<[1], [0], [0], [1], [0, 0, 1, 1], [], []>} : vector<2x256xbf16>, vector<256x512xbf16>, vector<2x512xf32> -> vector<2x512xf32>
    %43 = arith.addf %42, %12 : vector<2x512xf32>
    %44 = vector.extract_strided_slice %43 {offsets = [0, 0], sizes = [2, 384], strides = [1, 1]} : vector<2x512xf32> to vector<2x384xf32>
    %45 = arith.negf %44 : vector<2x384xf32>
    %46 = math.exp %45 : vector<2x384xf32>
    %cst_25 = arith.constant 1.000000e+00 : f32
    %47 = vector.broadcast %cst_25 : f32 to vector<2x384xf32>
    %48 = arith.addf %47, %46 : vector<2x384xf32>
    %49 = arith.divf %47, %48 : vector<2x384xf32>
    %50 = vector.extract_strided_slice %49 {offsets = [0, 0], sizes = [2, 128], strides = [1, 1]} : vector<2x384xf32> to vector<2x128xf32>
    %51 = vector.extract_strided_slice %49 {offsets = [0, 128], sizes = [2, 128], strides = [1, 1]} : vector<2x384xf32> to vector<2x128xf32>
    %52 = vector.extract_strided_slice %49 {offsets = [0, 256], sizes = [2, 128], strides = [1, 1]} : vector<2x384xf32> to vector<2x128xf32>
    %53 = vector.extract_strided_slice %43 {offsets = [0, 384], sizes = [2, 128], strides = [1, 1]} : vector<2x512xf32> to vector<2x128xf32>
    %54 = math.tanh %53 : vector<2x128xf32>
    %55 = arith.mulf %51, %16 : vector<2x128xf32>
    %56 = arith.mulf %50, %54 : vector<2x128xf32>
    %57 = arith.addf %55, %56 : vector<2x128xf32>
    %58 = math.tanh %57 : vector<2x128xf32>
    %59 = arith.mulf %52, %58 : vector<2x128xf32>
    %c0_26 = arith.constant 0 : index
    %c1 = arith.constant 1 : index
    %c0_27 = arith.constant 0 : index
    %60 = vector.load %arg9[%c0_26, %c1, %c0_27] : memref<2x8x512xf32, #tpu.memory_space<vmem>>, vector<2x1x512xf32>
    %61 = vector.shape_cast %60 : vector<2x1x512xf32> to vector<2x512xf32>
    %62 = arith.truncf %38 : vector<2x128xf32> to vector<2x128xbf16>
    %c0_28 = arith.constant 0 : index
    %c0_29 = arith.constant 0 : index
    %63 = vector.load %arg2[%c0_28, %c0_29] : memref<128x512xbf16, #tpu.memory_space<vmem>>, vector<128x512xbf16>
    %cst_30 = arith.constant dense<0.000000e+00> : vector<2x512xf32>
    %64 = tpu.matmul %62, %63, %cst_30 {dimension_numbers = #tpu.dot_dimension_numbers<[1], [0], [0], [1], [0, 0, 1, 1], [], []>} : vector<2x128xbf16>, vector<128x512xbf16>, vector<2x512xf32> -> vector<2x512xf32>
    %65 = arith.addf %61, %64 : vector<2x512xf32>
    %66 = vector.extract_strided_slice %65 {offsets = [0, 0], sizes = [2, 384], strides = [1, 1]} : vector<2x512xf32> to vector<2x384xf32>
    %67 = arith.negf %66 : vector<2x384xf32>
    %68 = math.exp %67 : vector<2x384xf32>
    %cst_31 = arith.constant 1.000000e+00 : f32
    %69 = vector.broadcast %cst_31 : f32 to vector<2x384xf32>
    %70 = arith.addf %69, %68 : vector<2x384xf32>
    %71 = arith.divf %69, %70 : vector<2x384xf32>
    %72 = vector.extract_strided_slice %71 {offsets = [0, 0], sizes = [2, 128], strides = [1, 1]} : vector<2x384xf32> to vector<2x128xf32>
    %73 = vector.extract_strided_slice %71 {offsets = [0, 128], sizes = [2, 128], strides = [1, 1]} : vector<2x384xf32> to vector<2x128xf32>
    %74 = vector.extract_strided_slice %71 {offsets = [0, 256], sizes = [2, 128], strides = [1, 1]} : vector<2x384xf32> to vector<2x128xf32>
    %75 = vector.extract_strided_slice %65 {offsets = [0, 384], sizes = [2, 128], strides = [1, 1]} : vector<2x512xf32> to vector<2x128xf32>
    %76 = math.tanh %75 : vector<2x128xf32>
    %77 = arith.mulf %73, %36 : vector<2x128xf32>
    %78 = arith.mulf %72, %76 : vector<2x128xf32>
    %79 = arith.addf %77, %78 : vector<2x128xf32>
    %80 = math.tanh %79 : vector<2x128xf32>
    %81 = arith.mulf %74, %80 : vector<2x128xf32>
    %82 = tpu.concatenate %81, %59 in 1 : vector<2x128xf32>, vector<2x128xf32> -> vector<2x256xf32>
    %83 = arith.truncf %82 : vector<2x256xf32> to vector<2x256xbf16>
    %c0_32 = arith.constant 0 : index
    %c0_33 = arith.constant 0 : index
    %84 = vector.load %arg4[%c0_32, %c0_33] : memref<256x512xbf16, #tpu.memory_space<vmem>>, vector<256x512xbf16>
    %cst_34 = arith.constant dense<0.000000e+00> : vector<2x512xf32>
    %85 = tpu.matmul %83, %84, %cst_34 {dimension_numbers = #tpu.dot_dimension_numbers<[1], [0], [0], [1], [0, 0, 1, 1], [], []>} : vector<2x256xbf16>, vector<256x512xbf16>, vector<2x512xf32> -> vector<2x512xf32>
    %86 = arith.addf %85, %12 : vector<2x512xf32>
    %87 = vector.extract_strided_slice %86 {offsets = [0, 0], sizes = [2, 384], strides = [1, 1]} : vector<2x512xf32> to vector<2x384xf32>
    %88 = arith.negf %87 : vector<2x384xf32>
    %89 = math.exp %88 : vector<2x384xf32>
    %cst_35 = arith.constant 1.000000e+00 : f32
    %90 = vector.broadcast %cst_35 : f32 to vector<2x384xf32>
    %91 = arith.addf %90, %89 : vector<2x384xf32>
    %92 = arith.divf %90, %91 : vector<2x384xf32>
    %93 = vector.extract_strided_slice %92 {offsets = [0, 0], sizes = [2, 128], strides = [1, 1]} : vector<2x384xf32> to vector<2x128xf32>
    %94 = vector.extract_strided_slice %92 {offsets = [0, 128], sizes = [2, 128], strides = [1, 1]} : vector<2x384xf32> to vector<2x128xf32>
    %95 = vector.extract_strided_slice %92 {offsets = [0, 256], sizes = [2, 128], strides = [1, 1]} : vector<2x384xf32> to vector<2x128xf32>
    %96 = vector.extract_strided_slice %86 {offsets = [0, 384], sizes = [2, 128], strides = [1, 1]} : vector<2x512xf32> to vector<2x128xf32>
    %97 = math.tanh %96 : vector<2x128xf32>
    %98 = arith.mulf %94, %57 : vector<2x128xf32>
    %99 = arith.mulf %93, %97 : vector<2x128xf32>
    %100 = arith.addf %98, %99 : vector<2x128xf32>
    %101 = math.tanh %100 : vector<2x128xf32>
    %102 = arith.mulf %95, %101 : vector<2x128xf32>
    %c0_36 = arith.constant 0 : index
    %c2 = arith.constant 2 : index
    %c0_37 = arith.constant 0 : index
    %103 = vector.load %arg9[%c0_36, %c2, %c0_37] : memref<2x8x512xf32, #tpu.memory_space<vmem>>, vector<2x1x512xf32>
    %104 = vector.shape_cast %103 : vector<2x1x512xf32> to vector<2x512xf32>
    %105 = arith.truncf %81 : vector<2x128xf32> to vector<2x128xbf16>
    %c0_38 = arith.constant 0 : index
    %c0_39 = arith.constant 0 : index
    %106 = vector.load %arg2[%c0_38, %c0_39] : memref<128x512xbf16, #tpu.memory_space<vmem>>, vector<128x512xbf16>
    %cst_40 = arith.constant dense<0.000000e+00> : vector<2x512xf32>
    %107 = tpu.matmul %105, %106, %cst_40 {dimension_numbers = #tpu.dot_dimension_numbers<[1], [0], [0], [1], [0, 0, 1, 1], [], []>} : vector<2x128xbf16>, vector<128x512xbf16>, vector<2x512xf32> -> vector<2x512xf32>
    %108 = arith.addf %104, %107 : vector<2x512xf32>
    %109 = vector.extract_strided_slice %108 {offsets = [0, 0], sizes = [2, 384], strides = [1, 1]} : vector<2x512xf32> to vector<2x384xf32>
    %110 = arith.negf %109 : vector<2x384xf32>
    %111 = math.exp %110 : vector<2x384xf32>
    %cst_41 = arith.constant 1.000000e+00 : f32
    %112 = vector.broadcast %cst_41 : f32 to vector<2x384xf32>
    %113 = arith.addf %112, %111 : vector<2x384xf32>
    %114 = arith.divf %112, %113 : vector<2x384xf32>
    %115 = vector.extract_strided_slice %114 {offsets = [0, 0], sizes = [2, 128], strides = [1, 1]} : vector<2x384xf32> to vector<2x128xf32>
    %116 = vector.extract_strided_slice %114 {offsets = [0, 128], sizes = [2, 128], strides = [1, 1]} : vector<2x384xf32> to vector<2x128xf32>
    %117 = vector.extract_strided_slice %114 {offsets = [0, 256], sizes = [2, 128], strides = [1, 1]} : vector<2x384xf32> to vector<2x128xf32>
    %118 = vector.extract_strided_slice %108 {offsets = [0, 384], sizes = [2, 128], strides = [1, 1]} : vector<2x512xf32> to vector<2x128xf32>
    %119 = math.tanh %118 : vector<2x128xf32>
    %120 = arith.mulf %116, %79 : vector<2x128xf32>
    %121 = arith.mulf %115, %119 : vector<2x128xf32>
    %122 = arith.addf %120, %121 : vector<2x128xf32>
    %123 = math.tanh %122 : vector<2x128xf32>
    %124 = arith.mulf %117, %123 : vector<2x128xf32>
    %125 = tpu.concatenate %124, %102 in 1 : vector<2x128xf32>, vector<2x128xf32> -> vector<2x256xf32>
    %126 = arith.truncf %125 : vector<2x256xf32> to vector<2x256xbf16>
    %c0_42 = arith.constant 0 : index
    %c0_43 = arith.constant 0 : index
    %127 = vector.load %arg4[%c0_42, %c0_43] : memref<256x512xbf16, #tpu.memory_space<vmem>>, vector<256x512xbf16>
    %cst_44 = arith.constant dense<0.000000e+00> : vector<2x512xf32>
    %128 = tpu.matmul %126, %127, %cst_44 {dimension_numbers = #tpu.dot_dimension_numbers<[1], [0], [0], [1], [0, 0, 1, 1], [], []>} : vector<2x256xbf16>, vector<256x512xbf16>, vector<2x512xf32> -> vector<2x512xf32>
    %129 = arith.addf %128, %12 : vector<2x512xf32>
    %130 = vector.extract_strided_slice %129 {offsets = [0, 0], sizes = [2, 384], strides = [1, 1]} : vector<2x512xf32> to vector<2x384xf32>
    %131 = arith.negf %130 : vector<2x384xf32>
    %132 = math.exp %131 : vector<2x384xf32>
    %cst_45 = arith.constant 1.000000e+00 : f32
    %133 = vector.broadcast %cst_45 : f32 to vector<2x384xf32>
    %134 = arith.addf %133, %132 : vector<2x384xf32>
    %135 = arith.divf %133, %134 : vector<2x384xf32>
    %136 = vector.extract_strided_slice %135 {offsets = [0, 0], sizes = [2, 128], strides = [1, 1]} : vector<2x384xf32> to vector<2x128xf32>
    %137 = vector.extract_strided_slice %135 {offsets = [0, 128], sizes = [2, 128], strides = [1, 1]} : vector<2x384xf32> to vector<2x128xf32>
    %138 = vector.extract_strided_slice %135 {offsets = [0, 256], sizes = [2, 128], strides = [1, 1]} : vector<2x384xf32> to vector<2x128xf32>
    %139 = vector.extract_strided_slice %129 {offsets = [0, 384], sizes = [2, 128], strides = [1, 1]} : vector<2x512xf32> to vector<2x128xf32>
    %140 = math.tanh %139 : vector<2x128xf32>
    %141 = arith.mulf %137, %100 : vector<2x128xf32>
    %142 = arith.mulf %136, %140 : vector<2x128xf32>
    %143 = arith.addf %141, %142 : vector<2x128xf32>
    %144 = math.tanh %143 : vector<2x128xf32>
    %145 = arith.mulf %138, %144 : vector<2x128xf32>
    %c0_46 = arith.constant 0 : index
    %c3 = arith.constant 3 : index
    %c0_47 = arith.constant 0 : index
    %146 = vector.load %arg9[%c0_46, %c3, %c0_47] : memref<2x8x512xf32, #tpu.memory_space<vmem>>, vector<2x1x512xf32>
    %147 = vector.shape_cast %146 : vector<2x1x512xf32> to vector<2x512xf32>
    %148 = arith.truncf %124 : vector<2x128xf32> to vector<2x128xbf16>
    %c0_48 = arith.constant 0 : index
    %c0_49 = arith.constant 0 : index
    %149 = vector.load %arg2[%c0_48, %c0_49] : memref<128x512xbf16, #tpu.memory_space<vmem>>, vector<128x512xbf16>
    %cst_50 = arith.constant dense<0.000000e+00> : vector<2x512xf32>
    %150 = tpu.matmul %148, %149, %cst_50 {dimension_numbers = #tpu.dot_dimension_numbers<[1], [0], [0], [1], [0, 0, 1, 1], [], []>} : vector<2x128xbf16>, vector<128x512xbf16>, vector<2x512xf32> -> vector<2x512xf32>
    %151 = arith.addf %147, %150 : vector<2x512xf32>
    %152 = vector.extract_strided_slice %151 {offsets = [0, 0], sizes = [2, 384], strides = [1, 1]} : vector<2x512xf32> to vector<2x384xf32>
    %153 = arith.negf %152 : vector<2x384xf32>
    %154 = math.exp %153 : vector<2x384xf32>
    %cst_51 = arith.constant 1.000000e+00 : f32
    %155 = vector.broadcast %cst_51 : f32 to vector<2x384xf32>
    %156 = arith.addf %155, %154 : vector<2x384xf32>
    %157 = arith.divf %155, %156 : vector<2x384xf32>
    %158 = vector.extract_strided_slice %157 {offsets = [0, 0], sizes = [2, 128], strides = [1, 1]} : vector<2x384xf32> to vector<2x128xf32>
    %159 = vector.extract_strided_slice %157 {offsets = [0, 128], sizes = [2, 128], strides = [1, 1]} : vector<2x384xf32> to vector<2x128xf32>
    %160 = vector.extract_strided_slice %157 {offsets = [0, 256], sizes = [2, 128], strides = [1, 1]} : vector<2x384xf32> to vector<2x128xf32>
    %161 = vector.extract_strided_slice %151 {offsets = [0, 384], sizes = [2, 128], strides = [1, 1]} : vector<2x512xf32> to vector<2x128xf32>
    %162 = math.tanh %161 : vector<2x128xf32>
    %163 = arith.mulf %159, %122 : vector<2x128xf32>
    %164 = arith.mulf %158, %162 : vector<2x128xf32>
    %165 = arith.addf %163, %164 : vector<2x128xf32>
    %166 = math.tanh %165 : vector<2x128xf32>
    %167 = arith.mulf %160, %166 : vector<2x128xf32>
    %168 = tpu.concatenate %167, %145 in 1 : vector<2x128xf32>, vector<2x128xf32> -> vector<2x256xf32>
    %169 = arith.truncf %168 : vector<2x256xf32> to vector<2x256xbf16>
    %c0_52 = arith.constant 0 : index
    %c0_53 = arith.constant 0 : index
    %170 = vector.load %arg4[%c0_52, %c0_53] : memref<256x512xbf16, #tpu.memory_space<vmem>>, vector<256x512xbf16>
    %cst_54 = arith.constant dense<0.000000e+00> : vector<2x512xf32>
    %171 = tpu.matmul %169, %170, %cst_54 {dimension_numbers = #tpu.dot_dimension_numbers<[1], [0], [0], [1], [0, 0, 1, 1], [], []>} : vector<2x256xbf16>, vector<256x512xbf16>, vector<2x512xf32> -> vector<2x512xf32>
    %172 = arith.addf %171, %12 : vector<2x512xf32>
    %173 = vector.extract_strided_slice %172 {offsets = [0, 0], sizes = [2, 384], strides = [1, 1]} : vector<2x512xf32> to vector<2x384xf32>
    %174 = arith.negf %173 : vector<2x384xf32>
    %175 = math.exp %174 : vector<2x384xf32>
    %cst_55 = arith.constant 1.000000e+00 : f32
    %176 = vector.broadcast %cst_55 : f32 to vector<2x384xf32>
    %177 = arith.addf %176, %175 : vector<2x384xf32>
    %178 = arith.divf %176, %177 : vector<2x384xf32>
    %179 = vector.extract_strided_slice %178 {offsets = [0, 0], sizes = [2, 128], strides = [1, 1]} : vector<2x384xf32> to vector<2x128xf32>
    %180 = vector.extract_strided_slice %178 {offsets = [0, 128], sizes = [2, 128], strides = [1, 1]} : vector<2x384xf32> to vector<2x128xf32>
    %181 = vector.extract_strided_slice %178 {offsets = [0, 256], sizes = [2, 128], strides = [1, 1]} : vector<2x384xf32> to vector<2x128xf32>
    %182 = vector.extract_strided_slice %172 {offsets = [0, 384], sizes = [2, 128], strides = [1, 1]} : vector<2x512xf32> to vector<2x128xf32>
    %183 = math.tanh %182 : vector<2x128xf32>
    %184 = arith.mulf %180, %143 : vector<2x128xf32>
    %185 = arith.mulf %179, %183 : vector<2x128xf32>
    %186 = arith.addf %184, %185 : vector<2x128xf32>
    %187 = math.tanh %186 : vector<2x128xf32>
    %188 = arith.mulf %181, %187 : vector<2x128xf32>
    %c0_56 = arith.constant 0 : index
    %c4 = arith.constant 4 : index
    %c0_57 = arith.constant 0 : index
    %189 = vector.load %arg9[%c0_56, %c4, %c0_57] : memref<2x8x512xf32, #tpu.memory_space<vmem>>, vector<2x1x512xf32>
    %190 = vector.shape_cast %189 : vector<2x1x512xf32> to vector<2x512xf32>
    %191 = arith.truncf %167 : vector<2x128xf32> to vector<2x128xbf16>
    %c0_58 = arith.constant 0 : index
    %c0_59 = arith.constant 0 : index
    %192 = vector.load %arg2[%c0_58, %c0_59] : memref<128x512xbf16, #tpu.memory_space<vmem>>, vector<128x512xbf16>
    %cst_60 = arith.constant dense<0.000000e+00> : vector<2x512xf32>
    %193 = tpu.matmul %191, %192, %cst_60 {dimension_numbers = #tpu.dot_dimension_numbers<[1], [0], [0], [1], [0, 0, 1, 1], [], []>} : vector<2x128xbf16>, vector<128x512xbf16>, vector<2x512xf32> -> vector<2x512xf32>
    %194 = arith.addf %190, %193 : vector<2x512xf32>
    %195 = vector.extract_strided_slice %194 {offsets = [0, 0], sizes = [2, 384], strides = [1, 1]} : vector<2x512xf32> to vector<2x384xf32>
    %196 = arith.negf %195 : vector<2x384xf32>
    %197 = math.exp %196 : vector<2x384xf32>
    %cst_61 = arith.constant 1.000000e+00 : f32
    %198 = vector.broadcast %cst_61 : f32 to vector<2x384xf32>
    %199 = arith.addf %198, %197 : vector<2x384xf32>
    %200 = arith.divf %198, %199 : vector<2x384xf32>
    %201 = vector.extract_strided_slice %200 {offsets = [0, 0], sizes = [2, 128], strides = [1, 1]} : vector<2x384xf32> to vector<2x128xf32>
    %202 = vector.extract_strided_slice %200 {offsets = [0, 128], sizes = [2, 128], strides = [1, 1]} : vector<2x384xf32> to vector<2x128xf32>
    %203 = vector.extract_strided_slice %200 {offsets = [0, 256], sizes = [2, 128], strides = [1, 1]} : vector<2x384xf32> to vector<2x128xf32>
    %204 = vector.extract_strided_slice %194 {offsets = [0, 384], sizes = [2, 128], strides = [1, 1]} : vector<2x512xf32> to vector<2x128xf32>
    %205 = math.tanh %204 : vector<2x128xf32>
    %206 = arith.mulf %202, %165 : vector<2x128xf32>
    %207 = arith.mulf %201, %205 : vector<2x128xf32>
    %208 = arith.addf %206, %207 : vector<2x128xf32>
    %209 = math.tanh %208 : vector<2x128xf32>
    %210 = arith.mulf %203, %209 : vector<2x128xf32>
    %211 = tpu.concatenate %210, %188 in 1 : vector<2x128xf32>, vector<2x128xf32> -> vector<2x256xf32>
    %212 = arith.truncf %211 : vector<2x256xf32> to vector<2x256xbf16>
    %c0_62 = arith.constant 0 : index
    %c0_63 = arith.constant 0 : index
    %213 = vector.load %arg4[%c0_62, %c0_63] : memref<256x512xbf16, #tpu.memory_space<vmem>>, vector<256x512xbf16>
    %cst_64 = arith.constant dense<0.000000e+00> : vector<2x512xf32>
    %214 = tpu.matmul %212, %213, %cst_64 {dimension_numbers = #tpu.dot_dimension_numbers<[1], [0], [0], [1], [0, 0, 1, 1], [], []>} : vector<2x256xbf16>, vector<256x512xbf16>, vector<2x512xf32> -> vector<2x512xf32>
    %215 = arith.addf %214, %12 : vector<2x512xf32>
    %216 = vector.extract_strided_slice %215 {offsets = [0, 0], sizes = [2, 384], strides = [1, 1]} : vector<2x512xf32> to vector<2x384xf32>
    %217 = arith.negf %216 : vector<2x384xf32>
    %218 = math.exp %217 : vector<2x384xf32>
    %cst_65 = arith.constant 1.000000e+00 : f32
    %219 = vector.broadcast %cst_65 : f32 to vector<2x384xf32>
    %220 = arith.addf %219, %218 : vector<2x384xf32>
    %221 = arith.divf %219, %220 : vector<2x384xf32>
    %222 = vector.extract_strided_slice %221 {offsets = [0, 0], sizes = [2, 128], strides = [1, 1]} : vector<2x384xf32> to vector<2x128xf32>
    %223 = vector.extract_strided_slice %221 {offsets = [0, 128], sizes = [2, 128], strides = [1, 1]} : vector<2x384xf32> to vector<2x128xf32>
    %224 = vector.extract_strided_slice %221 {offsets = [0, 256], sizes = [2, 128], strides = [1, 1]} : vector<2x384xf32> to vector<2x128xf32>
    %225 = vector.extract_strided_slice %215 {offsets = [0, 384], sizes = [2, 128], strides = [1, 1]} : vector<2x512xf32> to vector<2x128xf32>
    %226 = math.tanh %225 : vector<2x128xf32>
    %227 = arith.mulf %223, %186 : vector<2x128xf32>
    %228 = arith.mulf %222, %226 : vector<2x128xf32>
    %229 = arith.addf %227, %228 : vector<2x128xf32>
    %230 = math.tanh %229 : vector<2x128xf32>
    %231 = arith.mulf %224, %230 : vector<2x128xf32>
    %c0_66 = arith.constant 0 : index
    %c5 = arith.constant 5 : index
    %c0_67 = arith.constant 0 : index
    %232 = vector.load %arg9[%c0_66, %c5, %c0_67] : memref<2x8x512xf32, #tpu.memory_space<vmem>>, vector<2x1x512xf32>
    %233 = vector.shape_cast %232 : vector<2x1x512xf32> to vector<2x512xf32>
    %234 = arith.truncf %210 : vector<2x128xf32> to vector<2x128xbf16>
    %c0_68 = arith.constant 0 : index
    %c0_69 = arith.constant 0 : index
    %235 = vector.load %arg2[%c0_68, %c0_69] : memref<128x512xbf16, #tpu.memory_space<vmem>>, vector<128x512xbf16>
    %cst_70 = arith.constant dense<0.000000e+00> : vector<2x512xf32>
    %236 = tpu.matmul %234, %235, %cst_70 {dimension_numbers = #tpu.dot_dimension_numbers<[1], [0], [0], [1], [0, 0, 1, 1], [], []>} : vector<2x128xbf16>, vector<128x512xbf16>, vector<2x512xf32> -> vector<2x512xf32>
    %237 = arith.addf %233, %236 : vector<2x512xf32>
    %238 = vector.extract_strided_slice %237 {offsets = [0, 0], sizes = [2, 384], strides = [1, 1]} : vector<2x512xf32> to vector<2x384xf32>
    %239 = arith.negf %238 : vector<2x384xf32>
    %240 = math.exp %239 : vector<2x384xf32>
    %cst_71 = arith.constant 1.000000e+00 : f32
    %241 = vector.broadcast %cst_71 : f32 to vector<2x384xf32>
    %242 = arith.addf %241, %240 : vector<2x384xf32>
    %243 = arith.divf %241, %242 : vector<2x384xf32>
    %244 = vector.extract_strided_slice %243 {offsets = [0, 0], sizes = [2, 128], strides = [1, 1]} : vector<2x384xf32> to vector<2x128xf32>
    %245 = vector.extract_strided_slice %243 {offsets = [0, 128], sizes = [2, 128], strides = [1, 1]} : vector<2x384xf32> to vector<2x128xf32>
    %246 = vector.extract_strided_slice %243 {offsets = [0, 256], sizes = [2, 128], strides = [1, 1]} : vector<2x384xf32> to vector<2x128xf32>
    %247 = vector.extract_strided_slice %237 {offsets = [0, 384], sizes = [2, 128], strides = [1, 1]} : vector<2x512xf32> to vector<2x128xf32>
    %248 = math.tanh %247 : vector<2x128xf32>
    %249 = arith.mulf %245, %208 : vector<2x128xf32>
    %250 = arith.mulf %244, %248 : vector<2x128xf32>
    %251 = arith.addf %249, %250 : vector<2x128xf32>
    %252 = math.tanh %251 : vector<2x128xf32>
    %253 = arith.mulf %246, %252 : vector<2x128xf32>
    %254 = tpu.concatenate %253, %231 in 1 : vector<2x128xf32>, vector<2x128xf32> -> vector<2x256xf32>
    %255 = arith.truncf %254 : vector<2x256xf32> to vector<2x256xbf16>
    %c0_72 = arith.constant 0 : index
    %c0_73 = arith.constant 0 : index
    %256 = vector.load %arg4[%c0_72, %c0_73] : memref<256x512xbf16, #tpu.memory_space<vmem>>, vector<256x512xbf16>
    %cst_74 = arith.constant dense<0.000000e+00> : vector<2x512xf32>
    %257 = tpu.matmul %255, %256, %cst_74 {dimension_numbers = #tpu.dot_dimension_numbers<[1], [0], [0], [1], [0, 0, 1, 1], [], []>} : vector<2x256xbf16>, vector<256x512xbf16>, vector<2x512xf32> -> vector<2x512xf32>
    %258 = arith.addf %257, %12 : vector<2x512xf32>
    %259 = vector.extract_strided_slice %258 {offsets = [0, 0], sizes = [2, 384], strides = [1, 1]} : vector<2x512xf32> to vector<2x384xf32>
    %260 = arith.negf %259 : vector<2x384xf32>
    %261 = math.exp %260 : vector<2x384xf32>
    %cst_75 = arith.constant 1.000000e+00 : f32
    %262 = vector.broadcast %cst_75 : f32 to vector<2x384xf32>
    %263 = arith.addf %262, %261 : vector<2x384xf32>
    %264 = arith.divf %262, %263 : vector<2x384xf32>
    %265 = vector.extract_strided_slice %264 {offsets = [0, 0], sizes = [2, 128], strides = [1, 1]} : vector<2x384xf32> to vector<2x128xf32>
    %266 = vector.extract_strided_slice %264 {offsets = [0, 128], sizes = [2, 128], strides = [1, 1]} : vector<2x384xf32> to vector<2x128xf32>
    %267 = vector.extract_strided_slice %264 {offsets = [0, 256], sizes = [2, 128], strides = [1, 1]} : vector<2x384xf32> to vector<2x128xf32>
    %268 = vector.extract_strided_slice %258 {offsets = [0, 384], sizes = [2, 128], strides = [1, 1]} : vector<2x512xf32> to vector<2x128xf32>
    %269 = math.tanh %268 : vector<2x128xf32>
    %270 = arith.mulf %266, %229 : vector<2x128xf32>
    %271 = arith.mulf %265, %269 : vector<2x128xf32>
    %272 = arith.addf %270, %271 : vector<2x128xf32>
    %273 = math.tanh %272 : vector<2x128xf32>
    %274 = arith.mulf %267, %273 : vector<2x128xf32>
    %c0_76 = arith.constant 0 : index
    %c6 = arith.constant 6 : index
    %c0_77 = arith.constant 0 : index
    %275 = vector.load %arg9[%c0_76, %c6, %c0_77] : memref<2x8x512xf32, #tpu.memory_space<vmem>>, vector<2x1x512xf32>
    %276 = vector.shape_cast %275 : vector<2x1x512xf32> to vector<2x512xf32>
    %277 = arith.truncf %253 : vector<2x128xf32> to vector<2x128xbf16>
    %c0_78 = arith.constant 0 : index
    %c0_79 = arith.constant 0 : index
    %278 = vector.load %arg2[%c0_78, %c0_79] : memref<128x512xbf16, #tpu.memory_space<vmem>>, vector<128x512xbf16>
    %cst_80 = arith.constant dense<0.000000e+00> : vector<2x512xf32>
    %279 = tpu.matmul %277, %278, %cst_80 {dimension_numbers = #tpu.dot_dimension_numbers<[1], [0], [0], [1], [0, 0, 1, 1], [], []>} : vector<2x128xbf16>, vector<128x512xbf16>, vector<2x512xf32> -> vector<2x512xf32>
    %280 = arith.addf %276, %279 : vector<2x512xf32>
    %281 = vector.extract_strided_slice %280 {offsets = [0, 0], sizes = [2, 384], strides = [1, 1]} : vector<2x512xf32> to vector<2x384xf32>
    %282 = arith.negf %281 : vector<2x384xf32>
    %283 = math.exp %282 : vector<2x384xf32>
    %cst_81 = arith.constant 1.000000e+00 : f32
    %284 = vector.broadcast %cst_81 : f32 to vector<2x384xf32>
    %285 = arith.addf %284, %283 : vector<2x384xf32>
    %286 = arith.divf %284, %285 : vector<2x384xf32>
    %287 = vector.extract_strided_slice %286 {offsets = [0, 0], sizes = [2, 128], strides = [1, 1]} : vector<2x384xf32> to vector<2x128xf32>
    %288 = vector.extract_strided_slice %286 {offsets = [0, 128], sizes = [2, 128], strides = [1, 1]} : vector<2x384xf32> to vector<2x128xf32>
    %289 = vector.extract_strided_slice %286 {offsets = [0, 256], sizes = [2, 128], strides = [1, 1]} : vector<2x384xf32> to vector<2x128xf32>
    %290 = vector.extract_strided_slice %280 {offsets = [0, 384], sizes = [2, 128], strides = [1, 1]} : vector<2x512xf32> to vector<2x128xf32>
    %291 = math.tanh %290 : vector<2x128xf32>
    %292 = arith.mulf %288, %251 : vector<2x128xf32>
    %293 = arith.mulf %287, %291 : vector<2x128xf32>
    %294 = arith.addf %292, %293 : vector<2x128xf32>
    %295 = math.tanh %294 : vector<2x128xf32>
    %296 = arith.mulf %289, %295 : vector<2x128xf32>
    %297 = tpu.concatenate %296, %274 in 1 : vector<2x128xf32>, vector<2x128xf32> -> vector<2x256xf32>
    %298 = arith.truncf %297 : vector<2x256xf32> to vector<2x256xbf16>
    %c0_82 = arith.constant 0 : index
    %c0_83 = arith.constant 0 : index
    %299 = vector.load %arg4[%c0_82, %c0_83] : memref<256x512xbf16, #tpu.memory_space<vmem>>, vector<256x512xbf16>
    %cst_84 = arith.constant dense<0.000000e+00> : vector<2x512xf32>
    %300 = tpu.matmul %298, %299, %cst_84 {dimension_numbers = #tpu.dot_dimension_numbers<[1], [0], [0], [1], [0, 0, 1, 1], [], []>} : vector<2x256xbf16>, vector<256x512xbf16>, vector<2x512xf32> -> vector<2x512xf32>
    %301 = arith.addf %300, %12 : vector<2x512xf32>
    %302 = vector.extract_strided_slice %301 {offsets = [0, 0], sizes = [2, 384], strides = [1, 1]} : vector<2x512xf32> to vector<2x384xf32>
    %303 = arith.negf %302 : vector<2x384xf32>
    %304 = math.exp %303 : vector<2x384xf32>
    %cst_85 = arith.constant 1.000000e+00 : f32
    %305 = vector.broadcast %cst_85 : f32 to vector<2x384xf32>
    %306 = arith.addf %305, %304 : vector<2x384xf32>
    %307 = arith.divf %305, %306 : vector<2x384xf32>
    %308 = vector.extract_strided_slice %307 {offsets = [0, 0], sizes = [2, 128], strides = [1, 1]} : vector<2x384xf32> to vector<2x128xf32>
    %309 = vector.extract_strided_slice %307 {offsets = [0, 128], sizes = [2, 128], strides = [1, 1]} : vector<2x384xf32> to vector<2x128xf32>
    %310 = vector.extract_strided_slice %307 {offsets = [0, 256], sizes = [2, 128], strides = [1, 1]} : vector<2x384xf32> to vector<2x128xf32>
    %311 = vector.extract_strided_slice %301 {offsets = [0, 384], sizes = [2, 128], strides = [1, 1]} : vector<2x512xf32> to vector<2x128xf32>
    %312 = math.tanh %311 : vector<2x128xf32>
    %313 = arith.mulf %309, %272 : vector<2x128xf32>
    %314 = arith.mulf %308, %312 : vector<2x128xf32>
    %315 = arith.addf %313, %314 : vector<2x128xf32>
    %316 = math.tanh %315 : vector<2x128xf32>
    %317 = arith.mulf %310, %316 : vector<2x128xf32>
    %c0_86 = arith.constant 0 : index
    %c7 = arith.constant 7 : index
    %c0_87 = arith.constant 0 : index
    %318 = vector.load %arg9[%c0_86, %c7, %c0_87] : memref<2x8x512xf32, #tpu.memory_space<vmem>>, vector<2x1x512xf32>
    %319 = vector.shape_cast %318 : vector<2x1x512xf32> to vector<2x512xf32>
    %320 = arith.truncf %296 : vector<2x128xf32> to vector<2x128xbf16>
    %c0_88 = arith.constant 0 : index
    %c0_89 = arith.constant 0 : index
    %321 = vector.load %arg2[%c0_88, %c0_89] : memref<128x512xbf16, #tpu.memory_space<vmem>>, vector<128x512xbf16>
    %cst_90 = arith.constant dense<0.000000e+00> : vector<2x512xf32>
    %322 = tpu.matmul %320, %321, %cst_90 {dimension_numbers = #tpu.dot_dimension_numbers<[1], [0], [0], [1], [0, 0, 1, 1], [], []>} : vector<2x128xbf16>, vector<128x512xbf16>, vector<2x512xf32> -> vector<2x512xf32>
    %323 = arith.addf %319, %322 : vector<2x512xf32>
    %324 = vector.extract_strided_slice %323 {offsets = [0, 0], sizes = [2, 384], strides = [1, 1]} : vector<2x512xf32> to vector<2x384xf32>
    %325 = arith.negf %324 : vector<2x384xf32>
    %326 = math.exp %325 : vector<2x384xf32>
    %cst_91 = arith.constant 1.000000e+00 : f32
    %327 = vector.broadcast %cst_91 : f32 to vector<2x384xf32>
    %328 = arith.addf %327, %326 : vector<2x384xf32>
    %329 = arith.divf %327, %328 : vector<2x384xf32>
    %330 = vector.extract_strided_slice %329 {offsets = [0, 0], sizes = [2, 128], strides = [1, 1]} : vector<2x384xf32> to vector<2x128xf32>
    %331 = vector.extract_strided_slice %329 {offsets = [0, 128], sizes = [2, 128], strides = [1, 1]} : vector<2x384xf32> to vector<2x128xf32>
    %332 = vector.extract_strided_slice %329 {offsets = [0, 256], sizes = [2, 128], strides = [1, 1]} : vector<2x384xf32> to vector<2x128xf32>
    %333 = vector.extract_strided_slice %323 {offsets = [0, 384], sizes = [2, 128], strides = [1, 1]} : vector<2x512xf32> to vector<2x128xf32>
    %334 = math.tanh %333 : vector<2x128xf32>
    %335 = arith.mulf %331, %294 : vector<2x128xf32>
    %336 = arith.mulf %330, %334 : vector<2x128xf32>
    %337 = arith.addf %335, %336 : vector<2x128xf32>
    %338 = math.tanh %337 : vector<2x128xf32>
    %339 = arith.mulf %332, %338 : vector<2x128xf32>
    %340 = tpu.concatenate %339, %317 in 1 : vector<2x128xf32>, vector<2x128xf32> -> vector<2x256xf32>
    %341 = arith.truncf %340 : vector<2x256xf32> to vector<2x256xbf16>
    %c0_92 = arith.constant 0 : index
    %c0_93 = arith.constant 0 : index
    %342 = vector.load %arg4[%c0_92, %c0_93] : memref<256x512xbf16, #tpu.memory_space<vmem>>, vector<256x512xbf16>
    %cst_94 = arith.constant dense<0.000000e+00> : vector<2x512xf32>
    %343 = tpu.matmul %341, %342, %cst_94 {dimension_numbers = #tpu.dot_dimension_numbers<[1], [0], [0], [1], [0, 0, 1, 1], [], []>} : vector<2x256xbf16>, vector<256x512xbf16>, vector<2x512xf32> -> vector<2x512xf32>
    %344 = arith.addf %343, %12 : vector<2x512xf32>
    %345 = vector.extract_strided_slice %344 {offsets = [0, 0], sizes = [2, 384], strides = [1, 1]} : vector<2x512xf32> to vector<2x384xf32>
    %346 = arith.negf %345 : vector<2x384xf32>
    %347 = math.exp %346 : vector<2x384xf32>
    %cst_95 = arith.constant 1.000000e+00 : f32
    %348 = vector.broadcast %cst_95 : f32 to vector<2x384xf32>
    %349 = arith.addf %348, %347 : vector<2x384xf32>
    %350 = arith.divf %348, %349 : vector<2x384xf32>
    %351 = vector.extract_strided_slice %350 {offsets = [0, 0], sizes = [2, 128], strides = [1, 1]} : vector<2x384xf32> to vector<2x128xf32>
    %352 = vector.extract_strided_slice %350 {offsets = [0, 128], sizes = [2, 128], strides = [1, 1]} : vector<2x384xf32> to vector<2x128xf32>
    %353 = vector.extract_strided_slice %350 {offsets = [0, 256], sizes = [2, 128], strides = [1, 1]} : vector<2x384xf32> to vector<2x128xf32>
    %354 = vector.extract_strided_slice %344 {offsets = [0, 384], sizes = [2, 128], strides = [1, 1]} : vector<2x512xf32> to vector<2x128xf32>
    %355 = math.tanh %354 : vector<2x128xf32>
    %356 = arith.mulf %352, %315 : vector<2x128xf32>
    %357 = arith.mulf %351, %355 : vector<2x128xf32>
    %358 = arith.addf %356, %357 : vector<2x128xf32>
    %359 = math.tanh %358 : vector<2x128xf32>
    %360 = arith.mulf %353, %359 : vector<2x128xf32>
    %c0_96 = arith.constant 0 : index
    %c0_97 = arith.constant 0 : index
    %361 = vector.load %arg6[%c0_96, %c0_97] : memref<1x128xf32, #tpu.memory_space<vmem>>, vector<1x128xf32>
    %362 = vector.shape_cast %361 : vector<1x128xf32> to vector<1x128xf32>
    %363 = vector.broadcast %362 : vector<1x128xf32> to vector<2x128xf32>
    %364 = arith.mulf %360, %363 : vector<2x128xf32>
    %cst_98 = arith.constant dense<0.000000e+00> : vector<2xf32>
    %365 = vector.multi_reduction <add>, %364, %cst_98 [1] : vector<2x128xf32> to vector<2xf32>
    %366 = vector.shape_cast %365 : vector<2xf32> to vector<2x1xf32>
    %c0_99 = arith.constant 0 : index
    %c0_100 = arith.constant 0 : index
    %367 = vector.load %arg7[%c0_99, %c0_100] : memref<1x1xf32, #tpu.memory_space<vmem>>, vector<1x1xf32>
    %368 = vector.broadcast %367 : vector<1x1xf32> to vector<2x1xf32>
    %369 = arith.addf %366, %368 : vector<2x1xf32>
    %c0_101 = arith.constant 0 : index
    %c0_102 = arith.constant 0 : index
    %370 = vector.load %arg8[%c0_101, %c0_102] : memref<2x1xf32, #tpu.memory_space<vmem>>, vector<2x1xf32>
    tpu.vector_store %arg8[%c0_101, %c0_102], %369 {strides = array<i32>} : memref<2x1xf32, #tpu.memory_space<vmem>>, vector<2x1xf32>,
    return
  }
}

</mosaic_0001>

<llo_original>
// kernel: lstm_forward.1
$region0: #{lstm_forward.1}
  #allocation0 [shape = 'u32[]', space=smem, size = 0x4, offset = 0x4, fixed_abs, tag = 'smem constant byte address 0x4 - core index']
  #allocation1 [shape = 'u32[144,128]{1,0:T(1,128)}', space=vmem, size = 0x12000, scoped, tag = 'internal scratch']
  #allocation2 [shape = 'f32[2,8,512]{2,1,0:T(8,128)}', space=vmem, size = 0x8000, scoped, tag = 'scratch operand']
  #allocation3 [shape = 'f32[1,1]{1,0:T(1,128)S(1)}', space=vmem, size = 0x200, scoped, tag = 'scoped memory for lstm_forward.1']
  %s0 = inlined_call_operand.hbm [shape: f32[2,8,16], index: 0, kind: input, shape index: {}]
  %s1 = inlined_call_operand.hbm [shape: bf16[16,512], index: 1, kind: input, shape index: {}]
  %s2 = inlined_call_operand.hbm [shape: bf16[128,512], index: 2, kind: input, shape index: {}]
  %s3 = inlined_call_operand.vmem [shape: f32[1,512], index: 3, kind: input, shape index: {}]
  %s4 = inlined_call_operand.hbm [shape: bf16[256,512], index: 4, kind: input, shape index: {}]
  %s5 = inlined_call_operand.vmem [shape: f32[1,512], index: 5, kind: input, shape index: {}]
  %s6 = inlined_call_operand.vmem [shape: f32[1,128], index: 6, kind: input, shape index: {}]
  %s7 = inlined_call_operand.<no memory space> [shape: f32[1,1], index: 7, kind: input, shape index: {}]
  %s8 = inlined_call_operand.vmem [shape: f32[2,1], index: 8, kind: output, shape index: {}]
  %s9 = sld [smem:[#allocation0]]
  $region58: #{lstm_forward.1} parent=0
    _
  %s11 = ssub.s32 1, %s9
  %s12 = scalar_select 0, %s11, %s9
  %v13 = vstv %s7
  %14 = vst [vmem:[#allocation3] sm:$0x1] %v13
  $region1: #{lstm_forward.1} parent=0
    #allocation4 [shape = 'u8[8192]{0}', space=vmem, size = 0x2000, scoped, tag = 'input window, operand 0, single buffered']
    #allocation5 [shape = 's32[1]{0}', space=sflag, size = 0x4, scoped, tag = 'scoped memory for lstm_forward.1']
    #allocation6 [shape = 'u8[16384]{0}', space=vmem, size = 0x4000, scoped, tag = 'input window, operand 1, single buffered']
    #allocation7 [shape = 's32[1]{0}', space=sflag, size = 0x4, scoped, tag = 'scoped memory for lstm_forward.1']
    #allocation8 [shape = 'u8[131072]{0}', space=vmem, size = 0x20000, scoped, tag = 'input window, operand 2, single buffered']
    #allocation9 [shape = 'u8[262144]{0}', space=vmem, size = 0x40000, scoped, tag = 'input window, operand 4, single buffered']
    #allocation10 [shape = 's32[1]{0}', space=sflag, size = 0x4, scoped, tag = 'scoped memory for lstm_forward.1']
    %15 = vsyncpa [#allocation5], 0
    %16 = vsyncpa [#allocation7], 0
    %17 = vsyncpa [#allocation10], 0
    // Predicated region
    $region2: #{lstm_forward.1} parent=1 // pred_check
      _
    $region3: #{lstm_forward.1} parent=1 // pred_check_branch
      %19 = sbr.rel (0) target = $region5
    $region4: #{lstm_forward.1} parent=1 // pred_region
      %s21 = ssub.s32 256, 256
      %22 = vsyncadd [#allocation5], %s21
      %s23 = sshll.u32 [#allocation4], 4
      %s24 = int_to_ptr.vmem [resolvable:$true] %s23
      %29 = dma.hbm_to_vmem [thread:$0]  %s0, 256, %s24, [#allocation5], 128, 128, 8
    $region5: #{lstm_forward.1} parent=1 // pred_fallthru
      _
    // Predicated region
    $region6: #{lstm_forward.1} parent=1 // pred_check
      _
    $region7: #{lstm_forward.1} parent=1 // pred_check_branch
      %31 = sbr.rel (0) target = $region9
    $region8: #{lstm_forward.1} parent=1 // pred_region
      %s33 = ssub.s32 512, 512
      %34 = vsyncadd [#allocation7], %s33
      %s35 = sshll.u32 [#allocation6], 4
      %s36 = int_to_ptr.vmem [resolvable:$true] %s35
      %41 = dma.hbm_to_vmem [thread:$0]  %s1, 512, %s36, [#allocation7], 256, 256, 16
    $region9: #{lstm_forward.1} parent=1 // pred_fallthru
      _
    // Predicated region
    $region10: #{lstm_forward.1} parent=1 // pred_check
      _
    $region11: #{lstm_forward.1} parent=1 // pred_check_branch
      %43 = sbr.rel (0) target = $region13
    $region12: #{lstm_forward.1} parent=1 // pred_region
      %s45 = ssub.s32 4096, 4096
      %46 = vsyncadd [#allocation7], %s45
      %s47 = sshll.u32 [#allocation8], 4
      %s48 = int_to_ptr.vmem [resolvable:$true] %s47
      %53 = dma.hbm_to_vmem [thread:$0]  %s2, 4096, %s48, [#allocation7], 256, 256, 16
    $region13: #{lstm_forward.1} parent=1 // pred_fallthru
      _
    // Predicated region
    $region14: #{lstm_forward.1} parent=1 // pred_check
      _
    $region15: #{lstm_forward.1} parent=1 // pred_check_branch
      %55 = sbr.rel (0) target = $region17
    $region16: #{lstm_forward.1} parent=1 // pred_region
      _
    $region17: #{lstm_forward.1} parent=1 // pred_fallthru
      _
    // Predicated region
    $region18: #{lstm_forward.1} parent=1 // pred_check
      _
    $region19: #{lstm_forward.1} parent=1 // pred_check_branch
      %57 = sbr.rel (0) target = $region21
    $region20: #{lstm_forward.1} parent=1 // pred_region
      %s59 = ssub.s32 8192, 8192
      %60 = vsyncadd [#allocation10], %s59
      %s61 = sshll.u32 [#allocation9], 4
      %s62 = int_to_ptr.vmem [resolvable:$true] %s61
      %67 = dma.hbm_to_vmem [thread:$0]  %s4, 8192, %s62, [#allocation10], 256, 256, 16
    $region21: #{lstm_forward.1} parent=1 // pred_fallthru
      _
    // Predicated region
    $region22: #{lstm_forward.1} parent=1 // pred_check
      _
    $region23: #{lstm_forward.1} parent=1 // pred_check_branch
      %69 = sbr.rel (0) target = $region25
    $region24: #{lstm_forward.1} parent=1 // pred_region
      _
    $region25: #{lstm_forward.1} parent=1 // pred_fallthru
      _
    // Predicated region
    $region26: #{lstm_forward.1} parent=1 // pred_check
      _
    $region27: #{lstm_forward.1} parent=1 // pred_check_branch
      %71 = sbr.rel (0) target = $region29
    $region28: #{lstm_forward.1} parent=1 // pred_region
      _
    $region29: #{lstm_forward.1} parent=1 // pred_fallthru
      _
    // Predicated region
    $region30: #{lstm_forward.1} parent=1 // pred_check
      _
    $region31: #{lstm_forward.1} parent=1 // pred_check_branch
      %73 = sbr.rel (0) target = $region33
    $region32: #{lstm_forward.1} parent=1 // pred_region
      _
    $region33: #{lstm_forward.1} parent=1 // pred_fallthru
      _
    // Predicated region
    $region34: #{lstm_forward.1} parent=1 // pred_check
      _
    $region35: #{lstm_forward.1} parent=1 // pred_check_branch
      %75 = sbr.rel (0) target = $region37
    $region36: #{lstm_forward.1} parent=1 // pred_region
      %76 = dma.done [#allocation5], 256
    $region37: #{lstm_forward.1} parent=1 // pred_fallthru
      _
    // Predicated region
    $region38: #{lstm_forward.1} parent=1 // pred_check
      _
    $region39: #{lstm_forward.1} parent=1 // pred_check_branch
      %78 = sbr.rel (0) target = $region41
    $region40: #{lstm_forward.1} parent=1 // pred_region
      %79 = dma.done [#allocation7], 512
    $region41: #{lstm_forward.1} parent=1 // pred_fallthru
      _
    // Predicated region
    $region42: #{lstm_forward.1} parent=1 // pred_check
      _
    $region43: #{lstm_forward.1} parent=1 // pred_check_branch
      %81 = sbr.rel (0) target = $region45
    $region44: #{lstm_forward.1} parent=1 // pred_region
      %82 = dma.done [#allocation7], 4096
    $region45: #{lstm_forward.1} parent=1 // pred_fallthru
      _
    // Predicated region
    $region46: #{lstm_forward.1} parent=1 // pred_check
      _
    $region47: #{lstm_forward.1} parent=1 // pred_check_branch
      %84 = sbr.rel (0) target = $region49
    $region48: #{lstm_forward.1} parent=1 // pred_region
      %85 = dma.done [#allocation10], 8192
    $region49: #{lstm_forward.1} parent=1 // pred_fallthru
      _
    %v87 = vld [vmem:[#allocation4] sm:$0xff]
    %v88 = vld [vmem:[#allocation4 + $0x8] sm:$0xff]
    %v89 = vpack.c.bf16 %v88, %v87
    %v90 = vld [vmem:[#allocation6] sm:$0xff]
    %v91 = vld [vmem:[#allocation6 + $0x8] sm:$0xff]
    %v92 = vld [vmem:[#allocation6 + $0x10] sm:$0xff]
    %v93 = vld [vmem:[#allocation6 + $0x18] sm:$0xff]
    %v94 = vld [vmem:[%s3] sm:$0xf]
    %v96 = vlaneseq
    %v97 = vshrl.u32 %v96, 7
    %v98 = vsub.s32 0, %v97
    %v99 = vrot.slane %v94, %v98
    %v100 = vlaneseq
    %v101 = vshrl.u32 %v100, 7
    %v102 = vsub.s32 1, %v101
    %v103 = vrot.slane %v94, %v102
    %v104 = vlaneseq
    %v105 = vshrl.u32 %v104, 7
    %v106 = vsub.s32 2, %v105
    %v107 = vrot.slane %v94, %v106
    %v108 = vlaneseq
    %v109 = vshrl.u32 %v108, 7
    %v110 = vsub.s32 3, %v109
    %v111 = vrot.slane %v94, %v110
    %v120 = vunpack.c.l.b16 %v90
    %v121 = vunpack.c.h.b16 %v90
    %v122 = vunpack.c.l.b16 %v91
    %v123 = vunpack.c.h.b16 %v91
    %v124 = vunpack.c.l.b16 %v92
    %v125 = vunpack.c.h.b16 %v92
    %v126 = vunpack.c.l.b16 %v93
    %v127 = vunpack.c.h.b16 %v93
    %v128 = vpack.c.b16 %v124, %v120
    %v129 = vpack.c.b16 %v125, %v121
    %v130 = vpack.c.b16 %v126, %v122
    %v131 = vpack.c.b16 %v127, %v123
    %vm136 = vcmask 130048
    %v138 = vsel %vm136, %v89, 0
    %140 = vmatprep.subr.bf16.mxu0 %v129
    %141 = vmatpush1.bf16.msra.mxu0 %v128
    %142 = vmatprep.subr.bf16.mxu0 0
    %143 = vmatpush1.bf16.msra.mxu0 0
    %144 = vmatprep.subr.bf16.mxu0 0
    %145 = vmatpush1.bf16.msra.mxu0 0
    %146 = vmatprep.subr.bf16.mxu0 0
    %147 = vmatpush1.bf16.msra.mxu0 0
    %148 = vmatprep.subr.bf16.mxu0 0
    %149 = vmatpush1.bf16.msra.mxu0 0
    %150 = vmatprep.subr.bf16.mxu0 0
    %151 = vmatpush1.bf16.msra.mxu0 0
    %152 = vmatprep.subr.bf16.mxu0 0
    %153 = vmatpush1.bf16.msra.mxu0 0
    %154 = vmatprep.subr.bf16.mxu0 0
    %155 = vmatpush1.bf16.msra.mxu0 0
    %156 = vmatprep.subr.bf16.mxu0 0
    %157 = vmatpush1.bf16.msra.mxu0 0
    %158 = vmatprep.subr.bf16.mxu0 0
    %159 = vmatpush1.bf16.msra.mxu0 0
    %160 = vmatprep.subr.bf16.mxu0 0
    %161 = vmatpush1.bf16.msra.mxu0 0
    %162 = vmatprep.subr.bf16.mxu0 0
    %163 = vmatpush1.bf16.msra.mxu0 0
    %164 = vmatprep.subr.bf16.mxu0 0
    %165 = vmatpush1.bf16.msra.mxu0 0
    %166 = vmatprep.subr.bf16.mxu0 0
    %167 = vmatpush1.bf16.msra.mxu0 0
    %168 = vmatprep.subr.bf16.mxu0 0
    %169 = vmatpush1.bf16.msra.mxu0 0
    %170 = vmatprep.subr.bf16.mxu0 0
    %171 = vmatpush1.bf16.msra.mxu0 0
    %172 = vmatprep.mubr.bf16.mxu0 0
    %173 = vmatmul.mubr.bf16.gmra.mrb[0].mxu0 %v138
    %v174 = vpop.f32.mrb[0].mxu0
    %v175 = vadd.f32 %v99, %v174
    %v176 = vpop.f32.mrb[0].mxu0
    %v177 = vadd.f32 %v103, %v176
    %v178 = vpop.f32.mrb[0].mxu0
    %v179 = vadd.f32 %v99, %v178
    %v180 = vpop.f32.mrb[0].mxu0
    %v181 = vadd.f32 %v103, %v180
    %182 = vdwg.mxu0
    %183 = vmatprep.subr.bf16.mxu0 %v131
    %184 = vmatpush1.bf16.msra.mxu0 %v130
    %185 = vmatprep.subr.bf16.mxu0 0
    %186 = vmatpush1.bf16.msra.mxu0 0
    %187 = vmatprep.subr.bf16.mxu0 0
    %188 = vmatpush1.bf16.msra.mxu0 0
    %189 = vmatprep.subr.bf16.mxu0 0
    %190 = vmatpush1.bf16.msra.mxu0 0
    %191 = vmatprep.subr.bf16.mxu0 0
    %192 = vmatpush1.bf16.msra.mxu0 0
    %193 = vmatprep.subr.bf16.mxu0 0
    %194 = vmatpush1.bf16.msra.mxu0 0
    %195 = vmatprep.subr.bf16.mxu0 0
    %196 = vmatpush1.bf16.msra.mxu0 0
    %197 = vmatprep.subr.bf16.mxu0 0
    %198 = vmatpush1.bf16.msra.mxu0 0
    %199 = vmatprep.subr.bf16.mxu0 0
    %200 = vmatpush1.bf16.msra.mxu0 0
    %201 = vmatprep.subr.bf16.mxu0 0
    %202 = vmatpush1.bf16.msra.mxu0 0
    %203 = vmatprep.subr.bf16.mxu0 0
    %204 = vmatpush1.bf16.msra.mxu0 0
    %205 = vmatprep.subr.bf16.mxu0 0
    %206 = vmatpush1.bf16.msra.mxu0 0
    %207 = vmatprep.subr.bf16.mxu0 0
    %208 = vmatpush1.bf16.msra.mxu0 0
    %209 = vmatprep.subr.bf16.mxu0 0
    %210 = vmatpush1.bf16.msra.mxu0 0
    %211 = vmatprep.subr.bf16.mxu0 0
    %212 = vmatpush1.bf16.msra.mxu0 0
    %213 = vmatprep.subr.bf16.mxu0 0
    %214 = vmatpush1.bf16.msra.mxu0 0
    %215 = vmatprep.mubr.bf16.mxu0 0
    %216 = vmatmul.mubr.bf16.gmra.mrb[0].mxu0 %v138
    %v217 = vpop.f32.mrb[0].mxu0
    %v218 = vadd.f32 %v107, %v217
    %v219 = vpop.f32.mrb[0].mxu0
    %v220 = vadd.f32 %v111, %v219
    %v221 = vpop.f32.mrb[0].mxu0
    %v222 = vadd.f32 %v107, %v221
    %v223 = vpop.f32.mrb[0].mxu0
    %v224 = vadd.f32 %v111, %v223
    %225 = vdwg.mxu0
    %226 = vst [vmem:[#allocation2] sm:$0xff] %v175
    %227 = vst [vmem:[#allocation2 + $0x8] sm:$0xff] %v177
    %228 = vst [vmem:[#allocation2 + $0x10] sm:$0xff] %v218
    %229 = vst [vmem:[#allocation2 + $0x18] sm:$0xff] %v220
    %230 = vst [vmem:[#allocation2 + $0x20] sm:$0xff] %v179
    %231 = vst [vmem:[#allocation2 + $0x28] sm:$0xff] %v181
    %232 = vst [vmem:[#allocation2 + $0x30] sm:$0xff] %v222
    %233 = vst [vmem:[#allocation2 + $0x38] sm:$0xff] %v224
    %v234 = vld [vmem:[%s5] sm:$0xf]
    %v236 = vlaneseq
    %v237 = vshrl.u32 %v236, 7
    %v238 = vsub.s32 0, %v237
    %v239 = vrot.slane %v234, %v238
    %v240 = vlaneseq
    %v241 = vshrl.u32 %v240, 7
    %v242 = vsub.s32 1, %v241
    %v243 = vrot.slane %v234, %v242
    %v244 = vlaneseq
    %v245 = vshrl.u32 %v244, 7
    %v246 = vsub.s32 2, %v245
    %v247 = vrot.slane %v234, %v246
    %v248 = vlaneseq
    %v249 = vshrl.u32 %v248, 7
    %v250 = vsub.s32 3, %v249
    %v251 = vrot.slane %v234, %v250
    %v256 = vld [vmem:[#allocation2] ss:$8 sm:$0xf]
    %s257 = scalar_lea.vmem [#allocation2], 32
    %v258 = vld [vmem:[%s257] ss:$8 sm:$0xf]
    %v259 = vld [vmem:[#allocation8] sm:$0xff]
    %v260 = vld [vmem:[#allocation8 + $0x8] sm:$0xff]
    %v261 = vld [vmem:[#allocation8 + $0x10] sm:$0xff]
    %v262 = vld [vmem:[#allocation8 + $0x18] sm:$0xff]
    %v263 = vld [vmem:[#allocation8 + $0x20] sm:$0xff]
    %v264 = vld [vmem:[#allocation8 + $0x28] sm:$0xff]
    %v265 = vld [vmem:[#allocation8 + $0x30] sm:$0xff]
    %v266 = vld [vmem:[#allocation8 + $0x38] sm:$0xff]
    %v267 = vld [vmem:[#allocation8 + $0x40] sm:$0xff]
    %v268 = vld [vmem:[#allocation8 + $0x48] sm:$0xff]
    %v269 = vld [vmem:[#allocation8 + $0x50] sm:$0xff]
    %v270 = vld [vmem:[#allocation8 + $0x58] sm:$0xff]
    %v271 = vld [vmem:[#allocation8 + $0x60] sm:$0xff]
    %v272 = vld [vmem:[#allocation8 + $0x68] sm:$0xff]
    %v273 = vld [vmem:[#allocation8 + $0x70] sm:$0xff]
    %v274 = vld [vmem:[#allocation8 + $0x78] sm:$0xff]
    %v275 = vld [vmem:[#allocation8 + $0x80] sm:$0xff]
    %v276 = vld [vmem:[#allocation8 + $0x88] sm:$0xff]
    %v277 = vld [vmem:[#allocation8 + $0x90] sm:$0xff]
    %v278 = vld [vmem:[#allocation8 + $0x98] sm:$0xff]
    %v279 = vld [vmem:[#allocation8 + $0xa0] sm:$0xff]
    %v280 = vld [vmem:[#allocation8 + $0xa8] sm:$0xff]
    %v281 = vld [vmem:[#allocation8 + $0xb0] sm:$0xff]
    %v282 = vld [vmem:[#allocation8 + $0xb8] sm:$0xff]
    %v283 = vld [vmem:[#allocation8 + $0xc0] sm:$0xff]
    %v284 = vld [vmem:[#allocation8 + $0xc8] sm:$0xff]
    %v285 = vld [vmem:[#allocation8 + $0xd0] sm:$0xff]
    %v286 = vld [vmem:[#allocation8 + $0xd8] sm:$0xff]
    %v287 = vld [vmem:[#allocation8 + $0xe0] sm:$0xff]
    %v288 = vld [vmem:[#allocation8 + $0xe8] sm:$0xff]
    %v289 = vld [vmem:[#allocation8 + $0xf0] sm:$0xff]
    %v290 = vld [vmem:[#allocation8 + $0xf8] sm:$0xff]
    %v323 = vunpack.c.l.b16 %v259
    %v324 = vunpack.c.h.b16 %v259
    %v325 = vunpack.c.l.b16 %v260
    %v326 = vunpack.c.h.b16 %v260
    %v327 = vunpack.c.l.b16 %v261
    %v328 = vunpack.c.h.b16 %v261
    %v329 = vunpack.c.l.b16 %v262
    %v330 = vunpack.c.h.b16 %v262
    %v331 = vunpack.c.l.b16 %v263
    %v332 = vunpack.c.h.b16 %v263
    %v333 = vunpack.c.l.b16 %v264
    %v334 = vunpack.c.h.b16 %v264
    %v335 = vunpack.c.l.b16 %v265
    %v336 = vunpack.c.h.b16 %v265
    %v337 = vunpack.c.l.b16 %v266
    %v338 = vunpack.c.h.b16 %v266
    %v339 = vunpack.c.l.b16 %v267
    %v340 = vunpack.c.h.b16 %v267
    %v341 = vunpack.c.l.b16 %v268
    %v342 = vunpack.c.h.b16 %v268
    %v343 = vunpack.c.l.b16 %v269
    %v344 = vunpack.c.h.b16 %v269
    %v345 = vunpack.c.l.b16 %v270
    %v346 = vunpack.c.h.b16 %v270
    %v347 = vunpack.c.l.b16 %v271
    %v348 = vunpack.c.h.b16 %v271
    %v349 = vunpack.c.l.b16 %v272
    %v350 = vunpack.c.h.b16 %v272
    %v351 = vunpack.c.l.b16 %v273
    %v352 = vunpack.c.h.b16 %v273
    %v353 = vunpack.c.l.b16 %v274
    %v354 = vunpack.c.h.b16 %v274
    %v355 = vunpack.c.l.b16 %v275
    %v356 = vunpack.c.h.b16 %v275
    %v357 = vunpack.c.l.b16 %v276
    %v358 = vunpack.c.h.b16 %v276
    %v359 = vunpack.c.l.b16 %v277
    %v360 = vunpack.c.h.b16 %v277
    %v361 = vunpack.c.l.b16 %v278
    %v362 = vunpack.c.h.b16 %v278
    %v363 = vunpack.c.l.b16 %v279
    %v364 = vunpack.c.h.b16 %v279
    %v365 = vunpack.c.l.b16 %v280
    %v366 = vunpack.c.h.b16 %v280
    %v367 = vunpack.c.l.b16 %v281
    %v368 = vunpack.c.h.b16 %v281
    %v369 = vunpack.c.l.b16 %v282
    %v370 = vunpack.c.h.b16 %v282
    %v371 = vunpack.c.l.b16 %v283
    %v372 = vunpack.c.h.b16 %v283
    %v373 = vunpack.c.l.b16 %v284
    %v374 = vunpack.c.h.b16 %v284
    %v375 = vunpack.c.l.b16 %v285
    %v376 = vunpack.c.h.b16 %v285
    %v377 = vunpack.c.l.b16 %v286
    %v378 = vunpack.c.h.b16 %v286
    %v379 = vunpack.c.l.b16 %v287
    %v380 = vunpack.c.h.b16 %v287
    %v381 = vunpack.c.l.b16 %v288
    %v382 = vunpack.c.h.b16 %v288
    %v383 = vunpack.c.l.b16 %v289
    %v384 = vunpack.c.h.b16 %v289
    %v385 = vunpack.c.l.b16 %v290
    %v386 = vunpack.c.h.b16 %v290
    %v387 = vpack.c.b16 %v327, %v323
    %v388 = vpack.c.b16 %v328, %v324
    %v389 = vpack.c.b16 %v329, %v325
    %v390 = vpack.c.b16 %v330, %v326
    %v391 = vpack.c.b16 %v335, %v331
    %v392 = vpack.c.b16 %v336, %v332
    %v393 = vpack.c.b16 %v337, %v333
    %v394 = vpack.c.b16 %v338, %v334
    %v395 = vpack.c.b16 %v343, %v339
    %v396 = vpack.c.b16 %v344, %v340
    %v397 = vpack.c.b16 %v345, %v341
    %v398 = vpack.c.b16 %v346, %v342
    %v399 = vpack.c.b16 %v351, %v347
    %v400 = vpack.c.b16 %v352, %v348
    %v401 = vpack.c.b16 %v353, %v349
    %v402 = vpack.c.b16 %v354, %v350
    %v403 = vpack.c.b16 %v359, %v355
    %v404 = vpack.c.b16 %v360, %v356
    %v405 = vpack.c.b16 %v361, %v357
    %v406 = vpack.c.b16 %v362, %v358
    %v407 = vpack.c.b16 %v367, %v363
    %v408 = vpack.c.b16 %v368, %v364
    %v409 = vpack.c.b16 %v369, %v365
    %v410 = vpack.c.b16 %v370, %v366
    %v411 = vpack.c.b16 %v375, %v371
    %v412 = vpack.c.b16 %v376, %v372
    %v413 = vpack.c.b16 %v377, %v373
    %v414 = vpack.c.b16 %v378, %v374
    %v415 = vpack.c.b16 %v383, %v379
    %v416 = vpack.c.b16 %v384, %v380
    %v417 = vpack.c.b16 %v385, %v381
    %v418 = vpack.c.b16 %v386, %v382
    %451 = vmatprep.subr.bf16.mxu0 %v388
    %452 = vmatpush1.bf16.msra.mxu0 %v387
    %453 = vmatprep.subr.bf16.mxu0 %v392
    %454 = vmatpush1.bf16.msra.mxu0 %v391
    %455 = vmatprep.subr.bf16.mxu0 %v396
    %456 = vmatpush1.bf16.msra.mxu0 %v395
    %457 = vmatprep.subr.bf16.mxu0 %v400
    %458 = vmatpush1.bf16.msra.mxu0 %v399
    %459 = vmatprep.subr.bf16.mxu0 %v404
    %460 = vmatpush1.bf16.msra.mxu0 %v403
    %461 = vmatprep.subr.bf16.mxu0 %v408
    %462 = vmatpush1.bf16.msra.mxu0 %v407
    %463 = vmatprep.subr.bf16.mxu0 %v412
    %464 = vmatpush1.bf16.msra.mxu0 %v411
    %465 = vmatprep.subr.bf16.mxu0 %v416
    %466 = vmatpush1.bf16.msra.mxu0 %v415
    %467 = vmatprep.subr.bf16.mxu0 0
    %468 = vmatpush1.bf16.msra.mxu0 0
    %469 = vmatprep.subr.bf16.mxu0 0
    %470 = vmatpush1.bf16.msra.mxu0 0
    %471 = vmatprep.subr.bf16.mxu0 0
    %472 = vmatpush1.bf16.msra.mxu0 0
    %473 = vmatprep.subr.bf16.mxu0 0
    %474 = vmatpush1.bf16.msra.mxu0 0
    %475 = vmatprep.subr.bf16.mxu0 0
    %476 = vmatpush1.bf16.msra.mxu0 0
    %477 = vmatprep.subr.bf16.mxu0 0
    %478 = vmatpush1.bf16.msra.mxu0 0
    %479 = vmatprep.subr.bf16.mxu0 0
    %480 = vmatpush1.bf16.msra.mxu0 0
    %481 = vmatprep.subr.bf16.mxu0 0
    %482 = vmatpush1.bf16.msra.mxu0 0
    %483 = vmatprep.mubr.bf16.mxu0 0
    %484 = vmatmul.mubr.bf16.gmra.mrb[0].mxu0 0
    %v485 = vpop.f32.mrb[0].mxu0
    %v486 = vadd.f32 0.0, %v485
    %v487 = vpop.f32.mrb[0].mxu0
    %v488 = vadd.f32 0.0, %v487
    %v489 = vpop.f32.mrb[0].mxu0
    %v490 = vpop.f32.mrb[0].mxu0
    %491 = vdwg.mxu0
    %492 = vmatprep.subr.bf16.mxu0 %v390
    %493 = vmatpush1.bf16.msra.mxu0 %v389
    %494 = vmatprep.subr.bf16.mxu0 %v394
    %495 = vmatpush1.bf16.msra.mxu0 %v393
    %496 = vmatprep.subr.bf16.mxu0 %v398
    %497 = vmatpush1.bf16.msra.mxu0 %v397
    %498 = vmatprep.subr.bf16.mxu0 %v402
    %499 = vmatpush1.bf16.msra.mxu0 %v401
    %500 = vmatprep.subr.bf16.mxu0 %v406
    %501 = vmatpush1.bf16.msra.mxu0 %v405
    %502 = vmatprep.subr.bf16.mxu0 %v410
    %503 = vmatpush1.bf16.msra.mxu0 %v409
    %504 = vmatprep.subr.bf16.mxu0 %v414
    %505 = vmatpush1.bf16.msra.mxu0 %v413
    %506 = vmatprep.subr.bf16.mxu0 %v418
    %507 = vmatpush1.bf16.msra.mxu0 %v417
    %508 = vmatprep.subr.bf16.mxu0 0
    %509 = vmatpush1.bf16.msra.mxu0 0
    %510 = vmatprep.subr.bf16.mxu0 0
    %511 = vmatpush1.bf16.msra.mxu0 0
    %512 = vmatprep.subr.bf16.mxu0 0
    %513 = vmatpush1.bf16.msra.mxu0 0
    %514 = vmatprep.subr.bf16.mxu0 0
    %515 = vmatpush1.bf16.msra.mxu0 0
    %516 = vmatprep.subr.bf16.mxu0 0
    %517 = vmatpush1.bf16.msra.mxu0 0
    %518 = vmatprep.subr.bf16.mxu0 0
    %519 = vmatpush1.bf16.msra.mxu0 0
    %520 = vmatprep.subr.bf16.mxu0 0
    %521 = vmatpush1.bf16.msra.mxu0 0
    %522 = vmatprep.subr.bf16.mxu0 0
    %523 = vmatpush1.bf16.msra.mxu0 0
    %524 = vmatprep.mubr.bf16.mxu0 0
    %525 = vmatmul.mubr.bf16.gmra.mrb[0].mxu0 0
    %v526 = vpop.f32.mrb[0].mxu0
    %v527 = vadd.f32 0.0, %v526
    %v528 = vpop.f32.mrb[0].mxu0
    %v529 = vadd.f32 0.0, %v528
    %v530 = vpop.f32.mrb[0].mxu0
    %v531 = vpop.f32.mrb[0].mxu0
    %532 = vdwg.mxu0
    %v537 = vcombine.low %v486, %v488
    %v538 = vcombine.low %v527, %v529
    %v540 = vunpack.c.l.s4 1966171168
    %v541 = vunpack.c.0.s8 %v540
    %v542 = vlaneseq
    %v543 = vshrl.u32 %v542, 7
    %v544 = vsub.s32 %v541, %v543
    %v545 = vrot.slane %v537, %v544
    %v547 = vunpack.c.l.s4 1966171168
    %v548 = vunpack.c.0.s8 %v547
    %v549 = vlaneseq
    %v550 = vshrl.u32 %v549, 7
    %v551 = vsub.s32 %v548, %v550
    %v552 = vrot.slane %v538, %v551
    %v553 = vcombine.low %v545, %v552
    %v554 = vcombine.high %v545, %v552
    %v556 = vunpack.c.l.s4 1966171168
    %v557 = vunpack.c.0.s8 %v556
    %v558 = vlaneseq
    %v559 = vshrl.u32 %v558, 7
    %v560 = vsub.s32 %v557, %v559
    %v561 = vrot.slane %v553, %v560
    %v563 = vunpack.c.l.s4 1966171168
    %v564 = vunpack.c.0.s8 %v563
    %v565 = vlaneseq
    %v566 = vshrl.u32 %v565, 7
    %v567 = vsub.s32 %v564, %v566
    %v568 = vrot.slane %v554, %v567
    %v571 = vadd.f32 %v256, %v561
    %v572 = vadd.f32 %v258, %v568
    %v573 = vxor.u32 %v571, 2147483648
    %v574 = vxor.u32 %v572, 2147483648
    %v575 = vmul.f32 %v573, 1.442695
    %v576 = vpow.pop %v575
    %v577 = vmul.f32 %v574, 1.442695
    %v578 = vpow.pop %v577
    %v579 = vadd.f32 %v576, 1.0
    %v580 = vadd.f32 %v578, 1.0
    %v581 = vrcp.pop %v579
    %v582 = vmul.f32 1.0, %v581
    %v583 = vrcp.pop %v580
    %v584 = vmul.f32 1.0, %v583
    %v587 = vrot.slane %v571, 3
    %v588 = vrot.slane %v572, 3
    %v591 = vtanh.pop %v587
    %v592 = vtanh.pop %v588
    %v595 = vrot.slane %v582, 1
    %v596 = vrot.slane %v584, 1
    %v599 = vmul.f32 %v595, 0.0
    %v600 = vmul.f32 %v596, 0.0
    %v601 = vmul.f32 %v582, %v591
    %v602 = vmul.f32 %v584, %v592
    %v603 = vadd.f32 %v599, %v601
    %v604 = vadd.f32 %v600, %v602
    %v605 = vtanh.pop %v603
    %v606 = vtanh.pop %v604
    %v607 = vrot.slane %v582, 2
    %v608 = vrot.slane %v584, 2
    %v611 = vmul.f32 %v607, %v605
    %v612 = vmul.f32 %v608, %v606
    %v615 = vcombine.low %v611, %v612
    %v617 = vunpack.c.l.s4 1966171168
    %v618 = vunpack.c.0.s8 %v617
    %v619 = vlaneseq
    %v620 = vshrl.u32 %v619, 7
    %v621 = vsub.s32 %v618, %v620
    %v622 = vrot.slane %v615, %v621
    %v624 = vunpack.c.l.s4 1966171168
    %v625 = vunpack.c.0.s8 %v624
    %v626 = vlaneseq
    %v627 = vshrl.u32 %v626, 7
    %v628 = vsub.s32 %v625, %v627
    %v629 = vrot.slane %v622, %v628
    %v631 = vpack.c.bf16 %v629, %v629
    %v632 = vpack.c.bf16 0.0, 0.0
    %v633 = vld [vmem:[#allocation9] sm:$0xff]
    %v634 = vld [vmem:[#allocation9 + $0x8] sm:$0xff]
    %v635 = vld [vmem:[#allocation9 + $0x10] sm:$0xff]
    %v636 = vld [vmem:[#allocation9 + $0x18] sm:$0xff]
    %v637 = vld [vmem:[#allocation9 + $0x20] sm:$0xff]
    %v638 = vld [vmem:[#allocation9 + $0x28] sm:$0xff]
    %v639 = vld [vmem:[#allocation9 + $0x30] sm:$0xff]
    %v640 = vld [vmem:[#allocation9 + $0x38] sm:$0xff]
    %v641 = vld [vmem:[#allocation9 + $0x40] sm:$0xff]
    %v642 = vld [vmem:[#allocation9 + $0x48] sm:$0xff]
    %v643 = vld [vmem:[#allocation9 + $0x50] sm:$0xff]
    %v644 = vld [vmem:[#allocation9 + $0x58] sm:$0xff]
    %v645 = vld [vmem:[#allocation9 + $0x60] sm:$0xff]
    %v646 = vld [vmem:[#allocation9 + $0x68] sm:$0xff]
    %v647 = vld [vmem:[#allocation9 + $0x70] sm:$0xff]
    %v648 = vld [vmem:[#allocation9 + $0x78] sm:$0xff]
    %v649 = vld [vmem:[#allocation9 + $0x80] sm:$0xff]
    %v650 = vld [vmem:[#allocation9 + $0x88] sm:$0xff]
    %v651 = vld [vmem:[#allocation9 + $0x90] sm:$0xff]
    %v652 = vld [vmem:[#allocation9 + $0x98] sm:$0xff]
    %v653 = vld [vmem:[#allocation9 + $0xa0] sm:$0xff]
    %v654 = vld [vmem:[#allocation9 + $0xa8] sm:$0xff]
    %v655 = vld [vmem:[#allocation9 + $0xb0] sm:$0xff]
    %v656 = vld [vmem:[#allocation9 + $0xb8] sm:$0xff]
    %v657 = vld [vmem:[#allocation9 + $0xc0] sm:$0xff]
    %v658 = vld [vmem:[#allocation9 + $0xc8] sm:$0xff]
    %v659 = vld [vmem:[#allocation9 + $0xd0] sm:$0xff]
    %v660 = vld [vmem:[#allocation9 + $0xd8] sm:$0xff]
    %v661 = vld [vmem:[#allocation9 + $0xe0] sm:$0xff]
    %v662 = vld [vmem:[#allocation9 + $0xe8] sm:$0xff]
    %v663 = vld [vmem:[#allocation9 + $0xf0] sm:$0xff]
    %v664 = vld [vmem:[#allocation9 + $0xf8] sm:$0xff]
    %v665 = vld [vmem:[#allocation9 + $0x100] sm:$0xff]
    %v666 = vld [vmem:[#allocation9 + $0x108] sm:$0xff]
    %v667 = vld [vmem:[#allocation9 + $0x110] sm:$0xff]
    %v668 = vld [vmem:[#allocation9 + $0x118] sm:$0xff]
    %v669 = vld [vmem:[#allocation9 + $0x120] sm:$0xff]
    %v670 = vld [vmem:[#allocation9 + $0x128] sm:$0xff]
    %v671 = vld [vmem:[#allocation9 + $0x130] sm:$0xff]
    %v672 = vld [vmem:[#allocation9 + $0x138] sm:$0xff]
    %v673 = vld [vmem:[#allocation9 + $0x140] sm:$0xff]
    %v674 = vld [vmem:[#allocation9 + $0x148] sm:$0xff]
    %v675 = vld [vmem:[#allocation9 + $0x150] sm:$0xff]
    %v676 = vld [vmem:[#allocation9 + $0x158] sm:$0xff]
    %v677 = vld [vmem:[#allocation9 + $0x160] sm:$0xff]
    %v678 = vld [vmem:[#allocation9 + $0x168] sm:$0xff]
    %v679 = vld [vmem:[#allocation9 + $0x170] sm:$0xff]
    %v680 = vld [vmem:[#allocation9 + $0x178] sm:$0xff]
    %v681 = vld [vmem:[#allocation9 + $0x180] sm:$0xff]
    %v682 = vld [vmem:[#allocation9 + $0x188] sm:$0xff]
    %v683 = vld [vmem:[#allocation9 + $0x190] sm:$0xff]
    %v684 = vld [vmem:[#allocation9 + $0x198] sm:$0xff]
    %v685 = vld [vmem:[#allocation9 + $0x1a0] sm:$0xff]
    %v686 = vld [vmem:[#allocation9 + $0x1a8] sm:$0xff]
    %v687 = vld [vmem:[#allocation9 + $0x1b0] sm:$0xff]
    %v688 = vld [vmem:[#allocation9 + $0x1b8] sm:$0xff]
    %v689 = vld [vmem:[#allocation9 + $0x1c0] sm:$0xff]
    %v690 = vld [vmem:[#allocation9 + $0x1c8] sm:$0xff]
    %v691 = vld [vmem:[#allocation9 + $0x1d0] sm:$0xff]
    %v692 = vld [vmem:[#allocation9 + $0x1d8] sm:$0xff]
    %v693 = vld [vmem:[#allocation9 + $0x1e0] sm:$0xff]
    %v694 = vld [vmem:[#allocation9 + $0x1e8] sm:$0xff]
    %v695 = vld [vmem:[#allocation9 + $0x1f0] sm:$0xff]
    %v696 = vld [vmem:[#allocation9 + $0x1f8] sm:$0xff]
    %v761 = vunpack.c.l.b16 %v633
    %v762 = vunpack.c.h.b16 %v633
    %v763 = vunpack.c.l.b16 %v634
    %v764 = vunpack.c.h.b16 %v634
    %v765 = vunpack.c.l.b16 %v635
    %v766 = vunpack.c.h.b16 %v635
    %v767 = vunpack.c.l.b16 %v636
    %v768 = vunpack.c.h.b16 %v636
    %v769 = vunpack.c.l.b16 %v637
    %v770 = vunpack.c.h.b16 %v637
    %v771 = vunpack.c.l.b16 %v638
    %v772 = vunpack.c.h.b16 %v638
    %v773 = vunpack.c.l.b16 %v639
    %v774 = vunpack.c.h.b16 %v639
    %v775 = vunpack.c.l.b16 %v640
    %v776 = vunpack.c.h.b16 %v640
    %v777 = vunpack.c.l.b16 %v641
    %v778 = vunpack.c.h.b16 %v641
    %v779 = vunpack.c.l.b16 %v642
    %v780 = vunpack.c.h.b16 %v642
    %v781 = vunpack.c.l.b16 %v643
    %v782 = vunpack.c.h.b16 %v643
    %v783 = vunpack.c.l.b16 %v644
    %v784 = vunpack.c.h.b16 %v644
    %v785 = vunpack.c.l.b16 %v645
    %v786 = vunpack.c.h.b16 %v645
    %v787 = vunpack.c.l.b16 %v646
    %v788 = vunpack.c.h.b16 %v646
    %v789 = vunpack.c.l.b16 %v647
    %v790 = vunpack.c.h.b16 %v647
    %v791 = vunpack.c.l.b16 %v648
    %v792 = vunpack.c.h.b16 %v648
    %v793 = vunpack.c.l.b16 %v649
    %v794 = vunpack.c.h.b16 %v649
    %v795 = vunpack.c.l.b16 %v650
    %v796 = vunpack.c.h.b16 %v650
    %v797 = vunpack.c.l.b16 %v651
    %v798 = vunpack.c.h.b16 %v651
    %v799 = vunpack.c.l.b16 %v652
    %v800 = vunpack.c.h.b16 %v652
    %v801 = vunpack.c.l.b16 %v653
    %v802 = vunpack.c.h.b16 %v653
    %v803 = vunpack.c.l.b16 %v654
    %v804 = vunpack.c.h.b16 %v654
    %v805 = vunpack.c.l.b16 %v655
    %v806 = vunpack.c.h.b16 %v655
    %v807 = vunpack.c.l.b16 %v656
    %v808 = vunpack.c.h.b16 %v656
    %v809 = vunpack.c.l.b16 %v657
    %v810 = vunpack.c.h.b16 %v657
    %v811 = vunpack.c.l.b16 %v658
    %v812 = vunpack.c.h.b16 %v658
    %v813 = vunpack.c.l.b16 %v659
    %v814 = vunpack.c.h.b16 %v659
    %v815 = vunpack.c.l.b16 %v660
    %v816 = vunpack.c.h.b16 %v660
    %v817 = vunpack.c.l.b16 %v661
    %v818 = vunpack.c.h.b16 %v661
    %v819 = vunpack.c.l.b16 %v662
    %v820 = vunpack.c.h.b16 %v662
    %v821 = vunpack.c.l.b16 %v663
    %v822 = vunpack.c.h.b16 %v663
    %v823 = vunpack.c.l.b16 %v664
    %v824 = vunpack.c.h.b16 %v664
    %v825 = vunpack.c.l.b16 %v665
    %v826 = vunpack.c.h.b16 %v665
    %v827 = vunpack.c.l.b16 %v666
    %v828 = vunpack.c.h.b16 %v666
    %v829 = vunpack.c.l.b16 %v667
    %v830 = vunpack.c.h.b16 %v667
    %v831 = vunpack.c.l.b16 %v668
    %v832 = vunpack.c.h.b16 %v668
    %v833 = vunpack.c.l.b16 %v669
    %v834 = vunpack.c.h.b16 %v669
    %v835 = vunpack.c.l.b16 %v670
    %v836 = vunpack.c.h.b16 %v670
    %v837 = vunpack.c.l.b16 %v671
    %v838 = vunpack.c.h.b16 %v671
    %v839 = vunpack.c.l.b16 %v672
    %v840 = vunpack.c.h.b16 %v672
    %v841 = vunpack.c.l.b16 %v673
    %v842 = vunpack.c.h.b16 %v673
    %v843 = vunpack.c.l.b16 %v674
    %v844 = vunpack.c.h.b16 %v674
    %v845 = vunpack.c.l.b16 %v675
    %v846 = vunpack.c.h.b16 %v675
    %v847 = vunpack.c.l.b16 %v676
    %v848 = vunpack.c.h.b16 %v676
    %v849 = vunpack.c.l.b16 %v677
    %v850 = vunpack.c.h.b16 %v677
    %v851 = vunpack.c.l.b16 %v678
    %v852 = vunpack.c.h.b16 %v678
    %v853 = vunpack.c.l.b16 %v679
    %v854 = vunpack.c.h.b16 %v679
    %v855 = vunpack.c.l.b16 %v680
    %v856 = vunpack.c.h.b16 %v680
    %v857 = vunpack.c.l.b16 %v681
    %v858 = vunpack.c.h.b16 %v681
    %v859 = vunpack.c.l.b16 %v682
    %v860 = vunpack.c.h.b16 %v682
    %v861 = vunpack.c.l.b16 %v683
    %v862 = vunpack.c.h.b16 %v683
    %v863 = vunpack.c.l.b16 %v684
    %v864 = vunpack.c.h.b16 %v684
    %v865 = vunpack.c.l.b16 %v685
    %v866 = vunpack.c.h.b16 %v685
    %v867 = vunpack.c.l.b16 %v686
    %v868 = vunpack.c.h.b16 %v686
    %v869 = vunpack.c.l.b16 %v687
    %v870 = vunpack.c.h.b16 %v687
    %v871 = vunpack.c.l.b16 %v688
    %v872 = vunpack.c.h.b16 %v688
    %v873 = vunpack.c.l.b16 %v689
    %v874 = vunpack.c.h.b16 %v689
    %v875 = vunpack.c.l.b16 %v690
    %v876 = vunpack.c.h.b16 %v690
    %v877 = vunpack.c.l.b16 %v691
    %v878 = vunpack.c.h.b16 %v691
    %v879 = vunpack.c.l.b16 %v692
    %v880 = vunpack.c.h.b16 %v692
    %v881 = vunpack.c.l.b16 %v693
    %v882 = vunpack.c.h.b16 %v693
    %v883 = vunpack.c.l.b16 %v694
    %v884 = vunpack.c.h.b16 %v694
    %v885 = vunpack.c.l.b16 %v695
    %v886 = vunpack.c.h.b16 %v695
    %v887 = vunpack.c.l.b16 %v696
    %v888 = vunpack.c.h.b16 %v696
    %v889 = vpack.c.b16 %v765, %v761
    %v890 = vpack.c.b16 %v766, %v762
    %v891 = vpack.c.b16 %v767, %v763
    %v892 = vpack.c.b16 %v768, %v764
    %v893 = vpack.c.b16 %v773, %v769
    %v894 = vpack.c.b16 %v774, %v770
    %v895 = vpack.c.b16 %v775, %v771
    %v896 = vpack.c.b16 %v776, %v772
    %v897 = vpack.c.b16 %v781, %v777
    %v898 = vpack.c.b16 %v782, %v778
    %v899 = vpack.c.b16 %v783, %v779
    %v900 = vpack.c.b16 %v784, %v780
    %v901 = vpack.c.b16 %v789, %v785
    %v902 = vpack.c.b16 %v790, %v786
    %v903 = vpack.c.b16 %v791, %v787
    %v904 = vpack.c.b16 %v792, %v788
    %v905 = vpack.c.b16 %v797, %v793
    %v906 = vpack.c.b16 %v798, %v794
    %v907 = vpack.c.b16 %v799, %v795
    %v908 = vpack.c.b16 %v800, %v796
    %v909 = vpack.c.b16 %v805, %v801
    %v910 = vpack.c.b16 %v806, %v802
    %v911 = vpack.c.b16 %v807, %v803
    %v912 = vpack.c.b16 %v808, %v804
    %v913 = vpack.c.b16 %v813, %v809
    %v914 = vpack.c.b16 %v814, %v810
    %v915 = vpack.c.b16 %v815, %v811
    %v916 = vpack.c.b16 %v816, %v812
    %v917 = vpack.c.b16 %v821, %v817
    %v918 = vpack.c.b16 %v822, %v818
    %v919 = vpack.c.b16 %v823, %v819
    %v920 = vpack.c.b16 %v824, %v820
    %v921 = vpack.c.b16 %v829, %v825
    %v922 = vpack.c.b16 %v830, %v826
    %v923 = vpack.c.b16 %v831, %v827
    %v924 = vpack.c.b16 %v832, %v828
    %v925 = vpack.c.b16 %v837, %v833
    %v926 = vpack.c.b16 %v838, %v834
    %v927 = vpack.c.b16 %v839, %v835
    %v928 = vpack.c.b16 %v840, %v836
    %v929 = vpack.c.b16 %v845, %v841
    %v930 = vpack.c.b16 %v846, %v842
    %v931 = vpack.c.b16 %v847, %v843
    %v932 = vpack.c.b16 %v848, %v844
    %v933 = vpack.c.b16 %v853, %v849
    %v934 = vpack.c.b16 %v854, %v850
    %v935 = vpack.c.b16 %v855, %v851
    %v936 = vpack.c.b16 %v856, %v852
    %v937 = vpack.c.b16 %v861, %v857
    %v938 = vpack.c.b16 %v862, %v858
    %v939 = vpack.c.b16 %v863, %v859
    %v940 = vpack.c.b16 %v864, %v860
    %v941 = vpack.c.b16 %v869, %v865
    %v942 = vpack.c.b16 %v870, %v866
    %v943 = vpack.c.b16 %v871, %v867
    %v944 = vpack.c.b16 %v872, %v868
    %v945 = vpack.c.b16 %v877, %v873
    %v946 = vpack.c.b16 %v878, %v874
    %v947 = vpack.c.b16 %v879, %v875
    %v948 = vpack.c.b16 %v880, %v876
    %v949 = vpack.c.b16 %v885, %v881
    %v950 = vpack.c.b16 %v886, %v882
    %v951 = vpack.c.b16 %v887, %v883
    %v952 = vpack.c.b16 %v888, %v884
    %1017 = vmatprep.subr.bf16.mxu0 %v890
    %1018 = vmatpush1.bf16.msra.mxu0 %v889
    %1019 = vmatprep.subr.bf16.mxu0 %v894
    %1020 = vmatpush1.bf16.msra.mxu0 %v893
    %1021 = vmatprep.subr.bf16.mxu0 %v898
    %1022 = vmatpush1.bf16.msra.mxu0 %v897
    %1023 = vmatprep.subr.bf16.mxu0 %v902
    %1024 = vmatpush1.bf16.msra.mxu0 %v901
    %1025 = vmatprep.subr.bf16.mxu0 %v906
    %1026 = vmatpush1.bf16.msra.mxu0 %v905
    %1027 = vmatprep.subr.bf16.mxu0 %v910
    %1028 = vmatpush1.bf16.msra.mxu0 %v909
    %1029 = vmatprep.subr.bf16.mxu0 %v914
    %1030 = vmatpush1.bf16.msra.mxu0 %v913
    %1031 = vmatprep.subr.bf16.mxu0 %v918
    %1032 = vmatpush1.bf16.msra.mxu0 %v917
    %1033 = vmatprep.subr.bf16.mxu0 %v922
    %1034 = vmatpush1.bf16.msra.mxu0 %v921
    %1035 = vmatprep.subr.bf16.mxu0 %v926
    %1036 = vmatpush1.bf16.msra.mxu0 %v925
    %1037 = vmatprep.subr.bf16.mxu0 %v930
    %1038 = vmatpush1.bf16.msra.mxu0 %v929
    %1039 = vmatprep.subr.bf16.mxu0 %v934
    %1040 = vmatpush1.bf16.msra.mxu0 %v933
    %1041 = vmatprep.subr.bf16.mxu0 %v938
    %1042 = vmatpush1.bf16.msra.mxu0 %v937
    %1043 = vmatprep.subr.bf16.mxu0 %v942
    %1044 = vmatpush1.bf16.msra.mxu0 %v941
    %1045 = vmatprep.subr.bf16.mxu0 %v946
    %1046 = vmatpush1.bf16.msra.mxu0 %v945
    %1047 = vmatprep.subr.bf16.mxu0 %v950
    %1048 = vmatpush1.bf16.msra.mxu0 %v949
    %1049 = vmatprep.mubr.bf16.mxu0 %v632
    %1050 = vmatmul.mubr.bf16.gmra.mrb[0].mxu0 %v631
    %v1051 = vpop.f32.mrb[0].mxu0
    %v1052 = vadd.f32 %v239, %v1051
    %v1053 = vpop.f32.mrb[0].mxu0
    %v1054 = vadd.f32 %v243, %v1053
    %v1055 = vpop.f32.mrb[0].mxu0
    %v1056 = vpop.f32.mrb[0].mxu0
    %1057 = vdwg.mxu0
    %1058 = vmatprep.subr.bf16.mxu0 %v892
    %1059 = vmatpush1.bf16.msra.mxu0 %v891
    %1060 = vmatprep.subr.bf16.mxu0 %v896
    %1061 = vmatpush1.bf16.msra.mxu0 %v895
    %1062 = vmatprep.subr.bf16.mxu0 %v900
    %1063 = vmatpush1.bf16.msra.mxu0 %v899
    %1064 = vmatprep.subr.bf16.mxu0 %v904
    %1065 = vmatpush1.bf16.msra.mxu0 %v903
    %1066 = vmatprep.subr.bf16.mxu0 %v908
    %1067 = vmatpush1.bf16.msra.mxu0 %v907
    %1068 = vmatprep.subr.bf16.mxu0 %v912
    %1069 = vmatpush1.bf16.msra.mxu0 %v911
    %1070 = vmatprep.subr.bf16.mxu0 %v916
    %1071 = vmatpush1.bf16.msra.mxu0 %v915
    %1072 = vmatprep.subr.bf16.mxu0 %v920
    %1073 = vmatpush1.bf16.msra.mxu0 %v919
    %1074 = vmatprep.subr.bf16.mxu0 %v924
    %1075 = vmatpush1.bf16.msra.mxu0 %v923
    %1076 = vmatprep.subr.bf16.mxu0 %v928
    %1077 = vmatpush1.bf16.msra.mxu0 %v927
    %1078 = vmatprep.subr.bf16.mxu0 %v932
    %1079 = vmatpush1.bf16.msra.mxu0 %v931
    %1080 = vmatprep.subr.bf16.mxu0 %v936
    %1081 = vmatpush1.bf16.msra.mxu0 %v935
    %1082 = vmatprep.subr.bf16.mxu0 %v940
    %1083 = vmatpush1.bf16.msra.mxu0 %v939
    %1084 = vmatprep.subr.bf16.mxu0 %v944
    %1085 = vmatpush1.bf16.msra.mxu0 %v943
    %1086 = vmatprep.subr.bf16.mxu0 %v948
    %1087 = vmatpush1.bf16.msra.mxu0 %v947
    %1088 = vmatprep.subr.bf16.mxu0 %v952
    %1089 = vmatpush1.bf16.msra.mxu0 %v951
    %1090 = vmatprep.mubr.bf16.mxu0 %v632
    %1091 = vmatmul.mubr.bf16.gmra.mrb[0].mxu0 %v631
    %v1092 = vpop.f32.mrb[0].mxu0
    %v1093 = vadd.f32 %v247, %v1092
    %v1094 = vpop.f32.mrb[0].mxu0
    %v1095 = vadd.f32 %v251, %v1094
    %v1096 = vpop.f32.mrb[0].mxu0
    %v1097 = vpop.f32.mrb[0].mxu0
    %1098 = vdwg.mxu0
    %v1099 = vxor.u32 %v1052, 2147483648
    %v1100 = vxor.u32 %v1054, 2147483648
    %v1101 = vxor.u32 %v1093, 2147483648
    %v1102 = vmul.f32 %v1099, 1.442695
    %v1103 = vpow.pop %v1102
    %v1104 = vmul.f32 %v1100, 1.442695
    %v1105 = vpow.pop %v1104
    %v1106 = vmul.f32 %v1101, 1.442695
    %v1107 = vpow.pop %v1106
    %v1108 = vadd.f32 %v1103, 1.0
    %v1109 = vadd.f32 %v1105, 1.0
    %v1110 = vadd.f32 %v1107, 1.0
    %v1111 = vrcp.pop %v1108
    %v1112 = vmul.f32 1.0, %v1111
    %v1113 = vrcp.pop %v1109
    %v1114 = vmul.f32 1.0, %v1113
    %v1115 = vrcp.pop %v1110
    %v1116 = vmul.f32 1.0, %v1115
    %v1117 = vtanh.pop %v1095
    %v1118 = vmul.f32 %v1114, 0.0
    %v1119 = vmul.f32 %v1112, %v1117
    %v1120 = vadd.f32 %v1118, %v1119
    %v1121 = vtanh.pop %v1120
    %v1122 = vmul.f32 %v1116, %v1121
    %s1123 = scalar_lea.vmem [#allocation2], 1
    %v1124 = vld [vmem:[%s1123] ss:$8 sm:$0xf]
    %s1125 = scalar_lea.vmem [#allocation2], 33
    %v1126 = vld [vmem:[%s1125] ss:$8 sm:$0xf]
    %v1127 = vpack.c.bf16 %v611, %v611
    %v1128 = vpack.c.bf16 %v612, %v612
    %v1131 = vunpack.c.l.b16 %v1127
    %v1132 = vunpack.c.l.b16 %v1128
    %v1133 = vrot.slane %v1132, 7
    %vm1134 = vcmask 1041409
    %v1135 = vsel %vm1134, %v1133, %v1131
    %v1136 = vpack.c.b16 %v1135, %v1135
    %1138 = vmatprep.subr.bf16.mxu0 %v388
    %1139 = vmatpush1.bf16.msra.mxu0 %v387
    %1140 = vmatprep.subr.bf16.mxu0 %v392
    %1141 = vmatpush1.bf16.msra.mxu0 %v391
    %1142 = vmatprep.subr.bf16.mxu0 %v396
    %1143 = vmatpush1.bf16.msra.mxu0 %v395
    %1144 = vmatprep.subr.bf16.mxu0 %v400
    %1145 = vmatpush1.bf16.msra.mxu0 %v399
    %1146 = vmatprep.subr.bf16.mxu0 %v404
    %1147 = vmatpush1.bf16.msra.mxu0 %v403
    %1148 = vmatprep.subr.bf16.mxu0 %v408
    %1149 = vmatpush1.bf16.msra.mxu0 %v407
    %1150 = vmatprep.subr.bf16.mxu0 %v412
    %1151 = vmatpush1.bf16.msra.mxu0 %v411
    %1152 = vmatprep.subr.bf16.mxu0 %v416
    %1153 = vmatpush1.bf16.msra.mxu0 %v415
    %1154 = vmatprep.subr.bf16.mxu0 0
    %1155 = vmatpush1.bf16.msra.mxu0 0
    %1156 = vmatprep.subr.bf16.mxu0 0
    %1157 = vmatpush1.bf16.msra.mxu0 0
    %1158 = vmatprep.subr.bf16.mxu0 0
    %1159 = vmatpush1.bf16.msra.mxu0 0
    %1160 = vmatprep.subr.bf16.mxu0 0
    %1161 = vmatpush1.bf16.msra.mxu0 0
    %1162 = vmatprep.subr.bf16.mxu0 0
    %1163 = vmatpush1.bf16.msra.mxu0 0
    %1164 = vmatprep.subr.bf16.mxu0 0
    %1165 = vmatpush1.bf16.msra.mxu0 0
    %1166 = vmatprep.subr.bf16.mxu0 0
    %1167 = vmatpush1.bf16.msra.mxu0 0
    %1168 = vmatprep.subr.bf16.mxu0 0
    %1169 = vmatpush1.bf16.msra.mxu0 0
    %1170 = vmatprep.mubr.bf16.mxu0 0
    %1171 = vmatmul.mubr.bf16.gmra.mrb[0].mxu0 %v1136
    %v1172 = vpop.f32.mrb[0].mxu0
    %v1173 = vadd.f32 0.0, %v1172
    %v1174 = vpop.f32.mrb[0].mxu0
    %v1175 = vadd.f32 0.0, %v1174
    %v1176 = vpop.f32.mrb[0].mxu0
    %v1177 = vpop.f32.mrb[0].mxu0
    %1178 = vdwg.mxu0
    %1179 = vmatprep.subr.bf16.mxu0 %v390
    %1180 = vmatpush1.bf16.msra.mxu0 %v389
    %1181 = vmatprep.subr.bf16.mxu0 %v394
    %1182 = vmatpush1.bf16.msra.mxu0 %v393
    %1183 = vmatprep.subr.bf16.mxu0 %v398
    %1184 = vmatpush1.bf16.msra.mxu0 %v397
    %1185 = vmatprep.subr.bf16.mxu0 %v402
    %1186 = vmatpush1.bf16.msra.mxu0 %v401
    %1187 = vmatprep.subr.bf16.mxu0 %v406
    %1188 = vmatpush1.bf16.msra.mxu0 %v405
    %1189 = vmatprep.subr.bf16.mxu0 %v410
    %1190 = vmatpush1.bf16.msra.mxu0 %v409
    %1191 = vmatprep.subr.bf16.mxu0 %v414
    %1192 = vmatpush1.bf16.msra.mxu0 %v413
    %1193 = vmatprep.subr.bf16.mxu0 %v418
    %1194 = vmatpush1.bf16.msra.mxu0 %v417
    %1195 = vmatprep.subr.bf16.mxu0 0
    %1196 = vmatpush1.bf16.msra.mxu0 0
    %1197 = vmatprep.subr.bf16.mxu0 0
    %1198 = vmatpush1.bf16.msra.mxu0 0
    %1199 = vmatprep.subr.bf16.mxu0 0
    %1200 = vmatpush1.bf16.msra.mxu0 0
    %1201 = vmatprep.subr.bf16.mxu0 0
    %1202 = vmatpush1.bf16.msra.mxu0 0
    %1203 = vmatprep.subr.bf16.mxu0 0
    %1204 = vmatpush1.bf16.msra.mxu0 0
    %1205 = vmatprep.subr.bf16.mxu0 0
    %1206 = vmatpush1.bf16.msra.mxu0 0
    %1207 = vmatprep.subr.bf16.mxu0 0
    %1208 = vmatpush1.bf16.msra.mxu0 0
    %1209 = vmatprep.subr.bf16.mxu0 0
    %1210 = vmatpush1.bf16.msra.mxu0 0
    %1211 = vmatprep.mubr.bf16.mxu0 0
    %1212 = vmatmul.mubr.bf16.gmra.mrb[0].mxu0 %v1136
    %v1213 = vpop.f32.mrb[0].mxu0
    %v1214 = vadd.f32 0.0, %v1213
    %v1215 = vpop.f32.mrb[0].mxu0
    %v1216 = vadd.f32 0.0, %v1215
    %v1217 = vpop.f32.mrb[0].mxu0
    %v1218 = vpop.f32.mrb[0].mxu0
    %1219 = vdwg.mxu0
    %v1224 = vcombine.low %v1173, %v1175
    %v1225 = vcombine.low %v1214, %v1216
    %v1227 = vunpack.c.l.s4 1966171168
    %v1228 = vunpack.c.0.s8 %v1227
    %v1229 = vlaneseq
    %v1230 = vshrl.u32 %v1229, 7
    %v1231 = vsub.s32 %v1228, %v1230
    %v1232 = vrot.slane %v1224, %v1231
    %v1234 = vunpack.c.l.s4 1966171168
    %v1235 = vunpack.c.0.s8 %v1234
    %v1236 = vlaneseq
    %v1237 = vshrl.u32 %v1236, 7
    %v1238 = vsub.s32 %v1235, %v1237
    %v1239 = vrot.slane %v1225, %v1238
    %v1240 = vcombine.low %v1232, %v1239
    %v1241 = vcombine.high %v1232, %v1239
    %v1243 = vunpack.c.l.s4 1966171168
    %v1244 = vunpack.c.0.s8 %v1243
    %v1245 = vlaneseq
    %v1246 = vshrl.u32 %v1245, 7
    %v1247 = vsub.s32 %v1244, %v1246
    %v1248 = vrot.slane %v1240, %v1247
    %v1250 = vunpack.c.l.s4 1966171168
    %v1251 = vunpack.c.0.s8 %v1250
    %v1252 = vlaneseq
    %v1253 = vshrl.u32 %v1252, 7
    %v1254 = vsub.s32 %v1251, %v1253
    %v1255 = vrot.slane %v1241, %v1254
    %v1258 = vadd.f32 %v1124, %v1248
    %v1259 = vadd.f32 %v1126, %v1255
    %v1260 = vxor.u32 %v1258, 2147483648
    %v1261 = vxor.u32 %v1259, 2147483648
    %v1262 = vmul.f32 %v1260, 1.442695
    %v1263 = vpow.pop %v1262
    %v1264 = vmul.f32 %v1261, 1.442695
    %v1265 = vpow.pop %v1264
    %v1266 = vadd.f32 %v1263, 1.0
    %v1267 = vadd.f32 %v1265, 1.0
    %v1268 = vrcp.pop %v1266
    %v1269 = vmul.f32 1.0, %v1268
    %v1270 = vrcp.pop %v1267
    %v1271 = vmul.f32 1.0, %v1270
    %v1274 = vrot.slane %v1258, 3
    %v1275 = vrot.slane %v1259, 3
    %v1278 = vtanh.pop %v1274
    %v1279 = vtanh.pop %v1275
    %v1282 = vrot.slane %v1269, 1
    %v1283 = vrot.slane %v1271, 1
    %v1286 = vmul.f32 %v1282, %v603
    %v1287 = vmul.f32 %v1283, %v604
    %v1288 = vmul.f32 %v1269, %v1278
    %v1289 = vmul.f32 %v1271, %v1279
    %v1290 = vadd.f32 %v1286, %v1288
    %v1291 = vadd.f32 %v1287, %v1289
    %v1292 = vtanh.pop %v1290
    %v1293 = vtanh.pop %v1291
    %v1294 = vrot.slane %v1269, 2
    %v1295 = vrot.slane %v1271, 2
    %v1298 = vmul.f32 %v1294, %v1292
    %v1299 = vmul.f32 %v1295, %v1293
    %v1302 = vcombine.low %v1298, %v1299
    %v1304 = vunpack.c.l.s4 1966171168
    %v1305 = vunpack.c.0.s8 %v1304
    %v1306 = vlaneseq
    %v1307 = vshrl.u32 %v1306, 7
    %v1308 = vsub.s32 %v1305, %v1307
    %v1309 = vrot.slane %v1302, %v1308
    %v1311 = vunpack.c.l.s4 1966171168
    %v1312 = vunpack.c.0.s8 %v1311
    %v1313 = vlaneseq
    %v1314 = vshrl.u32 %v1313, 7
    %v1315 = vsub.s32 %v1312, %v1314
    %v1316 = vrot.slane %v1309, %v1315
    %v1318 = vpack.c.bf16 %v1316, %v1316
    %v1319 = vpack.c.bf16 %v1122, %v1122
    %1320 = vmatprep.subr.bf16.mxu0 %v890
    %1321 = vmatpush1.bf16.msra.mxu0 %v889
    %1322 = vmatprep.subr.bf16.mxu0 %v894
    %1323 = vmatpush1.bf16.msra.mxu0 %v893
    %1324 = vmatprep.subr.bf16.mxu0 %v898
    %1325 = vmatpush1.bf16.msra.mxu0 %v897
    %1326 = vmatprep.subr.bf16.mxu0 %v902
    %1327 = vmatpush1.bf16.msra.mxu0 %v901
    %1328 = vmatprep.subr.bf16.mxu0 %v906
    %1329 = vmatpush1.bf16.msra.mxu0 %v905
    %1330 = vmatprep.subr.bf16.mxu0 %v910
    %1331 = vmatpush1.bf16.msra.mxu0 %v909
    %1332 = vmatprep.subr.bf16.mxu0 %v914
    %1333 = vmatpush1.bf16.msra.mxu0 %v913
    %1334 = vmatprep.subr.bf16.mxu0 %v918
    %1335 = vmatpush1.bf16.msra.mxu0 %v917
    %1336 = vmatprep.subr.bf16.mxu0 %v922
    %1337 = vmatpush1.bf16.msra.mxu0 %v921
    %1338 = vmatprep.subr.bf16.mxu0 %v926
    %1339 = vmatpush1.bf16.msra.mxu0 %v925
    %1340 = vmatprep.subr.bf16.mxu0 %v930
    %1341 = vmatpush1.bf16.msra.mxu0 %v929
    %1342 = vmatprep.subr.bf16.mxu0 %v934
    %1343 = vmatpush1.bf16.msra.mxu0 %v933
    %1344 = vmatprep.subr.bf16.mxu0 %v938
    %1345 = vmatpush1.bf16.msra.mxu0 %v937
    %1346 = vmatprep.subr.bf16.mxu0 %v942
    %1347 = vmatpush1.bf16.msra.mxu0 %v941
    %1348 = vmatprep.subr.bf16.mxu0 %v946
    %1349 = vmatpush1.bf16.msra.mxu0 %v945
    %1350 = vmatprep.subr.bf16.mxu0 %v950
    %1351 = vmatpush1.bf16.msra.mxu0 %v949
    %1352 = vmatprep.mubr.bf16.mxu0 %v1319
    %1353 = vmatmul.mubr.bf16.gmra.mrb[0].mxu0 %v1318
    %v1354 = vpop.f32.mrb[0].mxu0
    %v1355 = vadd.f32 %v239, %v1354
    %v1356 = vpop.f32.mrb[0].mxu0
    %v1357 = vadd.f32 %v243, %v1356
    %v1358 = vpop.f32.mrb[0].mxu0
    %v1359 = vpop.f32.mrb[0].mxu0
    %1360 = vdwg.mxu0
    %1361 = vmatprep.subr.bf16.mxu0 %v892
    %1362 = vmatpush1.bf16.msra.mxu0 %v891
    %1363 = vmatprep.subr.bf16.mxu0 %v896
    %1364 = vmatpush1.bf16.msra.mxu0 %v895
    %1365 = vmatprep.subr.bf16.mxu0 %v900
    %1366 = vmatpush1.bf16.msra.mxu0 %v899
    %1367 = vmatprep.subr.bf16.mxu0 %v904
    %1368 = vmatpush1.bf16.msra.mxu0 %v903
    %1369 = vmatprep.subr.bf16.mxu0 %v908
    %1370 = vmatpush1.bf16.msra.mxu0 %v907
    %1371 = vmatprep.subr.bf16.mxu0 %v912
    %1372 = vmatpush1.bf16.msra.mxu0 %v911
    %1373 = vmatprep.subr.bf16.mxu0 %v916
    %1374 = vmatpush1.bf16.msra.mxu0 %v915
    %1375 = vmatprep.subr.bf16.mxu0 %v920
    %1376 = vmatpush1.bf16.msra.mxu0 %v919
    %1377 = vmatprep.subr.bf16.mxu0 %v924
    %1378 = vmatpush1.bf16.msra.mxu0 %v923
    %1379 = vmatprep.subr.bf16.mxu0 %v928
    %1380 = vmatpush1.bf16.msra.mxu0 %v927
    %1381 = vmatprep.subr.bf16.mxu0 %v932
    %1382 = vmatpush1.bf16.msra.mxu0 %v931
    %1383 = vmatprep.subr.bf16.mxu0 %v936
    %1384 = vmatpush1.bf16.msra.mxu0 %v935
    %1385 = vmatprep.subr.bf16.mxu0 %v940
    %1386 = vmatpush1.bf16.msra.mxu0 %v939
    %1387 = vmatprep.subr.bf16.mxu0 %v944
    %1388 = vmatpush1.bf16.msra.mxu0 %v943
    %1389 = vmatprep.subr.bf16.mxu0 %v948
    %1390 = vmatpush1.bf16.msra.mxu0 %v947
    %1391 = vmatprep.subr.bf16.mxu0 %v952
    %1392 = vmatpush1.bf16.msra.mxu0 %v951
    %1393 = vmatprep.mubr.bf16.mxu0 %v1319
    %1394 = vmatmul.mubr.bf16.gmra.mrb[0].mxu0 %v1318
    %v1395 = vpop.f32.mrb[0].mxu0
    %v1396 = vadd.f32 %v247, %v1395
    %v1397 = vpop.f32.mrb[0].mxu0
    %v1398 = vadd.f32 %v251, %v1397
    %v1399 = vpop.f32.mrb[0].mxu0
    %v1400 = vpop.f32.mrb[0].mxu0
    %1401 = vdwg.mxu0
    %v1402 = vxor.u32 %v1355, 2147483648
    %v1403 = vxor.u32 %v1357, 2147483648
    %v1404 = vxor.u32 %v1396, 2147483648
    %v1405 = vmul.f32 %v1402, 1.442695
    %v1406 = vpow.pop %v1405
    %v1407 = vmul.f32 %v1403, 1.442695
    %v1408 = vpow.pop %v1407
    %v1409 = vmul.f32 %v1404, 1.442695
    %v1410 = vpow.pop %v1409
    %v1411 = vadd.f32 %v1406, 1.0
    %v1412 = vadd.f32 %v1408, 1.0
    %v1413 = vadd.f32 %v1410, 1.0
    %v1414 = vrcp.pop %v1411
    %v1415 = vmul.f32 1.0, %v1414
    %v1416 = vrcp.pop %v1412
    %v1417 = vmul.f32 1.0, %v1416
    %v1418 = vrcp.pop %v1413
    %v1419 = vmul.f32 1.0, %v1418
    %v1420 = vtanh.pop %v1398
    %v1421 = vmul.f32 %v1417, %v1120
    %v1422 = vmul.f32 %v1415, %v1420
    %v1423 = vadd.f32 %v1421, %v1422
    %v1424 = vtanh.pop %v1423
    %v1425 = vmul.f32 %v1419, %v1424
    %s1426 = scalar_lea.vmem [#allocation2], 2
    %v1427 = vld [vmem:[%s1426] ss:$8 sm:$0xf]
    %s1428 = scalar_lea.vmem [#allocation2], 34
    %v1429 = vld [vmem:[%s1428] ss:$8 sm:$0xf]
    %v1430 = vpack.c.bf16 %v1298, %v1298
    %v1431 = vpack.c.bf16 %v1299, %v1299
    %v1434 = vunpack.c.l.b16 %v1430
    %v1435 = vunpack.c.l.b16 %v1431
    %v1436 = vrot.slane %v1435, 7
    %v1437 = vsel %vm1134, %v1436, %v1434
    %v1438 = vpack.c.b16 %v1437, %v1437
    %1440 = vmatprep.subr.bf16.mxu0 %v388
    %1441 = vmatpush1.bf16.msra.mxu0 %v387
    %1442 = vmatprep.subr.bf16.mxu0 %v392
    %1443 = vmatpush1.bf16.msra.mxu0 %v391
    %1444 = vmatprep.subr.bf16.mxu0 %v396
    %1445 = vmatpush1.bf16.msra.mxu0 %v395
    %1446 = vmatprep.subr.bf16.mxu0 %v400
    %1447 = vmatpush1.bf16.msra.mxu0 %v399
    %1448 = vmatprep.subr.bf16.mxu0 %v404
    %1449 = vmatpush1.bf16.msra.mxu0 %v403
    %1450 = vmatprep.subr.bf16.mxu0 %v408
    %1451 = vmatpush1.bf16.msra.mxu0 %v407
    %1452 = vmatprep.subr.bf16.mxu0 %v412
    %1453 = vmatpush1.bf16.msra.mxu0 %v411
    %1454 = vmatprep.subr.bf16.mxu0 %v416
    %1455 = vmatpush1.bf16.msra.mxu0 %v415
    %1456 = vmatprep.subr.bf16.mxu0 0
    %1457 = vmatpush1.bf16.msra.mxu0 0
    %1458 = vmatprep.subr.bf16.mxu0 0
    %1459 = vmatpush1.bf16.msra.mxu0 0
    %1460 = vmatprep.subr.bf16.mxu0 0
    %1461 = vmatpush1.bf16.msra.mxu0 0
    %1462 = vmatprep.subr.bf16.mxu0 0
    %1463 = vmatpush1.bf16.msra.mxu0 0
    %1464 = vmatprep.subr.bf16.mxu0 0
    %1465 = vmatpush1.bf16.msra.mxu0 0
    %1466 = vmatprep.subr.bf16.mxu0 0
    %1467 = vmatpush1.bf16.msra.mxu0 0
    %1468 = vmatprep.subr.bf16.mxu0 0
    %1469 = vmatpush1.bf16.msra.mxu0 0
    %1470 = vmatprep.subr.bf16.mxu0 0
    %1471 = vmatpush1.bf16.msra.mxu0 0
    %1472 = vmatprep.mubr.bf16.mxu0 0
    %1473 = vmatmul.mubr.bf16.gmra.mrb[0].mxu0 %v1438
    %v1474 = vpop.f32.mrb[0].mxu0
    %v1475 = vadd.f32 0.0, %v1474
    %v1476 = vpop.f32.mrb[0].mxu0
    %v1477 = vadd.f32 0.0, %v1476
    %v1478 = vpop.f32.mrb[0].mxu0
    %v1479 = vpop.f32.mrb[0].mxu0
    %1480 = vdwg.mxu0
    %1481 = vmatprep.subr.bf16.mxu0 %v390
    %1482 = vmatpush1.bf16.msra.mxu0 %v389
    %1483 = vmatprep.subr.bf16.mxu0 %v394
    %1484 = vmatpush1.bf16.msra.mxu0 %v393
    %1485 = vmatprep.subr.bf16.mxu0 %v398
    %1486 = vmatpush1.bf16.msra.mxu0 %v397
    %1487 = vmatprep.subr.bf16.mxu0 %v402
    %1488 = vmatpush1.bf16.msra.mxu0 %v401
    %1489 = vmatprep.subr.bf16.mxu0 %v406
    %1490 = vmatpush1.bf16.msra.mxu0 %v405
    %1491 = vmatprep.subr.bf16.mxu0 %v410
    %1492 = vmatpush1.bf16.msra.mxu0 %v409
    %1493 = vmatprep.subr.bf16.mxu0 %v414
    %1494 = vmatpush1.bf16.msra.mxu0 %v413
    %1495 = vmatprep.subr.bf16.mxu0 %v418
    %1496 = vmatpush1.bf16.msra.mxu0 %v417
    %1497 = vmatprep.subr.bf16.mxu0 0
    %1498 = vmatpush1.bf16.msra.mxu0 0
    %1499 = vmatprep.subr.bf16.mxu0 0
    %1500 = vmatpush1.bf16.msra.mxu0 0
    %1501 = vmatprep.subr.bf16.mxu0 0
    %1502 = vmatpush1.bf16.msra.mxu0 0
    %1503 = vmatprep.subr.bf16.mxu0 0
    %1504 = vmatpush1.bf16.msra.mxu0 0
    %1505 = vmatprep.subr.bf16.mxu0 0
    %1506 = vmatpush1.bf16.msra.mxu0 0
    %1507 = vmatprep.subr.bf16.mxu0 0
    %1508 = vmatpush1.bf16.msra.mxu0 0
    %1509 = vmatprep.subr.bf16.mxu0 0
    %1510 = vmatpush1.bf16.msra.mxu0 0
    %1511 = vmatprep.subr.bf16.mxu0 0
    %1512 = vmatpush1.bf16.msra.mxu0 0
    %1513 = vmatprep.mubr.bf16.mxu0 0
    %1514 = vmatmul.mubr.bf16.gmra.mrb[0].mxu0 %v1438
    %v1515 = vpop.f32.mrb[0].mxu0
    %v1516 = vadd.f32 0.0, %v1515
    %v1517 = vpop.f32.mrb[0].mxu0
    %v1518 = vadd.f32 0.0, %v1517
    %v1519 = vpop.f32.mrb[0].mxu0
    %v1520 = vpop.f32.mrb[0].mxu0
    %1521 = vdwg.mxu0
    %v1526 = vcombine.low %v1475, %v1477
    %v1527 = vcombine.low %v1516, %v1518
    %v1529 = vunpack.c.l.s4 1966171168
    %v1530 = vunpack.c.0.s8 %v1529
    %v1531 = vlaneseq
    %v1532 = vshrl.u32 %v1531, 7
    %v1533 = vsub.s32 %v1530, %v1532
    %v1534 = vrot.slane %v1526, %v1533
    %v1536 = vunpack.c.l.s4 1966171168
    %v1537 = vunpack.c.0.s8 %v1536
    %v1538 = vlaneseq
    %v1539 = vshrl.u32 %v1538, 7
    %v1540 = vsub.s32 %v1537, %v1539
    %v1541 = vrot.slane %v1527, %v1540
    %v1542 = vcombine.low %v1534, %v1541
    %v1543 = vcombine.high %v1534, %v1541
    %v1545 = vunpack.c.l.s4 1966171168
    %v1546 = vunpack.c.0.s8 %v1545
    %v1547 = vlaneseq
    %v1548 = vshrl.u32 %v1547, 7
    %v1549 = vsub.s32 %v1546, %v1548
    %v1550 = vrot.slane %v1542, %v1549
    %v1552 = vunpack.c.l.s4 1966171168
    %v1553 = vunpack.c.0.s8 %v1552
    %v1554 = vlaneseq
    %v1555 = vshrl.u32 %v1554, 7
    %v1556 = vsub.s32 %v1553, %v1555
    %v1557 = vrot.slane %v1543, %v1556
    %v1560 = vadd.f32 %v1427, %v1550
    %v1561 = vadd.f32 %v1429, %v1557
    %v1562 = vxor.u32 %v1560, 2147483648
    %v1563 = vxor.u32 %v1561, 2147483648
    %v1564 = vmul.f32 %v1562, 1.442695
    %v1565 = vpow.pop %v1564
    %v1566 = vmul.f32 %v1563, 1.442695
    %v1567 = vpow.pop %v1566
    %v1568 = vadd.f32 %v1565, 1.0
    %v1569 = vadd.f32 %v1567, 1.0
    %v1570 = vrcp.pop %v1568
    %v1571 = vmul.f32 1.0, %v1570
    %v1572 = vrcp.pop %v1569
    %v1573 = vmul.f32 1.0, %v1572
    %v1576 = vrot.slane %v1560, 3
    %v1577 = vrot.slane %v1561, 3
    %v1580 = vtanh.pop %v1576
    %v1581 = vtanh.pop %v1577
    %v1584 = vrot.slane %v1571, 1
    %v1585 = vrot.slane %v1573, 1
    %v1588 = vmul.f32 %v1584, %v1290
    %v1589 = vmul.f32 %v1585, %v1291
    %v1590 = vmul.f32 %v1571, %v1580
    %v1591 = vmul.f32 %v1573, %v1581
    %v1592 = vadd.f32 %v1588, %v1590
    %v1593 = vadd.f32 %v1589, %v1591
    %v1594 = vtanh.pop %v1592
    %v1595 = vtanh.pop %v1593
    %v1596 = vrot.slane %v1571, 2
    %v1597 = vrot.slane %v1573, 2
    %v1600 = vmul.f32 %v1596, %v1594
    %v1601 = vmul.f32 %v1597, %v1595
    %v1604 = vcombine.low %v1600, %v1601
    %v1606 = vunpack.c.l.s4 1966171168
    %v1607 = vunpack.c.0.s8 %v1606
    %v1608 = vlaneseq
    %v1609 = vshrl.u32 %v1608, 7
    %v1610 = vsub.s32 %v1607, %v1609
    %v1611 = vrot.slane %v1604, %v1610
    %v1613 = vunpack.c.l.s4 1966171168
    %v1614 = vunpack.c.0.s8 %v1613
    %v1615 = vlaneseq
    %v1616 = vshrl.u32 %v1615, 7
    %v1617 = vsub.s32 %v1614, %v1616
    %v1618 = vrot.slane %v1611, %v1617
    %v1620 = vpack.c.bf16 %v1618, %v1618
    %v1621 = vpack.c.bf16 %v1425, %v1425
    %1622 = vmatprep.subr.bf16.mxu0 %v890
    %1623 = vmatpush1.bf16.msra.mxu0 %v889
    %1624 = vmatprep.subr.bf16.mxu0 %v894
    %1625 = vmatpush1.bf16.msra.mxu0 %v893
    %1626 = vmatprep.subr.bf16.mxu0 %v898
    %1627 = vmatpush1.bf16.msra.mxu0 %v897
    %1628 = vmatprep.subr.bf16.mxu0 %v902
    %1629 = vmatpush1.bf16.msra.mxu0 %v901
    %1630 = vmatprep.subr.bf16.mxu0 %v906
    %1631 = vmatpush1.bf16.msra.mxu0 %v905
    %1632 = vmatprep.subr.bf16.mxu0 %v910
    %1633 = vmatpush1.bf16.msra.mxu0 %v909
    %1634 = vmatprep.subr.bf16.mxu0 %v914
    %1635 = vmatpush1.bf16.msra.mxu0 %v913
    %1636 = vmatprep.subr.bf16.mxu0 %v918
    %1637 = vmatpush1.bf16.msra.mxu0 %v917
    %1638 = vmatprep.subr.bf16.mxu0 %v922
    %1639 = vmatpush1.bf16.msra.mxu0 %v921
    %1640 = vmatprep.subr.bf16.mxu0 %v926
    %1641 = vmatpush1.bf16.msra.mxu0 %v925
    %1642 = vmatprep.subr.bf16.mxu0 %v930
    %1643 = vmatpush1.bf16.msra.mxu0 %v929
    %1644 = vmatprep.subr.bf16.mxu0 %v934
    %1645 = vmatpush1.bf16.msra.mxu0 %v933
    %1646 = vmatprep.subr.bf16.mxu0 %v938
    %1647 = vmatpush1.bf16.msra.mxu0 %v937
    %1648 = vmatprep.subr.bf16.mxu0 %v942
    %1649 = vmatpush1.bf16.msra.mxu0 %v941
    %1650 = vmatprep.subr.bf16.mxu0 %v946
    %1651 = vmatpush1.bf16.msra.mxu0 %v945
    %1652 = vmatprep.subr.bf16.mxu0 %v950
    %1653 = vmatpush1.bf16.msra.mxu0 %v949
    %1654 = vmatprep.mubr.bf16.mxu0 %v1621
    %1655 = vmatmul.mubr.bf16.gmra.mrb[0].mxu0 %v1620
    %v1656 = vpop.f32.mrb[0].mxu0
    %v1657 = vadd.f32 %v239, %v1656
    %v1658 = vpop.f32.mrb[0].mxu0
    %v1659 = vadd.f32 %v243, %v1658
    %v1660 = vpop.f32.mrb[0].mxu0
    %v1661 = vpop.f32.mrb[0].mxu0
    %1662 = vdwg.mxu0
    %1663 = vmatprep.subr.bf16.mxu0 %v892
    %1664 = vmatpush1.bf16.msra.mxu0 %v891
    %1665 = vmatprep.subr.bf16.mxu0 %v896
    %1666 = vmatpush1.bf16.msra.mxu0 %v895
    %1667 = vmatprep.subr.bf16.mxu0 %v900
    %1668 = vmatpush1.bf16.msra.mxu0 %v899
    %1669 = vmatprep.subr.bf16.mxu0 %v904
    %1670 = vmatpush1.bf16.msra.mxu0 %v903
    %1671 = vmatprep.subr.bf16.mxu0 %v908
    %1672 = vmatpush1.bf16.msra.mxu0 %v907
    %1673 = vmatprep.subr.bf16.mxu0 %v912
    %1674 = vmatpush1.bf16.msra.mxu0 %v911
    %1675 = vmatprep.subr.bf16.mxu0 %v916
    %1676 = vmatpush1.bf16.msra.mxu0 %v915
    %1677 = vmatprep.subr.bf16.mxu0 %v920
    %1678 = vmatpush1.bf16.msra.mxu0 %v919
    %1679 = vmatprep.subr.bf16.mxu0 %v924
    %1680 = vmatpush1.bf16.msra.mxu0 %v923
    %1681 = vmatprep.subr.bf16.mxu0 %v928
    %1682 = vmatpush1.bf16.msra.mxu0 %v927
    %1683 = vmatprep.subr.bf16.mxu0 %v932
    %1684 = vmatpush1.bf16.msra.mxu0 %v931
    %1685 = vmatprep.subr.bf16.mxu0 %v936
    %1686 = vmatpush1.bf16.msra.mxu0 %v935
    %1687 = vmatprep.subr.bf16.mxu0 %v940
    %1688 = vmatpush1.bf16.msra.mxu0 %v939
    %1689 = vmatprep.subr.bf16.mxu0 %v944
    %1690 = vmatpush1.bf16.msra.mxu0 %v943
    %1691 = vmatprep.subr.bf16.mxu0 %v948
    %1692 = vmatpush1.bf16.msra.mxu0 %v947
    %1693 = vmatprep.subr.bf16.mxu0 %v952
    %1694 = vmatpush1.bf16.msra.mxu0 %v951
    %1695 = vmatprep.mubr.bf16.mxu0 %v1621
    %1696 = vmatmul.mubr.bf16.gmra.mrb[0].mxu0 %v1620
    %v1697 = vpop.f32.mrb[0].mxu0
    %v1698 = vadd.f32 %v247, %v1697
    %v1699 = vpop.f32.mrb[0].mxu0
    %v1700 = vadd.f32 %v251, %v1699
    %v1701 = vpop.f32.mrb[0].mxu0
    %v1702 = vpop.f32.mrb[0].mxu0
    %1703 = vdwg.mxu0
    %v1704 = vxor.u32 %v1657, 2147483648
    %v1705 = vxor.u32 %v1659, 2147483648
    %v1706 = vxor.u32 %v1698, 2147483648
    %v1707 = vmul.f32 %v1704, 1.442695
    %v1708 = vpow.pop %v1707
    %v1709 = vmul.f32 %v1705, 1.442695
    %v1710 = vpow.pop %v1709
    %v1711 = vmul.f32 %v1706, 1.442695
    %v1712 = vpow.pop %v1711
    %v1713 = vadd.f32 %v1708, 1.0
    %v1714 = vadd.f32 %v1710, 1.0
    %v1715 = vadd.f32 %v1712, 1.0
    %v1716 = vrcp.pop %v1713
    %v1717 = vmul.f32 1.0, %v1716
    %v1718 = vrcp.pop %v1714
    %v1719 = vmul.f32 1.0, %v1718
    %v1720 = vrcp.pop %v1715
    %v1721 = vmul.f32 1.0, %v1720
    %v1722 = vtanh.pop %v1700
    %v1723 = vmul.f32 %v1719, %v1423
    %v1724 = vmul.f32 %v1717, %v1722
    %v1725 = vadd.f32 %v1723, %v1724
    %v1726 = vtanh.pop %v1725
    %v1727 = vmul.f32 %v1721, %v1726
    %s1728 = scalar_lea.vmem [#allocation2], 3
    %v1729 = vld [vmem:[%s1728] ss:$8 sm:$0xf]
    %s1730 = scalar_lea.vmem [#allocation2], 35
    %v1731 = vld [vmem:[%s1730] ss:$8 sm:$0xf]
    %v1732 = vpack.c.bf16 %v1600, %v1600
    %v1733 = vpack.c.bf16 %v1601, %v1601
    %v1736 = vunpack.c.l.b16 %v1732
    %v1737 = vunpack.c.l.b16 %v1733
    %v1738 = vrot.slane %v1737, 7
    %v1739 = vsel %vm1134, %v1738, %v1736
    %v1740 = vpack.c.b16 %v1739, %v1739
    %1742 = vmatprep.subr.bf16.mxu0 %v388
    %1743 = vmatpush1.bf16.msra.mxu0 %v387
    %1744 = vmatprep.subr.bf16.mxu0 %v392
    %1745 = vmatpush1.bf16.msra.mxu0 %v391
    %1746 = vmatprep.subr.bf16.mxu0 %v396
    %1747 = vmatpush1.bf16.msra.mxu0 %v395
    %1748 = vmatprep.subr.bf16.mxu0 %v400
    %1749 = vmatpush1.bf16.msra.mxu0 %v399
    %1750 = vmatprep.subr.bf16.mxu0 %v404
    %1751 = vmatpush1.bf16.msra.mxu0 %v403
    %1752 = vmatprep.subr.bf16.mxu0 %v408
    %1753 = vmatpush1.bf16.msra.mxu0 %v407
    %1754 = vmatprep.subr.bf16.mxu0 %v412
    %1755 = vmatpush1.bf16.msra.mxu0 %v411
    %1756 = vmatprep.subr.bf16.mxu0 %v416
    %1757 = vmatpush1.bf16.msra.mxu0 %v415
    %1758 = vmatprep.subr.bf16.mxu0 0
    %1759 = vmatpush1.bf16.msra.mxu0 0
    %1760 = vmatprep.subr.bf16.mxu0 0
    %1761 = vmatpush1.bf16.msra.mxu0 0
    %1762 = vmatprep.subr.bf16.mxu0 0
    %1763 = vmatpush1.bf16.msra.mxu0 0
    %1764 = vmatprep.subr.bf16.mxu0 0
    %1765 = vmatpush1.bf16.msra.mxu0 0
    %1766 = vmatprep.subr.bf16.mxu0 0
    %1767 = vmatpush1.bf16.msra.mxu0 0
    %1768 = vmatprep.subr.bf16.mxu0 0
    %1769 = vmatpush1.bf16.msra.mxu0 0
    %1770 = vmatprep.subr.bf16.mxu0 0
    %1771 = vmatpush1.bf16.msra.mxu0 0
    %1772 = vmatprep.subr.bf16.mxu0 0
    %1773 = vmatpush1.bf16.msra.mxu0 0
    %1774 = vmatprep.mubr.bf16.mxu0 0
    %1775 = vmatmul.mubr.bf16.gmra.mrb[0].mxu0 %v1740
    %v1776 = vpop.f32.mrb[0].mxu0
    %v1777 = vadd.f32 0.0, %v1776
    %v1778 = vpop.f32.mrb[0].mxu0
    %v1779 = vadd.f32 0.0, %v1778
    %v1780 = vpop.f32.mrb[0].mxu0
    %v1781 = vpop.f32.mrb[0].mxu0
    %1782 = vdwg.mxu0
    %1783 = vmatprep.subr.bf16.mxu0 %v390
    %1784 = vmatpush1.bf16.msra.mxu0 %v389
    %1785 = vmatprep.subr.bf16.mxu0 %v394
    %1786 = vmatpush1.bf16.msra.mxu0 %v393
    %1787 = vmatprep.subr.bf16.mxu0 %v398
    %1788 = vmatpush1.bf16.msra.mxu0 %v397
    %1789 = vmatprep.subr.bf16.mxu0 %v402
    %1790 = vmatpush1.bf16.msra.mxu0 %v401
    %1791 = vmatprep.subr.bf16.mxu0 %v406
    %1792 = vmatpush1.bf16.msra.mxu0 %v405
    %1793 = vmatprep.subr.bf16.mxu0 %v410
    %1794 = vmatpush1.bf16.msra.mxu0 %v409
    %1795 = vmatprep.subr.bf16.mxu0 %v414
    %1796 = vmatpush1.bf16.msra.mxu0 %v413
    %1797 = vmatprep.subr.bf16.mxu0 %v418
    %1798 = vmatpush1.bf16.msra.mxu0 %v417
    %1799 = vmatprep.subr.bf16.mxu0 0
    %1800 = vmatpush1.bf16.msra.mxu0 0
    %1801 = vmatprep.subr.bf16.mxu0 0
    %1802 = vmatpush1.bf16.msra.mxu0 0
    %1803 = vmatprep.subr.bf16.mxu0 0
    %1804 = vmatpush1.bf16.msra.mxu0 0
    %1805 = vmatprep.subr.bf16.mxu0 0
    %1806 = vmatpush1.bf16.msra.mxu0 0
    %1807 = vmatprep.subr.bf16.mxu0 0
    %1808 = vmatpush1.bf16.msra.mxu0 0
    %1809 = vmatprep.subr.bf16.mxu0 0
    %1810 = vmatpush1.bf16.msra.mxu0 0
    %1811 = vmatprep.subr.bf16.mxu0 0
    %1812 = vmatpush1.bf16.msra.mxu0 0
    %1813 = vmatprep.subr.bf16.mxu0 0
    %1814 = vmatpush1.bf16.msra.mxu0 0
    %1815 = vmatprep.mubr.bf16.mxu0 0
    %1816 = vmatmul.mubr.bf16.gmra.mrb[0].mxu0 %v1740
    %v1817 = vpop.f32.mrb[0].mxu0
    %v1818 = vadd.f32 0.0, %v1817
    %v1819 = vpop.f32.mrb[0].mxu0
    %v1820 = vadd.f32 0.0, %v1819
    %v1821 = vpop.f32.mrb[0].mxu0
    %v1822 = vpop.f32.mrb[0].mxu0
    %1823 = vdwg.mxu0
    %v1828 = vcombine.low %v1777, %v1779
    %v1829 = vcombine.low %v1818, %v1820
    %v1831 = vunpack.c.l.s4 1966171168
    %v1832 = vunpack.c.0.s8 %v1831
    %v1833 = vlaneseq
    %v1834 = vshrl.u32 %v1833, 7
    %v1835 = vsub.s32 %v1832, %v1834
    %v1836 = vrot.slane %v1828, %v1835
    %v1838 = vunpack.c.l.s4 1966171168
    %v1839 = vunpack.c.0.s8 %v1838
    %v1840 = vlaneseq
    %v1841 = vshrl.u32 %v1840, 7
    %v1842 = vsub.s32 %v1839, %v1841
    %v1843 = vrot.slane %v1829, %v1842
    %v1844 = vcombine.low %v1836, %v1843
    %v1845 = vcombine.high %v1836, %v1843
    %v1847 = vunpack.c.l.s4 1966171168
    %v1848 = vunpack.c.0.s8 %v1847
    %v1849 = vlaneseq
    %v1850 = vshrl.u32 %v1849, 7
    %v1851 = vsub.s32 %v1848, %v1850
    %v1852 = vrot.slane %v1844, %v1851
    %v1854 = vunpack.c.l.s4 1966171168
    %v1855 = vunpack.c.0.s8 %v1854
    %v1856 = vlaneseq
    %v1857 = vshrl.u32 %v1856, 7
    %v1858 = vsub.s32 %v1855, %v1857
    %v1859 = vrot.slane %v1845, %v1858
    %v1862 = vadd.f32 %v1729, %v1852
    %v1863 = vadd.f32 %v1731, %v1859
    %v1864 = vxor.u32 %v1862, 2147483648
    %v1865 = vxor.u32 %v1863, 2147483648
    %v1866 = vmul.f32 %v1864, 1.442695
    %v1867 = vpow.pop %v1866
    %v1868 = vmul.f32 %v1865, 1.442695
    %v1869 = vpow.pop %v1868
    %v1870 = vadd.f32 %v1867, 1.0
    %v1871 = vadd.f32 %v1869, 1.0
    %v1872 = vrcp.pop %v1870
    %v1873 = vmul.f32 1.0, %v1872
    %v1874 = vrcp.pop %v1871
    %v1875 = vmul.f32 1.0, %v1874
    %v1878 = vrot.slane %v1862, 3
    %v1879 = vrot.slane %v1863, 3
    %v1882 = vtanh.pop %v1878
    %v1883 = vtanh.pop %v1879
    %v1886 = vrot.slane %v1873, 1
    %v1887 = vrot.slane %v1875, 1
    %v1890 = vmul.f32 %v1886, %v1592
    %v1891 = vmul.f32 %v1887, %v1593
    %v1892 = vmul.f32 %v1873, %v1882
    %v1893 = vmul.f32 %v1875, %v1883
    %v1894 = vadd.f32 %v1890, %v1892
    %v1895 = vadd.f32 %v1891, %v1893
    %v1896 = vtanh.pop %v1894
    %v1897 = vtanh.pop %v1895
    %v1898 = vrot.slane %v1873, 2
    %v1899 = vrot.slane %v1875, 2
    %v1902 = vmul.f32 %v1898, %v1896
    %v1903 = vmul.f32 %v1899, %v1897
    %v1906 = vcombine.low %v1902, %v1903
    %v1908 = vunpack.c.l.s4 1966171168
    %v1909 = vunpack.c.0.s8 %v1908
    %v1910 = vlaneseq
    %v1911 = vshrl.u32 %v1910, 7
    %v1912 = vsub.s32 %v1909, %v1911
    %v1913 = vrot.slane %v1906, %v1912
    %v1915 = vunpack.c.l.s4 1966171168
    %v1916 = vunpack.c.0.s8 %v1915
    %v1917 = vlaneseq
    %v1918 = vshrl.u32 %v1917, 7
    %v1919 = vsub.s32 %v1916, %v1918
    %v1920 = vrot.slane %v1913, %v1919
    %v1922 = vpack.c.bf16 %v1920, %v1920
    %v1923 = vpack.c.bf16 %v1727, %v1727
    %1924 = vmatprep.subr.bf16.mxu0 %v890
    %1925 = vmatpush1.bf16.msra.mxu0 %v889
    %1926 = vmatprep.subr.bf16.mxu0 %v894
    %1927 = vmatpush1.bf16.msra.mxu0 %v893
    %1928 = vmatprep.subr.bf16.mxu0 %v898
    %1929 = vmatpush1.bf16.msra.mxu0 %v897
    %1930 = vmatprep.subr.bf16.mxu0 %v902
    %1931 = vmatpush1.bf16.msra.mxu0 %v901
    %1932 = vmatprep.subr.bf16.mxu0 %v906
    %1933 = vmatpush1.bf16.msra.mxu0 %v905
    %1934 = vmatprep.subr.bf16.mxu0 %v910
    %1935 = vmatpush1.bf16.msra.mxu0 %v909
    %1936 = vmatprep.subr.bf16.mxu0 %v914
    %1937 = vmatpush1.bf16.msra.mxu0 %v913
    %1938 = vmatprep.subr.bf16.mxu0 %v918
    %1939 = vmatpush1.bf16.msra.mxu0 %v917
    %1940 = vmatprep.subr.bf16.mxu0 %v922
    %1941 = vmatpush1.bf16.msra.mxu0 %v921
    %1942 = vmatprep.subr.bf16.mxu0 %v926
    %1943 = vmatpush1.bf16.msra.mxu0 %v925
    %1944 = vmatprep.subr.bf16.mxu0 %v930
    %1945 = vmatpush1.bf16.msra.mxu0 %v929
    %1946 = vmatprep.subr.bf16.mxu0 %v934
    %1947 = vmatpush1.bf16.msra.mxu0 %v933
    %1948 = vmatprep.subr.bf16.mxu0 %v938
    %1949 = vmatpush1.bf16.msra.mxu0 %v937
    %1950 = vmatprep.subr.bf16.mxu0 %v942
    %1951 = vmatpush1.bf16.msra.mxu0 %v941
    %1952 = vmatprep.subr.bf16.mxu0 %v946
    %1953 = vmatpush1.bf16.msra.mxu0 %v945
    %1954 = vmatprep.subr.bf16.mxu0 %v950
    %1955 = vmatpush1.bf16.msra.mxu0 %v949
    %1956 = vmatprep.mubr.bf16.mxu0 %v1923
    %1957 = vmatmul.mubr.bf16.gmra.mrb[0].mxu0 %v1922
    %v1958 = vpop.f32.mrb[0].mxu0
    %v1959 = vadd.f32 %v239, %v1958
    %v1960 = vpop.f32.mrb[0].mxu0
    %v1961 = vadd.f32 %v243, %v1960
    %v1962 = vpop.f32.mrb[0].mxu0
    %v1963 = vpop.f32.mrb[0].mxu0
    %1964 = vdwg.mxu0
    %1965 = vmatprep.subr.bf16.mxu0 %v892
    %1966 = vmatpush1.bf16.msra.mxu0 %v891
    %1967 = vmatprep.subr.bf16.mxu0 %v896
    %1968 = vmatpush1.bf16.msra.mxu0 %v895
    %1969 = vmatprep.subr.bf16.mxu0 %v900
    %1970 = vmatpush1.bf16.msra.mxu0 %v899
    %1971 = vmatprep.subr.bf16.mxu0 %v904
    %1972 = vmatpush1.bf16.msra.mxu0 %v903
    %1973 = vmatprep.subr.bf16.mxu0 %v908
    %1974 = vmatpush1.bf16.msra.mxu0 %v907
    %1975 = vmatprep.subr.bf16.mxu0 %v912
    %1976 = vmatpush1.bf16.msra.mxu0 %v911
    %1977 = vmatprep.subr.bf16.mxu0 %v916
    %1978 = vmatpush1.bf16.msra.mxu0 %v915
    %1979 = vmatprep.subr.bf16.mxu0 %v920
    %1980 = vmatpush1.bf16.msra.mxu0 %v919
    %1981 = vmatprep.subr.bf16.mxu0 %v924
    %1982 = vmatpush1.bf16.msra.mxu0 %v923
    %1983 = vmatprep.subr.bf16.mxu0 %v928
    %1984 = vmatpush1.bf16.msra.mxu0 %v927
    %1985 = vmatprep.subr.bf16.mxu0 %v932
    %1986 = vmatpush1.bf16.msra.mxu0 %v931
    %1987 = vmatprep.subr.bf16.mxu0 %v936
    %1988 = vmatpush1.bf16.msra.mxu0 %v935
    %1989 = vmatprep.subr.bf16.mxu0 %v940
    %1990 = vmatpush1.bf16.msra.mxu0 %v939
    %1991 = vmatprep.subr.bf16.mxu0 %v944
    %1992 = vmatpush1.bf16.msra.mxu0 %v943
    %1993 = vmatprep.subr.bf16.mxu0 %v948
    %1994 = vmatpush1.bf16.msra.mxu0 %v947
    %1995 = vmatprep.subr.bf16.mxu0 %v952
    %1996 = vmatpush1.bf16.msra.mxu0 %v951
    %1997 = vmatprep.mubr.bf16.mxu0 %v1923
    %1998 = vmatmul.mubr.bf16.gmra.mrb[0].mxu0 %v1922
    %v1999 = vpop.f32.mrb[0].mxu0
    %v2000 = vadd.f32 %v247, %v1999
    %v2001 = vpop.f32.mrb[0].mxu0
    %v2002 = vadd.f32 %v251, %v2001
    %v2003 = vpop.f32.mrb[0].mxu0
    %v2004 = vpop.f32.mrb[0].mxu0
    %2005 = vdwg.mxu0
    %v2006 = vxor.u32 %v1959, 2147483648
    %v2007 = vxor.u32 %v1961, 2147483648
    %v2008 = vxor.u32 %v2000, 2147483648
    %v2009 = vmul.f32 %v2006, 1.442695
    %v2010 = vpow.pop %v2009
    %v2011 = vmul.f32 %v2007, 1.442695
    %v2012 = vpow.pop %v2011
    %v2013 = vmul.f32 %v2008, 1.442695
    %v2014 = vpow.pop %v2013
    %v2015 = vadd.f32 %v2010, 1.0
    %v2016 = vadd.f32 %v2012, 1.0
    %v2017 = vadd.f32 %v2014, 1.0
    %v2018 = vrcp.pop %v2015
    %v2019 = vmul.f32 1.0, %v2018
    %v2020 = vrcp.pop %v2016
    %v2021 = vmul.f32 1.0, %v2020
    %v2022 = vrcp.pop %v2017
    %v2023 = vmul.f32 1.0, %v2022
    %v2024 = vtanh.pop %v2002
    %v2025 = vmul.f32 %v2021, %v1725
    %v2026 = vmul.f32 %v2019, %v2024
    %v2027 = vadd.f32 %v2025, %v2026
    %v2028 = vtanh.pop %v2027
    %v2029 = vmul.f32 %v2023, %v2028
    %s2030 = scalar_lea.vmem [#allocation2], 4
    %v2031 = vld [vmem:[%s2030] ss:$8 sm:$0xf]
    %s2032 = scalar_lea.vmem [#allocation2], 36
    %v2033 = vld [vmem:[%s2032] ss:$8 sm:$0xf]
    %v2034 = vpack.c.bf16 %v1902, %v1902
    %v2035 = vpack.c.bf16 %v1903, %v1903
    %v2038 = vunpack.c.l.b16 %v2034
    %v2039 = vunpack.c.l.b16 %v2035
    %v2040 = vrot.slane %v2039, 7
    %v2041 = vsel %vm1134, %v2040, %v2038
    %v2042 = vpack.c.b16 %v2041, %v2041
    %2044 = vmatprep.subr.bf16.mxu0 %v388
    %2045 = vmatpush1.bf16.msra.mxu0 %v387
    %2046 = vmatprep.subr.bf16.mxu0 %v392
    %2047 = vmatpush1.bf16.msra.mxu0 %v391
    %2048 = vmatprep.subr.bf16.mxu0 %v396
    %2049 = vmatpush1.bf16.msra.mxu0 %v395
    %2050 = vmatprep.subr.bf16.mxu0 %v400
    %2051 = vmatpush1.bf16.msra.mxu0 %v399
    %2052 = vmatprep.subr.bf16.mxu0 %v404
    %2053 = vmatpush1.bf16.msra.mxu0 %v403
    %2054 = vmatprep.subr.bf16.mxu0 %v408
    %2055 = vmatpush1.bf16.msra.mxu0 %v407
    %2056 = vmatprep.subr.bf16.mxu0 %v412
    %2057 = vmatpush1.bf16.msra.mxu0 %v411
    %2058 = vmatprep.subr.bf16.mxu0 %v416
    %2059 = vmatpush1.bf16.msra.mxu0 %v415
    %2060 = vmatprep.subr.bf16.mxu0 0
    %2061 = vmatpush1.bf16.msra.mxu0 0
    %2062 = vmatprep.subr.bf16.mxu0 0
    %2063 = vmatpush1.bf16.msra.mxu0 0
    %2064 = vmatprep.subr.bf16.mxu0 0
    %2065 = vmatpush1.bf16.msra.mxu0 0
    %2066 = vmatprep.subr.bf16.mxu0 0
    %2067 = vmatpush1.bf16.msra.mxu0 0
    %2068 = vmatprep.subr.bf16.mxu0 0
    %2069 = vmatpush1.bf16.msra.mxu0 0
    %2070 = vmatprep.subr.bf16.mxu0 0
    %2071 = vmatpush1.bf16.msra.mxu0 0
    %2072 = vmatprep.subr.bf16.mxu0 0
    %2073 = vmatpush1.bf16.msra.mxu0 0
    %2074 = vmatprep.subr.bf16.mxu0 0
    %2075 = vmatpush1.bf16.msra.mxu0 0
    %2076 = vmatprep.mubr.bf16.mxu0 0
    %2077 = vmatmul.mubr.bf16.gmra.mrb[0].mxu0 %v2042
    %v2078 = vpop.f32.mrb[0].mxu0
    %v2079 = vadd.f32 0.0, %v2078
    %v2080 = vpop.f32.mrb[0].mxu0
    %v2081 = vadd.f32 0.0, %v2080
    %v2082 = vpop.f32.mrb[0].mxu0
    %v2083 = vpop.f32.mrb[0].mxu0
    %2084 = vdwg.mxu0
    %2085 = vmatprep.subr.bf16.mxu0 %v390
    %2086 = vmatpush1.bf16.msra.mxu0 %v389
    %2087 = vmatprep.subr.bf16.mxu0 %v394
    %2088 = vmatpush1.bf16.msra.mxu0 %v393
    %2089 = vmatprep.subr.bf16.mxu0 %v398
    %2090 = vmatpush1.bf16.msra.mxu0 %v397
    %2091 = vmatprep.subr.bf16.mxu0 %v402
    %2092 = vmatpush1.bf16.msra.mxu0 %v401
    %2093 = vmatprep.subr.bf16.mxu0 %v406
    %2094 = vmatpush1.bf16.msra.mxu0 %v405
    %2095 = vmatprep.subr.bf16.mxu0 %v410
    %2096 = vmatpush1.bf16.msra.mxu0 %v409
    %2097 = vmatprep.subr.bf16.mxu0 %v414
    %2098 = vmatpush1.bf16.msra.mxu0 %v413
    %2099 = vmatprep.subr.bf16.mxu0 %v418
    %2100 = vmatpush1.bf16.msra.mxu0 %v417
    %2101 = vmatprep.subr.bf16.mxu0 0
    %2102 = vmatpush1.bf16.msra.mxu0 0
    %2103 = vmatprep.subr.bf16.mxu0 0
    %2104 = vmatpush1.bf16.msra.mxu0 0
    %2105 = vmatprep.subr.bf16.mxu0 0
    %2106 = vmatpush1.bf16.msra.mxu0 0
    %2107 = vmatprep.subr.bf16.mxu0 0
    %2108 = vmatpush1.bf16.msra.mxu0 0
    %2109 = vmatprep.subr.bf16.mxu0 0
    %2110 = vmatpush1.bf16.msra.mxu0 0
    %2111 = vmatprep.subr.bf16.mxu0 0
    %2112 = vmatpush1.bf16.msra.mxu0 0
    %2113 = vmatprep.subr.bf16.mxu0 0
    %2114 = vmatpush1.bf16.msra.mxu0 0
    %2115 = vmatprep.subr.bf16.mxu0 0
    %2116 = vmatpush1.bf16.msra.mxu0 0
    %2117 = vmatprep.mubr.bf16.mxu0 0
    %2118 = vmatmul.mubr.bf16.gmra.mrb[0].mxu0 %v2042
    %v2119 = vpop.f32.mrb[0].mxu0
    %v2120 = vadd.f32 0.0, %v2119
    %v2121 = vpop.f32.mrb[0].mxu0
    %v2122 = vadd.f32 0.0, %v2121
    %v2123 = vpop.f32.mrb[0].mxu0
    %v2124 = vpop.f32.mrb[0].mxu0
    %2125 = vdwg.mxu0
    %v2130 = vcombine.low %v2079, %v2081
    %v2131 = vcombine.low %v2120, %v2122
    %v2133 = vunpack.c.l.s4 1966171168
    %v2134 = vunpack.c.0.s8 %v2133
    %v2135 = vlaneseq
    %v2136 = vshrl.u32 %v2135, 7
    %v2137 = vsub.s32 %v2134, %v2136
    %v2138 = vrot.slane %v2130, %v2137
    %v2140 = vunpack.c.l.s4 1966171168
    %v2141 = vunpack.c.0.s8 %v2140
    %v2142 = vlaneseq
    %v2143 = vshrl.u32 %v2142, 7
    %v2144 = vsub.s32 %v2141, %v2143
    %v2145 = vrot.slane %v2131, %v2144
    %v2146 = vcombine.low %v2138, %v2145
    %v2147 = vcombine.high %v2138, %v2145
    %v2149 = vunpack.c.l.s4 1966171168
    %v2150 = vunpack.c.0.s8 %v2149
    %v2151 = vlaneseq
    %v2152 = vshrl.u32 %v2151, 7
    %v2153 = vsub.s32 %v2150, %v2152
    %v2154 = vrot.slane %v2146, %v2153
    %v2156 = vunpack.c.l.s4 1966171168
    %v2157 = vunpack.c.0.s8 %v2156
    %v2158 = vlaneseq
    %v2159 = vshrl.u32 %v2158, 7
    %v2160 = vsub.s32 %v2157, %v2159
    %v2161 = vrot.slane %v2147, %v2160
    %v2164 = vadd.f32 %v2031, %v2154
    %v2165 = vadd.f32 %v2033, %v2161
    %v2166 = vxor.u32 %v2164, 2147483648
    %v2167 = vxor.u32 %v2165, 2147483648
    %v2168 = vmul.f32 %v2166, 1.442695
    %v2169 = vpow.pop %v2168
    %v2170 = vmul.f32 %v2167, 1.442695
    %v2171 = vpow.pop %v2170
    %v2172 = vadd.f32 %v2169, 1.0
    %v2173 = vadd.f32 %v2171, 1.0
    %v2174 = vrcp.pop %v2172
    %v2175 = vmul.f32 1.0, %v2174
    %v2176 = vrcp.pop %v2173
    %v2177 = vmul.f32 1.0, %v2176
    %v2180 = vrot.slane %v2164, 3
    %v2181 = vrot.slane %v2165, 3
    %v2184 = vtanh.pop %v2180
    %v2185 = vtanh.pop %v2181
    %v2188 = vrot.slane %v2175, 1
    %v2189 = vrot.slane %v2177, 1
    %v2192 = vmul.f32 %v2188, %v1894
    %v2193 = vmul.f32 %v2189, %v1895
    %v2194 = vmul.f32 %v2175, %v2184
    %v2195 = vmul.f32 %v2177, %v2185
    %v2196 = vadd.f32 %v2192, %v2194
    %v2197 = vadd.f32 %v2193, %v2195
    %v2198 = vtanh.pop %v2196
    %v2199 = vtanh.pop %v2197
    %v2200 = vrot.slane %v2175, 2
    %v2201 = vrot.slane %v2177, 2
    %v2204 = vmul.f32 %v2200, %v2198
    %v2205 = vmul.f32 %v2201, %v2199
    %v2208 = vcombine.low %v2204, %v2205
    %v2210 = vunpack.c.l.s4 1966171168
    %v2211 = vunpack.c.0.s8 %v2210
    %v2212 = vlaneseq
    %v2213 = vshrl.u32 %v2212, 7
    %v2214 = vsub.s32 %v2211, %v2213
    %v2215 = vrot.slane %v2208, %v2214
    %v2217 = vunpack.c.l.s4 1966171168
    %v2218 = vunpack.c.0.s8 %v2217
    %v2219 = vlaneseq
    %v2220 = vshrl.u32 %v2219, 7
    %v2221 = vsub.s32 %v2218, %v2220
    %v2222 = vrot.slane %v2215, %v2221
    %v2224 = vpack.c.bf16 %v2222, %v2222
    %v2225 = vpack.c.bf16 %v2029, %v2029
    %2226 = vmatprep.subr.bf16.mxu0 %v890
    %2227 = vmatpush1.bf16.msra.mxu0 %v889
    %2228 = vmatprep.subr.bf16.mxu0 %v894
    %2229 = vmatpush1.bf16.msra.mxu0 %v893
    %2230 = vmatprep.subr.bf16.mxu0 %v898
    %2231 = vmatpush1.bf16.msra.mxu0 %v897
    %2232 = vmatprep.subr.bf16.mxu0 %v902
    %2233 = vmatpush1.bf16.msra.mxu0 %v901
    %2234 = vmatprep.subr.bf16.mxu0 %v906
    %2235 = vmatpush1.bf16.msra.mxu0 %v905
    %2236 = vmatprep.subr.bf16.mxu0 %v910
    %2237 = vmatpush1.bf16.msra.mxu0 %v909
    %2238 = vmatprep.subr.bf16.mxu0 %v914
    %2239 = vmatpush1.bf16.msra.mxu0 %v913
    %2240 = vmatprep.subr.bf16.mxu0 %v918
    %2241 = vmatpush1.bf16.msra.mxu0 %v917
    %2242 = vmatprep.subr.bf16.mxu0 %v922
    %2243 = vmatpush1.bf16.msra.mxu0 %v921
    %2244 = vmatprep.subr.bf16.mxu0 %v926
    %2245 = vmatpush1.bf16.msra.mxu0 %v925
    %2246 = vmatprep.subr.bf16.mxu0 %v930
    %2247 = vmatpush1.bf16.msra.mxu0 %v929
    %2248 = vmatprep.subr.bf16.mxu0 %v934
    %2249 = vmatpush1.bf16.msra.mxu0 %v933
    %2250 = vmatprep.subr.bf16.mxu0 %v938
    %2251 = vmatpush1.bf16.msra.mxu0 %v937
    %2252 = vmatprep.subr.bf16.mxu0 %v942
    %2253 = vmatpush1.bf16.msra.mxu0 %v941
    %2254 = vmatprep.subr.bf16.mxu0 %v946
    %2255 = vmatpush1.bf16.msra.mxu0 %v945
    %2256 = vmatprep.subr.bf16.mxu0 %v950
    %2257 = vmatpush1.bf16.msra.mxu0 %v949
    %2258 = vmatprep.mubr.bf16.mxu0 %v2225
    %2259 = vmatmul.mubr.bf16.gmra.mrb[0].mxu0 %v2224
    %v2260 = vpop.f32.mrb[0].mxu0
    %v2261 = vadd.f32 %v239, %v2260
    %v2262 = vpop.f32.mrb[0].mxu0
    %v2263 = vadd.f32 %v243, %v2262
    %v2264 = vpop.f32.mrb[0].mxu0
    %v2265 = vpop.f32.mrb[0].mxu0
    %2266 = vdwg.mxu0
    %2267 = vmatprep.subr.bf16.mxu0 %v892
    %2268 = vmatpush1.bf16.msra.mxu0 %v891
    %2269 = vmatprep.subr.bf16.mxu0 %v896
    %2270 = vmatpush1.bf16.msra.mxu0 %v895
    %2271 = vmatprep.subr.bf16.mxu0 %v900
    %2272 = vmatpush1.bf16.msra.mxu0 %v899
    %2273 = vmatprep.subr.bf16.mxu0 %v904
    %2274 = vmatpush1.bf16.msra.mxu0 %v903
    %2275 = vmatprep.subr.bf16.mxu0 %v908
    %2276 = vmatpush1.bf16.msra.mxu0 %v907
    %2277 = vmatprep.subr.bf16.mxu0 %v912
    %2278 = vmatpush1.bf16.msra.mxu0 %v911
    %2279 = vmatprep.subr.bf16.mxu0 %v916
    %2280 = vmatpush1.bf16.msra.mxu0 %v915
    %2281 = vmatprep.subr.bf16.mxu0 %v920
    %2282 = vmatpush1.bf16.msra.mxu0 %v919
    %2283 = vmatprep.subr.bf16.mxu0 %v924
    %2284 = vmatpush1.bf16.msra.mxu0 %v923
    %2285 = vmatprep.subr.bf16.mxu0 %v928
    %2286 = vmatpush1.bf16.msra.mxu0 %v927
    %2287 = vmatprep.subr.bf16.mxu0 %v932
    %2288 = vmatpush1.bf16.msra.mxu0 %v931
    %2289 = vmatprep.subr.bf16.mxu0 %v936
    %2290 = vmatpush1.bf16.msra.mxu0 %v935
    %2291 = vmatprep.subr.bf16.mxu0 %v940
    %2292 = vmatpush1.bf16.msra.mxu0 %v939
    %2293 = vmatprep.subr.bf16.mxu0 %v944
    %2294 = vmatpush1.bf16.msra.mxu0 %v943
    %2295 = vmatprep.subr.bf16.mxu0 %v948
    %2296 = vmatpush1.bf16.msra.mxu0 %v947
    %2297 = vmatprep.subr.bf16.mxu0 %v952
    %2298 = vmatpush1.bf16.msra.mxu0 %v951
    %2299 = vmatprep.mubr.bf16.mxu0 %v2225
    %2300 = vmatmul.mubr.bf16.gmra.mrb[0].mxu0 %v2224
    %v2301 = vpop.f32.mrb[0].mxu0
    %v2302 = vadd.f32 %v247, %v2301
    %v2303 = vpop.f32.mrb[0].mxu0
    %v2304 = vadd.f32 %v251, %v2303
    %v2305 = vpop.f32.mrb[0].mxu0
    %v2306 = vpop.f32.mrb[0].mxu0
    %2307 = vdwg.mxu0
    %v2308 = vxor.u32 %v2261, 2147483648
    %v2309 = vxor.u32 %v2263, 2147483648
    %v2310 = vxor.u32 %v2302, 2147483648
    %v2311 = vmul.f32 %v2308, 1.442695
    %v2312 = vpow.pop %v2311
    %v2313 = vmul.f32 %v2309, 1.442695
    %v2314 = vpow.pop %v2313
    %v2315 = vmul.f32 %v2310, 1.442695
    %v2316 = vpow.pop %v2315
    %v2317 = vadd.f32 %v2312, 1.0
    %v2318 = vadd.f32 %v2314, 1.0
    %v2319 = vadd.f32 %v2316, 1.0
    %v2320 = vrcp.pop %v2317
    %v2321 = vmul.f32 1.0, %v2320
    %v2322 = vrcp.pop %v2318
    %v2323 = vmul.f32 1.0, %v2322
    %v2324 = vrcp.pop %v2319
    %v2325 = vmul.f32 1.0, %v2324
    %v2326 = vtanh.pop %v2304
    %v2327 = vmul.f32 %v2323, %v2027
    %v2328 = vmul.f32 %v2321, %v2326
    %v2329 = vadd.f32 %v2327, %v2328
    %v2330 = vtanh.pop %v2329
    %v2331 = vmul.f32 %v2325, %v2330
    %s2332 = scalar_lea.vmem [#allocation2], 5
    %v2333 = vld [vmem:[%s2332] ss:$8 sm:$0xf]
    %s2334 = scalar_lea.vmem [#allocation2], 37
    %v2335 = vld [vmem:[%s2334] ss:$8 sm:$0xf]
    %v2336 = vpack.c.bf16 %v2204, %v2204
    %v2337 = vpack.c.bf16 %v2205, %v2205
    %v2340 = vunpack.c.l.b16 %v2336
    %v2341 = vunpack.c.l.b16 %v2337
    %v2342 = vrot.slane %v2341, 7
    %v2343 = vsel %vm1134, %v2342, %v2340
    %v2344 = vpack.c.b16 %v2343, %v2343
    %2346 = vmatprep.subr.bf16.mxu0 %v388
    %2347 = vmatpush1.bf16.msra.mxu0 %v387
    %2348 = vmatprep.subr.bf16.mxu0 %v392
    %2349 = vmatpush1.bf16.msra.mxu0 %v391
    %2350 = vmatprep.subr.bf16.mxu0 %v396
    %2351 = vmatpush1.bf16.msra.mxu0 %v395
    %2352 = vmatprep.subr.bf16.mxu0 %v400
    %2353 = vmatpush1.bf16.msra.mxu0 %v399
    %2354 = vmatprep.subr.bf16.mxu0 %v404
    %2355 = vmatpush1.bf16.msra.mxu0 %v403
    %2356 = vmatprep.subr.bf16.mxu0 %v408
    %2357 = vmatpush1.bf16.msra.mxu0 %v407
    %2358 = vmatprep.subr.bf16.mxu0 %v412
    %2359 = vmatpush1.bf16.msra.mxu0 %v411
    %2360 = vmatprep.subr.bf16.mxu0 %v416
    %2361 = vmatpush1.bf16.msra.mxu0 %v415
    %2362 = vmatprep.subr.bf16.mxu0 0
    %2363 = vmatpush1.bf16.msra.mxu0 0
    %2364 = vmatprep.subr.bf16.mxu0 0
    %2365 = vmatpush1.bf16.msra.mxu0 0
    %2366 = vmatprep.subr.bf16.mxu0 0
    %2367 = vmatpush1.bf16.msra.mxu0 0
    %2368 = vmatprep.subr.bf16.mxu0 0
    %2369 = vmatpush1.bf16.msra.mxu0 0
    %2370 = vmatprep.subr.bf16.mxu0 0
    %2371 = vmatpush1.bf16.msra.mxu0 0
    %2372 = vmatprep.subr.bf16.mxu0 0
    %2373 = vmatpush1.bf16.msra.mxu0 0
    %2374 = vmatprep.subr.bf16.mxu0 0
    %2375 = vmatpush1.bf16.msra.mxu0 0
    %2376 = vmatprep.subr.bf16.mxu0 0
    %2377 = vmatpush1.bf16.msra.mxu0 0
    %2378 = vmatprep.mubr.bf16.mxu0 0
    %2379 = vmatmul.mubr.bf16.gmra.mrb[0].mxu0 %v2344
    %v2380 = vpop.f32.mrb[0].mxu0
    %v2381 = vadd.f32 0.0, %v2380
    %v2382 = vpop.f32.mrb[0].mxu0
    %v2383 = vadd.f32 0.0, %v2382
    %v2384 = vpop.f32.mrb[0].mxu0
    %v2385 = vpop.f32.mrb[0].mxu0
    %2386 = vdwg.mxu0
    %2387 = vmatprep.subr.bf16.mxu0 %v390
    %2388 = vmatpush1.bf16.msra.mxu0 %v389
    %2389 = vmatprep.subr.bf16.mxu0 %v394
    %2390 = vmatpush1.bf16.msra.mxu0 %v393
    %2391 = vmatprep.subr.bf16.mxu0 %v398
    %2392 = vmatpush1.bf16.msra.mxu0 %v397
    %2393 = vmatprep.subr.bf16.mxu0 %v402
    %2394 = vmatpush1.bf16.msra.mxu0 %v401
    %2395 = vmatprep.subr.bf16.mxu0 %v406
    %2396 = vmatpush1.bf16.msra.mxu0 %v405
    %2397 = vmatprep.subr.bf16.mxu0 %v410
    %2398 = vmatpush1.bf16.msra.mxu0 %v409
    %2399 = vmatprep.subr.bf16.mxu0 %v414
    %2400 = vmatpush1.bf16.msra.mxu0 %v413
    %2401 = vmatprep.subr.bf16.mxu0 %v418
    %2402 = vmatpush1.bf16.msra.mxu0 %v417
    %2403 = vmatprep.subr.bf16.mxu0 0
    %2404 = vmatpush1.bf16.msra.mxu0 0
    %2405 = vmatprep.subr.bf16.mxu0 0
    %2406 = vmatpush1.bf16.msra.mxu0 0
    %2407 = vmatprep.subr.bf16.mxu0 0
    %2408 = vmatpush1.bf16.msra.mxu0 0
    %2409 = vmatprep.subr.bf16.mxu0 0
    %2410 = vmatpush1.bf16.msra.mxu0 0
    %2411 = vmatprep.subr.bf16.mxu0 0
    %2412 = vmatpush1.bf16.msra.mxu0 0
    %2413 = vmatprep.subr.bf16.mxu0 0
    %2414 = vmatpush1.bf16.msra.mxu0 0
    %2415 = vmatprep.subr.bf16.mxu0 0
    %2416 = vmatpush1.bf16.msra.mxu0 0
    %2417 = vmatprep.subr.bf16.mxu0 0
    %2418 = vmatpush1.bf16.msra.mxu0 0
    %2419 = vmatprep.mubr.bf16.mxu0 0
    %2420 = vmatmul.mubr.bf16.gmra.mrb[0].mxu0 %v2344
    %v2421 = vpop.f32.mrb[0].mxu0
    %v2422 = vadd.f32 0.0, %v2421
    %v2423 = vpop.f32.mrb[0].mxu0
    %v2424 = vadd.f32 0.0, %v2423
    %v2425 = vpop.f32.mrb[0].mxu0
    %v2426 = vpop.f32.mrb[0].mxu0
    %2427 = vdwg.mxu0
    %v2432 = vcombine.low %v2381, %v2383
    %v2433 = vcombine.low %v2422, %v2424
    %v2435 = vunpack.c.l.s4 1966171168
    %v2436 = vunpack.c.0.s8 %v2435
    %v2437 = vlaneseq
    %v2438 = vshrl.u32 %v2437, 7
    %v2439 = vsub.s32 %v2436, %v2438
    %v2440 = vrot.slane %v2432, %v2439
    %v2442 = vunpack.c.l.s4 1966171168
    %v2443 = vunpack.c.0.s8 %v2442
    %v2444 = vlaneseq
    %v2445 = vshrl.u32 %v2444, 7
    %v2446 = vsub.s32 %v2443, %v2445
    %v2447 = vrot.slane %v2433, %v2446
    %v2448 = vcombine.low %v2440, %v2447
    %v2449 = vcombine.high %v2440, %v2447
    %v2451 = vunpack.c.l.s4 1966171168
    %v2452 = vunpack.c.0.s8 %v2451
    %v2453 = vlaneseq
    %v2454 = vshrl.u32 %v2453, 7
    %v2455 = vsub.s32 %v2452, %v2454
    %v2456 = vrot.slane %v2448, %v2455
    %v2458 = vunpack.c.l.s4 1966171168
    %v2459 = vunpack.c.0.s8 %v2458
    %v2460 = vlaneseq
    %v2461 = vshrl.u32 %v2460, 7
    %v2462 = vsub.s32 %v2459, %v2461
    %v2463 = vrot.slane %v2449, %v2462
    %v2466 = vadd.f32 %v2333, %v2456
    %v2467 = vadd.f32 %v2335, %v2463
    %v2468 = vxor.u32 %v2466, 2147483648
    %v2469 = vxor.u32 %v2467, 2147483648
    %v2470 = vmul.f32 %v2468, 1.442695
    %v2471 = vpow.pop %v2470
    %v2472 = vmul.f32 %v2469, 1.442695
    %v2473 = vpow.pop %v2472
    %v2474 = vadd.f32 %v2471, 1.0
    %v2475 = vadd.f32 %v2473, 1.0
    %v2476 = vrcp.pop %v2474
    %v2477 = vmul.f32 1.0, %v2476
    %v2478 = vrcp.pop %v2475
    %v2479 = vmul.f32 1.0, %v2478
    %v2482 = vrot.slane %v2466, 3
    %v2483 = vrot.slane %v2467, 3
    %v2486 = vtanh.pop %v2482
    %v2487 = vtanh.pop %v2483
    %v2490 = vrot.slane %v2477, 1
    %v2491 = vrot.slane %v2479, 1
    %v2494 = vmul.f32 %v2490, %v2196
    %v2495 = vmul.f32 %v2491, %v2197
    %v2496 = vmul.f32 %v2477, %v2486
    %v2497 = vmul.f32 %v2479, %v2487
    %v2498 = vadd.f32 %v2494, %v2496
    %v2499 = vadd.f32 %v2495, %v2497
    %v2500 = vtanh.pop %v2498
    %v2501 = vtanh.pop %v2499
    %v2502 = vrot.slane %v2477, 2
    %v2503 = vrot.slane %v2479, 2
    %v2506 = vmul.f32 %v2502, %v2500
    %v2507 = vmul.f32 %v2503, %v2501
    %v2510 = vcombine.low %v2506, %v2507
    %v2512 = vunpack.c.l.s4 1966171168
    %v2513 = vunpack.c.0.s8 %v2512
    %v2514 = vlaneseq
    %v2515 = vshrl.u32 %v2514, 7
    %v2516 = vsub.s32 %v2513, %v2515
    %v2517 = vrot.slane %v2510, %v2516
    %v2519 = vunpack.c.l.s4 1966171168
    %v2520 = vunpack.c.0.s8 %v2519
    %v2521 = vlaneseq
    %v2522 = vshrl.u32 %v2521, 7
    %v2523 = vsub.s32 %v2520, %v2522
    %v2524 = vrot.slane %v2517, %v2523
    %v2526 = vpack.c.bf16 %v2524, %v2524
    %v2527 = vpack.c.bf16 %v2331, %v2331
    %2528 = vmatprep.subr.bf16.mxu0 %v890
    %2529 = vmatpush1.bf16.msra.mxu0 %v889
    %2530 = vmatprep.subr.bf16.mxu0 %v894
    %2531 = vmatpush1.bf16.msra.mxu0 %v893
    %2532 = vmatprep.subr.bf16.mxu0 %v898
    %2533 = vmatpush1.bf16.msra.mxu0 %v897
    %2534 = vmatprep.subr.bf16.mxu0 %v902
    %2535 = vmatpush1.bf16.msra.mxu0 %v901
    %2536 = vmatprep.subr.bf16.mxu0 %v906
    %2537 = vmatpush1.bf16.msra.mxu0 %v905
    %2538 = vmatprep.subr.bf16.mxu0 %v910
    %2539 = vmatpush1.bf16.msra.mxu0 %v909
    %2540 = vmatprep.subr.bf16.mxu0 %v914
    %2541 = vmatpush1.bf16.msra.mxu0 %v913
    %2542 = vmatprep.subr.bf16.mxu0 %v918
    %2543 = vmatpush1.bf16.msra.mxu0 %v917
    %2544 = vmatprep.subr.bf16.mxu0 %v922
    %2545 = vmatpush1.bf16.msra.mxu0 %v921
    %2546 = vmatprep.subr.bf16.mxu0 %v926
    %2547 = vmatpush1.bf16.msra.mxu0 %v925
    %2548 = vmatprep.subr.bf16.mxu0 %v930
    %2549 = vmatpush1.bf16.msra.mxu0 %v929
    %2550 = vmatprep.subr.bf16.mxu0 %v934
    %2551 = vmatpush1.bf16.msra.mxu0 %v933
    %2552 = vmatprep.subr.bf16.mxu0 %v938
    %2553 = vmatpush1.bf16.msra.mxu0 %v937
    %2554 = vmatprep.subr.bf16.mxu0 %v942
    %2555 = vmatpush1.bf16.msra.mxu0 %v941
    %2556 = vmatprep.subr.bf16.mxu0 %v946
    %2557 = vmatpush1.bf16.msra.mxu0 %v945
    %2558 = vmatprep.subr.bf16.mxu0 %v950
    %2559 = vmatpush1.bf16.msra.mxu0 %v949
    %2560 = vmatprep.mubr.bf16.mxu0 %v2527
    %2561 = vmatmul.mubr.bf16.gmra.mrb[0].mxu0 %v2526
    %v2562 = vpop.f32.mrb[0].mxu0
    %v2563 = vadd.f32 %v239, %v2562
    %v2564 = vpop.f32.mrb[0].mxu0
    %v2565 = vadd.f32 %v243, %v2564
    %v2566 = vpop.f32.mrb[0].mxu0
    %v2567 = vpop.f32.mrb[0].mxu0
    %2568 = vdwg.mxu0
    %2569 = vmatprep.subr.bf16.mxu0 %v892
    %2570 = vmatpush1.bf16.msra.mxu0 %v891
    %2571 = vmatprep.subr.bf16.mxu0 %v896
    %2572 = vmatpush1.bf16.msra.mxu0 %v895
    %2573 = vmatprep.subr.bf16.mxu0 %v900
    %2574 = vmatpush1.bf16.msra.mxu0 %v899
    %2575 = vmatprep.subr.bf16.mxu0 %v904
    %2576 = vmatpush1.bf16.msra.mxu0 %v903
    %2577 = vmatprep.subr.bf16.mxu0 %v908
    %2578 = vmatpush1.bf16.msra.mxu0 %v907
    %2579 = vmatprep.subr.bf16.mxu0 %v912
    %2580 = vmatpush1.bf16.msra.mxu0 %v911
    %2581 = vmatprep.subr.bf16.mxu0 %v916
    %2582 = vmatpush1.bf16.msra.mxu0 %v915
    %2583 = vmatprep.subr.bf16.mxu0 %v920
    %2584 = vmatpush1.bf16.msra.mxu0 %v919
    %2585 = vmatprep.subr.bf16.mxu0 %v924
    %2586 = vmatpush1.bf16.msra.mxu0 %v923
    %2587 = vmatprep.subr.bf16.mxu0 %v928
    %2588 = vmatpush1.bf16.msra.mxu0 %v927
    %2589 = vmatprep.subr.bf16.mxu0 %v932
    %2590 = vmatpush1.bf16.msra.mxu0 %v931
    %2591 = vmatprep.subr.bf16.mxu0 %v936
    %2592 = vmatpush1.bf16.msra.mxu0 %v935
    %2593 = vmatprep.subr.bf16.mxu0 %v940
    %2594 = vmatpush1.bf16.msra.mxu0 %v939
    %2595 = vmatprep.subr.bf16.mxu0 %v944
    %2596 = vmatpush1.bf16.msra.mxu0 %v943
    %2597 = vmatprep.subr.bf16.mxu0 %v948
    %2598 = vmatpush1.bf16.msra.mxu0 %v947
    %2599 = vmatprep.subr.bf16.mxu0 %v952
    %2600 = vmatpush1.bf16.msra.mxu0 %v951
    %2601 = vmatprep.mubr.bf16.mxu0 %v2527
    %2602 = vmatmul.mubr.bf16.gmra.mrb[0].mxu0 %v2526
    %v2603 = vpop.f32.mrb[0].mxu0
    %v2604 = vadd.f32 %v247, %v2603
    %v2605 = vpop.f32.mrb[0].mxu0
    %v2606 = vadd.f32 %v251, %v2605
    %v2607 = vpop.f32.mrb[0].mxu0
    %v2608 = vpop.f32.mrb[0].mxu0
    %2609 = vdwg.mxu0
    %v2610 = vxor.u32 %v2563, 2147483648
    %v2611 = vxor.u32 %v2565, 2147483648
    %v2612 = vxor.u32 %v2604, 2147483648
    %v2613 = vmul.f32 %v2610, 1.442695
    %v2614 = vpow.pop %v2613
    %v2615 = vmul.f32 %v2611, 1.442695
    %v2616 = vpow.pop %v2615
    %v2617 = vmul.f32 %v2612, 1.442695
    %v2618 = vpow.pop %v2617
    %v2619 = vadd.f32 %v2614, 1.0
    %v2620 = vadd.f32 %v2616, 1.0
    %v2621 = vadd.f32 %v2618, 1.0
    %v2622 = vrcp.pop %v2619
    %v2623 = vmul.f32 1.0, %v2622
    %v2624 = vrcp.pop %v2620
    %v2625 = vmul.f32 1.0, %v2624
    %v2626 = vrcp.pop %v2621
    %v2627 = vmul.f32 1.0, %v2626
    %v2628 = vtanh.pop %v2606
    %v2629 = vmul.f32 %v2625, %v2329
    %v2630 = vmul.f32 %v2623, %v2628
    %v2631 = vadd.f32 %v2629, %v2630
    %v2632 = vtanh.pop %v2631
    %v2633 = vmul.f32 %v2627, %v2632
    %s2634 = scalar_lea.vmem [#allocation2], 6
    %v2635 = vld [vmem:[%s2634] ss:$8 sm:$0xf]
    %s2636 = scalar_lea.vmem [#allocation2], 38
    %v2637 = vld [vmem:[%s2636] ss:$8 sm:$0xf]
    %v2638 = vpack.c.bf16 %v2506, %v2506
    %v2639 = vpack.c.bf16 %v2507, %v2507
    %v2642 = vunpack.c.l.b16 %v2638
    %v2643 = vunpack.c.l.b16 %v2639
    %v2644 = vrot.slane %v2643, 7
    %v2645 = vsel %vm1134, %v2644, %v2642
    %v2646 = vpack.c.b16 %v2645, %v2645
    %2648 = vmatprep.subr.bf16.mxu0 %v388
    %2649 = vmatpush1.bf16.msra.mxu0 %v387
    %2650 = vmatprep.subr.bf16.mxu0 %v392
    %2651 = vmatpush1.bf16.msra.mxu0 %v391
    %2652 = vmatprep.subr.bf16.mxu0 %v396
    %2653 = vmatpush1.bf16.msra.mxu0 %v395
    %2654 = vmatprep.subr.bf16.mxu0 %v400
    %2655 = vmatpush1.bf16.msra.mxu0 %v399
    %2656 = vmatprep.subr.bf16.mxu0 %v404
    %2657 = vmatpush1.bf16.msra.mxu0 %v403
    %2658 = vmatprep.subr.bf16.mxu0 %v408
    %2659 = vmatpush1.bf16.msra.mxu0 %v407
    %2660 = vmatprep.subr.bf16.mxu0 %v412
    %2661 = vmatpush1.bf16.msra.mxu0 %v411
    %2662 = vmatprep.subr.bf16.mxu0 %v416
    %2663 = vmatpush1.bf16.msra.mxu0 %v415
    %2664 = vmatprep.subr.bf16.mxu0 0
    %2665 = vmatpush1.bf16.msra.mxu0 0
    %2666 = vmatprep.subr.bf16.mxu0 0
    %2667 = vmatpush1.bf16.msra.mxu0 0
    %2668 = vmatprep.subr.bf16.mxu0 0
    %2669 = vmatpush1.bf16.msra.mxu0 0
    %2670 = vmatprep.subr.bf16.mxu0 0
    %2671 = vmatpush1.bf16.msra.mxu0 0
    %2672 = vmatprep.subr.bf16.mxu0 0
    %2673 = vmatpush1.bf16.msra.mxu0 0
    %2674 = vmatprep.subr.bf16.mxu0 0
    %2675 = vmatpush1.bf16.msra.mxu0 0
    %2676 = vmatprep.subr.bf16.mxu0 0
    %2677 = vmatpush1.bf16.msra.mxu0 0
    %2678 = vmatprep.subr.bf16.mxu0 0
    %2679 = vmatpush1.bf16.msra.mxu0 0
    %2680 = vmatprep.mubr.bf16.mxu0 0
    %2681 = vmatmul.mubr.bf16.gmra.mrb[0].mxu0 %v2646
    %v2682 = vpop.f32.mrb[0].mxu0
    %v2683 = vadd.f32 0.0, %v2682
    %v2684 = vpop.f32.mrb[0].mxu0
    %v2685 = vadd.f32 0.0, %v2684
    %v2686 = vpop.f32.mrb[0].mxu0
    %v2687 = vpop.f32.mrb[0].mxu0
    %2688 = vdwg.mxu0
    %2689 = vmatprep.subr.bf16.mxu0 %v390
    %2690 = vmatpush1.bf16.msra.mxu0 %v389
    %2691 = vmatprep.subr.bf16.mxu0 %v394
    %2692 = vmatpush1.bf16.msra.mxu0 %v393
    %2693 = vmatprep.subr.bf16.mxu0 %v398
    %2694 = vmatpush1.bf16.msra.mxu0 %v397
    %2695 = vmatprep.subr.bf16.mxu0 %v402
    %2696 = vmatpush1.bf16.msra.mxu0 %v401
    %2697 = vmatprep.subr.bf16.mxu0 %v406
    %2698 = vmatpush1.bf16.msra.mxu0 %v405
    %2699 = vmatprep.subr.bf16.mxu0 %v410
    %2700 = vmatpush1.bf16.msra.mxu0 %v409
    %2701 = vmatprep.subr.bf16.mxu0 %v414
    %2702 = vmatpush1.bf16.msra.mxu0 %v413
    %2703 = vmatprep.subr.bf16.mxu0 %v418
    %2704 = vmatpush1.bf16.msra.mxu0 %v417
    %2705 = vmatprep.subr.bf16.mxu0 0
    %2706 = vmatpush1.bf16.msra.mxu0 0
    %2707 = vmatprep.subr.bf16.mxu0 0
    %2708 = vmatpush1.bf16.msra.mxu0 0
    %2709 = vmatprep.subr.bf16.mxu0 0
    %2710 = vmatpush1.bf16.msra.mxu0 0
    %2711 = vmatprep.subr.bf16.mxu0 0
    %2712 = vmatpush1.bf16.msra.mxu0 0
    %2713 = vmatprep.subr.bf16.mxu0 0
    %2714 = vmatpush1.bf16.msra.mxu0 0
    %2715 = vmatprep.subr.bf16.mxu0 0
    %2716 = vmatpush1.bf16.msra.mxu0 0
    %2717 = vmatprep.subr.bf16.mxu0 0
    %2718 = vmatpush1.bf16.msra.mxu0 0
    %2719 = vmatprep.subr.bf16.mxu0 0
    %2720 = vmatpush1.bf16.msra.mxu0 0
    %2721 = vmatprep.mubr.bf16.mxu0 0
    %2722 = vmatmul.mubr.bf16.gmra.mrb[0].mxu0 %v2646
    %v2723 = vpop.f32.mrb[0].mxu0
    %v2724 = vadd.f32 0.0, %v2723
    %v2725 = vpop.f32.mrb[0].mxu0
    %v2726 = vadd.f32 0.0, %v2725
    %v2727 = vpop.f32.mrb[0].mxu0
    %v2728 = vpop.f32.mrb[0].mxu0
    %2729 = vdwg.mxu0
    %v2734 = vcombine.low %v2683, %v2685
    %v2735 = vcombine.low %v2724, %v2726
    %v2737 = vunpack.c.l.s4 1966171168
    %v2738 = vunpack.c.0.s8 %v2737
    %v2739 = vlaneseq
    %v2740 = vshrl.u32 %v2739, 7
    %v2741 = vsub.s32 %v2738, %v2740
    %v2742 = vrot.slane %v2734, %v2741
    %v2744 = vunpack.c.l.s4 1966171168
    %v2745 = vunpack.c.0.s8 %v2744
    %v2746 = vlaneseq
    %v2747 = vshrl.u32 %v2746, 7
    %v2748 = vsub.s32 %v2745, %v2747
    %v2749 = vrot.slane %v2735, %v2748
    %v2750 = vcombine.low %v2742, %v2749
    %v2751 = vcombine.high %v2742, %v2749
    %v2753 = vunpack.c.l.s4 1966171168
    %v2754 = vunpack.c.0.s8 %v2753
    %v2755 = vlaneseq
    %v2756 = vshrl.u32 %v2755, 7
    %v2757 = vsub.s32 %v2754, %v2756
    %v2758 = vrot.slane %v2750, %v2757
    %v2760 = vunpack.c.l.s4 1966171168
    %v2761 = vunpack.c.0.s8 %v2760
    %v2762 = vlaneseq
    %v2763 = vshrl.u32 %v2762, 7
    %v2764 = vsub.s32 %v2761, %v2763
    %v2765 = vrot.slane %v2751, %v2764
    %v2768 = vadd.f32 %v2635, %v2758
    %v2769 = vadd.f32 %v2637, %v2765
    %v2770 = vxor.u32 %v2768, 2147483648
    %v2771 = vxor.u32 %v2769, 2147483648
    %v2772 = vmul.f32 %v2770, 1.442695
    %v2773 = vpow.pop %v2772
    %v2774 = vmul.f32 %v2771, 1.442695
    %v2775 = vpow.pop %v2774
    %v2776 = vadd.f32 %v2773, 1.0
    %v2777 = vadd.f32 %v2775, 1.0
    %v2778 = vrcp.pop %v2776
    %v2779 = vmul.f32 1.0, %v2778
    %v2780 = vrcp.pop %v2777
    %v2781 = vmul.f32 1.0, %v2780
    %v2784 = vrot.slane %v2768, 3
    %v2785 = vrot.slane %v2769, 3
    %v2788 = vtanh.pop %v2784
    %v2789 = vtanh.pop %v2785
    %v2792 = vrot.slane %v2779, 1
    %v2793 = vrot.slane %v2781, 1
    %v2796 = vmul.f32 %v2792, %v2498
    %v2797 = vmul.f32 %v2793, %v2499
    %v2798 = vmul.f32 %v2779, %v2788
    %v2799 = vmul.f32 %v2781, %v2789
    %v2800 = vadd.f32 %v2796, %v2798
    %v2801 = vadd.f32 %v2797, %v2799
    %v2802 = vtanh.pop %v2800
    %v2803 = vtanh.pop %v2801
    %v2804 = vrot.slane %v2779, 2
    %v2805 = vrot.slane %v2781, 2
    %v2808 = vmul.f32 %v2804, %v2802
    %v2809 = vmul.f32 %v2805, %v2803
    %v2812 = vcombine.low %v2808, %v2809
    %v2814 = vunpack.c.l.s4 1966171168
    %v2815 = vunpack.c.0.s8 %v2814
    %v2816 = vlaneseq
    %v2817 = vshrl.u32 %v2816, 7
    %v2818 = vsub.s32 %v2815, %v2817
    %v2819 = vrot.slane %v2812, %v2818
    %v2821 = vunpack.c.l.s4 1966171168
    %v2822 = vunpack.c.0.s8 %v2821
    %v2823 = vlaneseq
    %v2824 = vshrl.u32 %v2823, 7
    %v2825 = vsub.s32 %v2822, %v2824
    %v2826 = vrot.slane %v2819, %v2825
    %v2828 = vpack.c.bf16 %v2826, %v2826
    %v2829 = vpack.c.bf16 %v2633, %v2633
    %2830 = vmatprep.subr.bf16.mxu0 %v890
    %2831 = vmatpush1.bf16.msra.mxu0 %v889
    %2832 = vmatprep.subr.bf16.mxu0 %v894
    %2833 = vmatpush1.bf16.msra.mxu0 %v893
    %2834 = vmatprep.subr.bf16.mxu0 %v898
    %2835 = vmatpush1.bf16.msra.mxu0 %v897
    %2836 = vmatprep.subr.bf16.mxu0 %v902
    %2837 = vmatpush1.bf16.msra.mxu0 %v901
    %2838 = vmatprep.subr.bf16.mxu0 %v906
    %2839 = vmatpush1.bf16.msra.mxu0 %v905
    %2840 = vmatprep.subr.bf16.mxu0 %v910
    %2841 = vmatpush1.bf16.msra.mxu0 %v909
    %2842 = vmatprep.subr.bf16.mxu0 %v914
    %2843 = vmatpush1.bf16.msra.mxu0 %v913
    %2844 = vmatprep.subr.bf16.mxu0 %v918
    %2845 = vmatpush1.bf16.msra.mxu0 %v917
    %2846 = vmatprep.subr.bf16.mxu0 %v922
    %2847 = vmatpush1.bf16.msra.mxu0 %v921
    %2848 = vmatprep.subr.bf16.mxu0 %v926
    %2849 = vmatpush1.bf16.msra.mxu0 %v925
    %2850 = vmatprep.subr.bf16.mxu0 %v930
    %2851 = vmatpush1.bf16.msra.mxu0 %v929
    %2852 = vmatprep.subr.bf16.mxu0 %v934
    %2853 = vmatpush1.bf16.msra.mxu0 %v933
    %2854 = vmatprep.subr.bf16.mxu0 %v938
    %2855 = vmatpush1.bf16.msra.mxu0 %v937
    %2856 = vmatprep.subr.bf16.mxu0 %v942
    %2857 = vmatpush1.bf16.msra.mxu0 %v941
    %2858 = vmatprep.subr.bf16.mxu0 %v946
    %2859 = vmatpush1.bf16.msra.mxu0 %v945
    %2860 = vmatprep.subr.bf16.mxu0 %v950
    %2861 = vmatpush1.bf16.msra.mxu0 %v949
    %2862 = vmatprep.mubr.bf16.mxu0 %v2829
    %2863 = vmatmul.mubr.bf16.gmra.mrb[0].mxu0 %v2828
    %v2864 = vpop.f32.mrb[0].mxu0
    %v2865 = vadd.f32 %v239, %v2864
    %v2866 = vpop.f32.mrb[0].mxu0
    %v2867 = vadd.f32 %v243, %v2866
    %v2868 = vpop.f32.mrb[0].mxu0
    %v2869 = vpop.f32.mrb[0].mxu0
    %2870 = vdwg.mxu0
    %2871 = vmatprep.subr.bf16.mxu0 %v892
    %2872 = vmatpush1.bf16.msra.mxu0 %v891
    %2873 = vmatprep.subr.bf16.mxu0 %v896
    %2874 = vmatpush1.bf16.msra.mxu0 %v895
    %2875 = vmatprep.subr.bf16.mxu0 %v900
    %2876 = vmatpush1.bf16.msra.mxu0 %v899
    %2877 = vmatprep.subr.bf16.mxu0 %v904
    %2878 = vmatpush1.bf16.msra.mxu0 %v903
    %2879 = vmatprep.subr.bf16.mxu0 %v908
    %2880 = vmatpush1.bf16.msra.mxu0 %v907
    %2881 = vmatprep.subr.bf16.mxu0 %v912
    %2882 = vmatpush1.bf16.msra.mxu0 %v911
    %2883 = vmatprep.subr.bf16.mxu0 %v916
    %2884 = vmatpush1.bf16.msra.mxu0 %v915
    %2885 = vmatprep.subr.bf16.mxu0 %v920
    %2886 = vmatpush1.bf16.msra.mxu0 %v919
    %2887 = vmatprep.subr.bf16.mxu0 %v924
    %2888 = vmatpush1.bf16.msra.mxu0 %v923
    %2889 = vmatprep.subr.bf16.mxu0 %v928
    %2890 = vmatpush1.bf16.msra.mxu0 %v927
    %2891 = vmatprep.subr.bf16.mxu0 %v932
    %2892 = vmatpush1.bf16.msra.mxu0 %v931
    %2893 = vmatprep.subr.bf16.mxu0 %v936
    %2894 = vmatpush1.bf16.msra.mxu0 %v935
    %2895 = vmatprep.subr.bf16.mxu0 %v940
    %2896 = vmatpush1.bf16.msra.mxu0 %v939
    %2897 = vmatprep.subr.bf16.mxu0 %v944
    %2898 = vmatpush1.bf16.msra.mxu0 %v943
    %2899 = vmatprep.subr.bf16.mxu0 %v948
    %2900 = vmatpush1.bf16.msra.mxu0 %v947
    %2901 = vmatprep.subr.bf16.mxu0 %v952
    %2902 = vmatpush1.bf16.msra.mxu0 %v951
    %2903 = vmatprep.mubr.bf16.mxu0 %v2829
    %2904 = vmatmul.mubr.bf16.gmra.mrb[0].mxu0 %v2828
    %v2905 = vpop.f32.mrb[0].mxu0
    %v2906 = vadd.f32 %v247, %v2905
    %v2907 = vpop.f32.mrb[0].mxu0
    %v2908 = vadd.f32 %v251, %v2907
    %v2909 = vpop.f32.mrb[0].mxu0
    %v2910 = vpop.f32.mrb[0].mxu0
    %2911 = vdwg.mxu0
    %v2912 = vxor.u32 %v2865, 2147483648
    %v2913 = vxor.u32 %v2867, 2147483648
    %v2914 = vxor.u32 %v2906, 2147483648
    %v2915 = vmul.f32 %v2912, 1.442695
    %v2916 = vpow.pop %v2915
    %v2917 = vmul.f32 %v2913, 1.442695
    %v2918 = vpow.pop %v2917
    %v2919 = vmul.f32 %v2914, 1.442695
    %v2920 = vpow.pop %v2919
    %v2921 = vadd.f32 %v2916, 1.0
    %v2922 = vadd.f32 %v2918, 1.0
    %v2923 = vadd.f32 %v2920, 1.0
    %v2924 = vrcp.pop %v2921
    %v2925 = vmul.f32 1.0, %v2924
    %v2926 = vrcp.pop %v2922
    %v2927 = vmul.f32 1.0, %v2926
    %v2928 = vrcp.pop %v2923
    %v2929 = vmul.f32 1.0, %v2928
    %v2930 = vtanh.pop %v2908
    %v2931 = vmul.f32 %v2927, %v2631
    %v2932 = vmul.f32 %v2925, %v2930
    %v2933 = vadd.f32 %v2931, %v2932
    %v2934 = vtanh.pop %v2933
    %v2935 = vmul.f32 %v2929, %v2934
    %s2936 = scalar_lea.vmem [#allocation2], 7
    %v2937 = vld [vmem:[%s2936] ss:$8 sm:$0xf]
    %s2938 = scalar_lea.vmem [#allocation2], 39
    %v2939 = vld [vmem:[%s2938] ss:$8 sm:$0xf]
    %v2940 = vpack.c.bf16 %v2808, %v2808
    %v2941 = vpack.c.bf16 %v2809, %v2809
    %v2944 = vunpack.c.l.b16 %v2940
    %v2945 = vunpack.c.l.b16 %v2941
    %v2946 = vrot.slane %v2945, 7
    %v2947 = vsel %vm1134, %v2946, %v2944
    %v2948 = vpack.c.b16 %v2947, %v2947
    %2950 = vmatprep.subr.bf16.mxu0 %v388
    %2951 = vmatpush1.bf16.msra.mxu0 %v387
    %2952 = vmatprep.subr.bf16.mxu0 %v392
    %2953 = vmatpush1.bf16.msra.mxu0 %v391
    %2954 = vmatprep.subr.bf16.mxu0 %v396
    %2955 = vmatpush1.bf16.msra.mxu0 %v395
    %2956 = vmatprep.subr.bf16.mxu0 %v400
    %2957 = vmatpush1.bf16.msra.mxu0 %v399
    %2958 = vmatprep.subr.bf16.mxu0 %v404
    %2959 = vmatpush1.bf16.msra.mxu0 %v403
    %2960 = vmatprep.subr.bf16.mxu0 %v408
    %2961 = vmatpush1.bf16.msra.mxu0 %v407
    %2962 = vmatprep.subr.bf16.mxu0 %v412
    %2963 = vmatpush1.bf16.msra.mxu0 %v411
    %2964 = vmatprep.subr.bf16.mxu0 %v416
    %2965 = vmatpush1.bf16.msra.mxu0 %v415
    %2966 = vmatprep.subr.bf16.mxu0 0
    %2967 = vmatpush1.bf16.msra.mxu0 0
    %2968 = vmatprep.subr.bf16.mxu0 0
    %2969 = vmatpush1.bf16.msra.mxu0 0
    %2970 = vmatprep.subr.bf16.mxu0 0
    %2971 = vmatpush1.bf16.msra.mxu0 0
    %2972 = vmatprep.subr.bf16.mxu0 0
    %2973 = vmatpush1.bf16.msra.mxu0 0
    %2974 = vmatprep.subr.bf16.mxu0 0
    %2975 = vmatpush1.bf16.msra.mxu0 0
    %2976 = vmatprep.subr.bf16.mxu0 0
    %2977 = vmatpush1.bf16.msra.mxu0 0
    %2978 = vmatprep.subr.bf16.mxu0 0
    %2979 = vmatpush1.bf16.msra.mxu0 0
    %2980 = vmatprep.subr.bf16.mxu0 0
    %2981 = vmatpush1.bf16.msra.mxu0 0
    %2982 = vmatprep.mubr.bf16.mxu0 0
    %2983 = vmatmul.mubr.bf16.gmra.mrb[0].mxu0 %v2948
    %v2984 = vpop.f32.mrb[0].mxu0
    %v2985 = vadd.f32 0.0, %v2984
    %v2986 = vpop.f32.mrb[0].mxu0
    %v2987 = vadd.f32 0.0, %v2986
    %v2988 = vpop.f32.mrb[0].mxu0
    %v2989 = vpop.f32.mrb[0].mxu0
    %2990 = vdwg.mxu0
    %2991 = vmatprep.subr.bf16.mxu0 %v390
    %2992 = vmatpush1.bf16.msra.mxu0 %v389
    %2993 = vmatprep.subr.bf16.mxu0 %v394
    %2994 = vmatpush1.bf16.msra.mxu0 %v393
    %2995 = vmatprep.subr.bf16.mxu0 %v398
    %2996 = vmatpush1.bf16.msra.mxu0 %v397
    %2997 = vmatprep.subr.bf16.mxu0 %v402
    %2998 = vmatpush1.bf16.msra.mxu0 %v401
    %2999 = vmatprep.subr.bf16.mxu0 %v406
    %3000 = vmatpush1.bf16.msra.mxu0 %v405
    %3001 = vmatprep.subr.bf16.mxu0 %v410
    %3002 = vmatpush1.bf16.msra.mxu0 %v409
    %3003 = vmatprep.subr.bf16.mxu0 %v414
    %3004 = vmatpush1.bf16.msra.mxu0 %v413
    %3005 = vmatprep.subr.bf16.mxu0 %v418
    %3006 = vmatpush1.bf16.msra.mxu0 %v417
    %3007 = vmatprep.subr.bf16.mxu0 0
    %3008 = vmatpush1.bf16.msra.mxu0 0
    %3009 = vmatprep.subr.bf16.mxu0 0
    %3010 = vmatpush1.bf16.msra.mxu0 0
    %3011 = vmatprep.subr.bf16.mxu0 0
    %3012 = vmatpush1.bf16.msra.mxu0 0
    %3013 = vmatprep.subr.bf16.mxu0 0
    %3014 = vmatpush1.bf16.msra.mxu0 0
    %3015 = vmatprep.subr.bf16.mxu0 0
    %3016 = vmatpush1.bf16.msra.mxu0 0
    %3017 = vmatprep.subr.bf16.mxu0 0
    %3018 = vmatpush1.bf16.msra.mxu0 0
    %3019 = vmatprep.subr.bf16.mxu0 0
    %3020 = vmatpush1.bf16.msra.mxu0 0
    %3021 = vmatprep.subr.bf16.mxu0 0
    %3022 = vmatpush1.bf16.msra.mxu0 0
    %3023 = vmatprep.mubr.bf16.mxu0 0
    %3024 = vmatmul.mubr.bf16.gmra.mrb[0].mxu0 %v2948
    %v3025 = vpop.f32.mrb[0].mxu0
    %v3026 = vadd.f32 0.0, %v3025
    %v3027 = vpop.f32.mrb[0].mxu0
    %v3028 = vadd.f32 0.0, %v3027
    %v3029 = vpop.f32.mrb[0].mxu0
    %v3030 = vpop.f32.mrb[0].mxu0
    %3031 = vdwg.mxu0
    %v3036 = vcombine.low %v2985, %v2987
    %v3037 = vcombine.low %v3026, %v3028
    %v3039 = vunpack.c.l.s4 1966171168
    %v3040 = vunpack.c.0.s8 %v3039
    %v3041 = vlaneseq
    %v3042 = vshrl.u32 %v3041, 7
    %v3043 = vsub.s32 %v3040, %v3042
    %v3044 = vrot.slane %v3036, %v3043
    %v3046 = vunpack.c.l.s4 1966171168
    %v3047 = vunpack.c.0.s8 %v3046
    %v3048 = vlaneseq
    %v3049 = vshrl.u32 %v3048, 7
    %v3050 = vsub.s32 %v3047, %v3049
    %v3051 = vrot.slane %v3037, %v3050
    %v3052 = vcombine.low %v3044, %v3051
    %v3053 = vcombine.high %v3044, %v3051
    %v3055 = vunpack.c.l.s4 1966171168
    %v3056 = vunpack.c.0.s8 %v3055
    %v3057 = vlaneseq
    %v3058 = vshrl.u32 %v3057, 7
    %v3059 = vsub.s32 %v3056, %v3058
    %v3060 = vrot.slane %v3052, %v3059
    %v3062 = vunpack.c.l.s4 1966171168
    %v3063 = vunpack.c.0.s8 %v3062
    %v3064 = vlaneseq
    %v3065 = vshrl.u32 %v3064, 7
    %v3066 = vsub.s32 %v3063, %v3065
    %v3067 = vrot.slane %v3053, %v3066
    %v3070 = vadd.f32 %v2937, %v3060
    %v3071 = vadd.f32 %v2939, %v3067
    %v3072 = vxor.u32 %v3070, 2147483648
    %v3073 = vxor.u32 %v3071, 2147483648
    %v3074 = vmul.f32 %v3072, 1.442695
    %v3075 = vpow.pop %v3074
    %v3076 = vmul.f32 %v3073, 1.442695
    %v3077 = vpow.pop %v3076
    %v3078 = vadd.f32 %v3075, 1.0
    %v3079 = vadd.f32 %v3077, 1.0
    %v3080 = vrcp.pop %v3078
    %v3081 = vmul.f32 1.0, %v3080
    %v3082 = vrcp.pop %v3079
    %v3083 = vmul.f32 1.0, %v3082
    %v3086 = vrot.slane %v3070, 3
    %v3087 = vrot.slane %v3071, 3
    %v3090 = vtanh.pop %v3086
    %v3091 = vtanh.pop %v3087
    %v3094 = vrot.slane %v3081, 1
    %v3095 = vrot.slane %v3083, 1
    %v3098 = vmul.f32 %v3094, %v2800
    %v3099 = vmul.f32 %v3095, %v2801
    %v3100 = vmul.f32 %v3081, %v3090
    %v3101 = vmul.f32 %v3083, %v3091
    %v3102 = vadd.f32 %v3098, %v3100
    %v3103 = vadd.f32 %v3099, %v3101
    %v3104 = vtanh.pop %v3102
    %v3105 = vtanh.pop %v3103
    %v3106 = vrot.slane %v3081, 2
    %v3107 = vrot.slane %v3083, 2
    %v3110 = vmul.f32 %v3106, %v3104
    %v3111 = vmul.f32 %v3107, %v3105
    %v3114 = vcombine.low %v3110, %v3111
    %v3116 = vunpack.c.l.s4 1966171168
    %v3117 = vunpack.c.0.s8 %v3116
    %v3118 = vlaneseq
    %v3119 = vshrl.u32 %v3118, 7
    %v3120 = vsub.s32 %v3117, %v3119
    %v3121 = vrot.slane %v3114, %v3120
    %v3123 = vunpack.c.l.s4 1966171168
    %v3124 = vunpack.c.0.s8 %v3123
    %v3125 = vlaneseq
    %v3126 = vshrl.u32 %v3125, 7
    %v3127 = vsub.s32 %v3124, %v3126
    %v3128 = vrot.slane %v3121, %v3127
    %v3130 = vpack.c.bf16 %v3128, %v3128
    %v3131 = vpack.c.bf16 %v2935, %v2935
    %3132 = vmatprep.subr.bf16.mxu0 %v890
    %3133 = vmatpush1.bf16.msra.mxu0 %v889
    %3134 = vmatprep.subr.bf16.mxu0 %v894
    %3135 = vmatpush1.bf16.msra.mxu0 %v893
    %3136 = vmatprep.subr.bf16.mxu0 %v898
    %3137 = vmatpush1.bf16.msra.mxu0 %v897
    %3138 = vmatprep.subr.bf16.mxu0 %v902
    %3139 = vmatpush1.bf16.msra.mxu0 %v901
    %3140 = vmatprep.subr.bf16.mxu0 %v906
    %3141 = vmatpush1.bf16.msra.mxu0 %v905
    %3142 = vmatprep.subr.bf16.mxu0 %v910
    %3143 = vmatpush1.bf16.msra.mxu0 %v909
    %3144 = vmatprep.subr.bf16.mxu0 %v914
    %3145 = vmatpush1.bf16.msra.mxu0 %v913
    %3146 = vmatprep.subr.bf16.mxu0 %v918
    %3147 = vmatpush1.bf16.msra.mxu0 %v917
    %3148 = vmatprep.subr.bf16.mxu0 %v922
    %3149 = vmatpush1.bf16.msra.mxu0 %v921
    %3150 = vmatprep.subr.bf16.mxu0 %v926
    %3151 = vmatpush1.bf16.msra.mxu0 %v925
    %3152 = vmatprep.subr.bf16.mxu0 %v930
    %3153 = vmatpush1.bf16.msra.mxu0 %v929
    %3154 = vmatprep.subr.bf16.mxu0 %v934
    %3155 = vmatpush1.bf16.msra.mxu0 %v933
    %3156 = vmatprep.subr.bf16.mxu0 %v938
    %3157 = vmatpush1.bf16.msra.mxu0 %v937
    %3158 = vmatprep.subr.bf16.mxu0 %v942
    %3159 = vmatpush1.bf16.msra.mxu0 %v941
    %3160 = vmatprep.subr.bf16.mxu0 %v946
    %3161 = vmatpush1.bf16.msra.mxu0 %v945
    %3162 = vmatprep.subr.bf16.mxu0 %v950
    %3163 = vmatpush1.bf16.msra.mxu0 %v949
    %3164 = vmatprep.mubr.bf16.mxu0 %v3131
    %3165 = vmatmul.mubr.bf16.gmra.mrb[0].mxu0 %v3130
    %v3166 = vpop.f32.mrb[0].mxu0
    %v3167 = vadd.f32 %v239, %v3166
    %v3168 = vpop.f32.mrb[0].mxu0
    %v3169 = vadd.f32 %v243, %v3168
    %v3170 = vpop.f32.mrb[0].mxu0
    %v3171 = vpop.f32.mrb[0].mxu0
    %3172 = vdwg.mxu0
    %3173 = vmatprep.subr.bf16.mxu0 %v892
    %3174 = vmatpush1.bf16.msra.mxu0 %v891
    %3175 = vmatprep.subr.bf16.mxu0 %v896
    %3176 = vmatpush1.bf16.msra.mxu0 %v895
    %3177 = vmatprep.subr.bf16.mxu0 %v900
    %3178 = vmatpush1.bf16.msra.mxu0 %v899
    %3179 = vmatprep.subr.bf16.mxu0 %v904
    %3180 = vmatpush1.bf16.msra.mxu0 %v903
    %3181 = vmatprep.subr.bf16.mxu0 %v908
    %3182 = vmatpush1.bf16.msra.mxu0 %v907
    %3183 = vmatprep.subr.bf16.mxu0 %v912
    %3184 = vmatpush1.bf16.msra.mxu0 %v911
    %3185 = vmatprep.subr.bf16.mxu0 %v916
    %3186 = vmatpush1.bf16.msra.mxu0 %v915
    %3187 = vmatprep.subr.bf16.mxu0 %v920
    %3188 = vmatpush1.bf16.msra.mxu0 %v919
    %3189 = vmatprep.subr.bf16.mxu0 %v924
    %3190 = vmatpush1.bf16.msra.mxu0 %v923
    %3191 = vmatprep.subr.bf16.mxu0 %v928
    %3192 = vmatpush1.bf16.msra.mxu0 %v927
    %3193 = vmatprep.subr.bf16.mxu0 %v932
    %3194 = vmatpush1.bf16.msra.mxu0 %v931
    %3195 = vmatprep.subr.bf16.mxu0 %v936
    %3196 = vmatpush1.bf16.msra.mxu0 %v935
    %3197 = vmatprep.subr.bf16.mxu0 %v940
    %3198 = vmatpush1.bf16.msra.mxu0 %v939
    %3199 = vmatprep.subr.bf16.mxu0 %v944
    %3200 = vmatpush1.bf16.msra.mxu0 %v943
    %3201 = vmatprep.subr.bf16.mxu0 %v948
    %3202 = vmatpush1.bf16.msra.mxu0 %v947
    %3203 = vmatprep.subr.bf16.mxu0 %v952
    %3204 = vmatpush1.bf16.msra.mxu0 %v951
    %3205 = vmatprep.mubr.bf16.mxu0 %v3131
    %3206 = vmatmul.mubr.bf16.gmra.mrb[0].mxu0 %v3130
    %v3207 = vpop.f32.mrb[0].mxu0
    %v3208 = vadd.f32 %v247, %v3207
    %v3209 = vpop.f32.mrb[0].mxu0
    %v3210 = vadd.f32 %v251, %v3209
    %v3211 = vpop.f32.mrb[0].mxu0
    %v3212 = vpop.f32.mrb[0].mxu0
    %3213 = vdwg.mxu0
    %v3214 = vxor.u32 %v3167, 2147483648
    %v3215 = vxor.u32 %v3169, 2147483648
    %v3216 = vxor.u32 %v3208, 2147483648
    %v3217 = vmul.f32 %v3214, 1.442695
    %v3218 = vpow.pop %v3217
    %v3219 = vmul.f32 %v3215, 1.442695
    %v3220 = vpow.pop %v3219
    %v3221 = vmul.f32 %v3216, 1.442695
    %v3222 = vpow.pop %v3221
    %v3223 = vadd.f32 %v3218, 1.0
    %v3224 = vadd.f32 %v3220, 1.0
    %v3225 = vadd.f32 %v3222, 1.0
    %v3226 = vrcp.pop %v3223
    %v3227 = vmul.f32 1.0, %v3226
    %v3228 = vrcp.pop %v3224
    %v3229 = vmul.f32 1.0, %v3228
    %v3230 = vrcp.pop %v3225
    %v3231 = vmul.f32 1.0, %v3230
    %v3232 = vtanh.pop %v3210
    %v3233 = vmul.f32 %v3229, %v2933
    %v3234 = vmul.f32 %v3227, %v3232
    %v3235 = vadd.f32 %v3233, %v3234
    %v3236 = vtanh.pop %v3235
    %v3237 = vmul.f32 %v3231, %v3236
    %v3238 = vld [vmem:[%s6] sm:$0x1]
    %v3240 = vlaneseq
    %v3241 = vshrl.u32 %v3240, 7
    %v3242 = vsub.s32 0, %v3241
    %v3243 = vrot.slane %v3238, %v3242
    %v3245 = vmul.f32 %v3237, %v3243
    %vm3246 = vcmask 1041408
    %v3247 = vsel %vm3246, %v3245, 0.0
    %3248 = vadd.xlane.f32.xlu0 %v3247
    %v3249 = vpop.xlane.xlu0 %3248
    %v3250 = vld [vmem:[#allocation3] sm:$0x1]
    %v3252 = vlaneseq
    %v3253 = vshrl.u32 %v3252, 7
    %v3254 = vsub.s32 0, %v3253
    %v3255 = vrot.slane %v3250, %v3254
    %v3257 = vadd.f32 %v3249, %v3255
    %vm3258 = vcmask 1024
    %3259 = vst.msk [vmem:[%s8] sm:$0x3] %vm3258, %v3257
    // Predicated region
    $region50: #{lstm_forward.1} parent=1 // pred_check
      _
    $region51: #{lstm_forward.1} parent=1 // pred_check_branch
      %3261 = sbr.rel (0) target = $region53
    $region52: #{lstm_forward.1} parent=1 // pred_region
      _
    $region53: #{lstm_forward.1} parent=1 // pred_fallthru
      _
    // Predicated region
    $region54: #{lstm_forward.1} parent=1 // pred_check
      _
    $region55: #{lstm_forward.1} parent=1 // pred_check_branch
      %3263 = sbr.rel (0) target = $region57
    $region56: #{lstm_forward.1} parent=1 // pred_region
      _
    $region57: #{lstm_forward.1} parent=1 // pred_fallthru
      _
    %3264 = vsyncpa [#allocation5], 1
    %3265 = vsyncpa [#allocation7], 1
    %3266 = vsyncpa [#allocation10], 1

</llo_original>
